<compile_context>
chip_gen: v7x
topology: tpu7x:2x2x1
jax: 0.10.0
libtpu: 0.0.40
codegen_flags: <defaults>
</compile_context>

<pallas_src>
import jax
import jax.numpy as jnp
from jax.experimental import pallas as pl
from jax.experimental.pallas import tpu as pltpu

EPS = 1e-5
SIZES = (20, 512, 512, 256, 8)   # input_size=20, hidden 512/512/256, output_size=8


def _bn_train(h, gamma, beta):
    """nn.BatchNorm1d in training mode, single-sweep moments + fused affine."""
    inv_n = 1.0 / h.shape[0]
    s = jnp.sum(h, axis=0, keepdims=True)
    ss = jnp.sum(h * h, axis=0, keepdims=True)
    mean = s * inv_n
    var = jnp.maximum(ss * inv_n - mean * mean, 0.0)     # biased batch variance
    scale = gamma * jax.lax.rsqrt(var + EPS)
    offset = beta - mean * scale
    return h * scale + offset


def mlp_kernel(x_ref, w1_ref, w2_ref, w3_ref, w4_ref, bn_ref, o_ref):
    H1, H2, H3, OUT = SIZES[1], SIZES[2], SIZES[3], SIZES[4]

    x = x_ref[...].astype(jnp.bfloat16)

    # block 1: Linear(20,512) + BN + ReLU
    h = jnp.dot(x, w1_ref[...], preferred_element_type=jnp.float32)
    h = jnp.maximum(_bn_train(h, bn_ref[0:1, :H1], bn_ref[1:2, :H1]), 0.0)

    # block 2: Linear(512,512) + BN + ReLU
    h = jnp.dot(h.astype(jnp.bfloat16), w2_ref[...], preferred_element_type=jnp.float32)
    h = jnp.maximum(_bn_train(h, bn_ref[2:3, :H2], bn_ref[3:4, :H2]), 0.0)

    # block 3: Linear(512,256) + BN + ReLU
    h = jnp.dot(h.astype(jnp.bfloat16), w3_ref[...], preferred_element_type=jnp.float32)
    h = jnp.maximum(_bn_train(h, bn_ref[4:5, :H3], bn_ref[5:6, :H3]), 0.0)

    # block 4: Linear(256,8) + BN + Sigmoid
    h = jnp.dot(h.astype(jnp.bfloat16), w4_ref[...], preferred_element_type=jnp.float32)
    h = _bn_train(h, bn_ref[6:7, :OUT], bn_ref[7:8, :OUT])
    # numerically-stable sigmoid, tanh runs on the (otherwise idle) EUP
    o_ref[...] = 0.5 * (jnp.tanh(0.5 * h) + 1.0)


def init_params(key, sizes=SIZES):
    """Weights ~ U(-1/sqrt(fan_in), 1/sqrt(fan_in)), stored (in, out) in bf16.
    Linear biases are dropped (exactly cancelled by training-mode BN).
    BN gamma=1 / beta=0 packed as a single (2*n_layers, max_width) f32 buffer:
    row 2l = gamma of layer l, row 2l+1 = beta of layer l."""
    ws = []
    for fin, fout in zip(sizes[:-1], sizes[1:]):
        key, kw = jax.random.split(key)
        bound = 1.0 / (fin ** 0.5)
        w = jax.random.uniform(kw, (fin, fout), jnp.float32, -bound, bound)
        ws.append(w.astype(jnp.bfloat16))

    max_f = max(sizes[1:])
    bn = jnp.zeros((2 * (len(sizes) - 1), max_f), jnp.float32)
    for layer, fout in enumerate(sizes[1:]):
        bn = bn.at[2 * layer, :fout].set(1.0)      # gamma; beta row stays 0
    return (*ws, bn)


def feature2embedding(x, params):
    """Fused forward pass. Whole batch + all bf16 weights (< 1 MB) fit VMEM,
    so a single ungridded kernel invocation does all four blocks."""
    w1, w2, w3, w4, bn = params
    n = x.shape[0]
    vmem = pl.BlockSpec(memory_space=pltpu.MemorySpace.VMEM)
    return pl.pallas_call(
        mlp_kernel,
        out_shape=jax.ShapeDtypeStruct((n, SIZES[-1]), jnp.float32),
        in_specs=[vmem] * 6,
        out_specs=vmem,
    )(x, w1, w2, w3, w4, bn)


def _reference(x, params):
    """Pure-JAX reference with identical math (bf16 matmuls, f32 BN)."""
    w1, w2, w3, w4, bn = params
    H1, H2, H3, OUT = SIZES[1], SIZES[2], SIZES[3], SIZES[4]
    h = jnp.dot(x.astype(jnp.bfloat16), w1, preferred_element_type=jnp.float32)
    h = jnp.maximum(_bn_train(h, bn[0:1, :H1], bn[1:2, :H1]), 0.0)
    h = jnp.dot(h.astype(jnp.bfloat16), w2, preferred_element_type=jnp.float32)
    h = jnp.maximum(_bn_train(h, bn[2:3, :H2], bn[3:4, :H2]), 0.0)
    h = jnp.dot(h.astype(jnp.bfloat16), w3, preferred_element_type=jnp.float32)
    h = jnp.maximum(_bn_train(h, bn[4:5, :H3], bn[5:6, :H3]), 0.0)
    h = jnp.dot(h.astype(jnp.bfloat16), w4, preferred_element_type=jnp.float32)
    h = _bn_train(h, bn[6:7, :OUT], bn[7:8, :OUT])
    return 0.5 * (jnp.tanh(0.5 * h) + 1.0)


if __name__ == "__main__":
    key = jax.random.PRNGKey(0)
    kx, kp = jax.random.split(key)

    batch = 128   # MXU-aligned M; still a small, VMEM-resident problem
    x = jax.random.normal(kx, (batch, SIZES[0]), dtype=jnp.float32)
    params = init_params(kp)

    out = feature2embedding(x, params)
    out = jax.block_until_ready(out)

    assert out.shape == (batch, SIZES[-1]), out.shape
    assert bool(jnp.all(jnp.isfinite(out)))
    assert bool(jnp.all((out >= 0.0) & (out <= 1.0)))   # sigmoid output range

    ref = _reference(x, params)
    assert bool(jnp.allclose(out, ref, atol=1e-2, rtol=1e-2))

    print("KERNEL_OK")
</pallas_src>

<mosaic_0001>
module attributes {stable_mosaic.version = 11 : i64} {
  func.func @mlp_kernel(%arg0: memref<128x20xf32, #tpu.memory_space<vmem>>, %arg1: memref<20x512xbf16, #tpu.memory_space<vmem>>, %arg2: memref<512x512xbf16, #tpu.memory_space<vmem>>, %arg3: memref<512x256xbf16, #tpu.memory_space<vmem>>, %arg4: memref<256x8xbf16, #tpu.memory_space<vmem>>, %arg5: memref<8x512xf32, #tpu.memory_space<vmem>>, %arg6: memref<128x8xf32, #tpu.memory_space<vmem>>) attributes {dimension_semantics = [], scalar_prefetch = 0 : i64, scratch_operands = 0 : i64, tpu.core_type = #tpu.core_type<tc>} {
    %c0 = arith.constant 0 : index
    %c0_0 = arith.constant 0 : index
    %0 = vector.load %arg0[%c0, %c0_0] : memref<128x20xf32, #tpu.memory_space<vmem>>, vector<128x20xf32>
    %1 = arith.truncf %0 : vector<128x20xf32> to vector<128x20xbf16>
    %c0_1 = arith.constant 0 : index
    %c0_2 = arith.constant 0 : index
    %2 = vector.load %arg1[%c0_1, %c0_2] : memref<20x512xbf16, #tpu.memory_space<vmem>>, vector<20x512xbf16>
    %cst = arith.constant dense<0.000000e+00> : vector<128x512xf32>
    %3 = tpu.matmul %1, %2, %cst {dimension_numbers = #tpu.dot_dimension_numbers<[1], [0], [0], [1], [0, 0, 1, 1], [], []>} : vector<128x20xbf16>, vector<20x512xbf16>, vector<128x512xf32> -> vector<128x512xf32>
    %c0_3 = arith.constant 0 : index
    %c0_4 = arith.constant 0 : index
    %4 = vector.load %arg5[%c0_3, %c0_4] : memref<8x512xf32, #tpu.memory_space<vmem>>, vector<1x512xf32>
    %c1 = arith.constant 1 : index
    %c0_5 = arith.constant 0 : index
    %5 = vector.load %arg5[%c1, %c0_5] : memref<8x512xf32, #tpu.memory_space<vmem>>, vector<1x512xf32>
    %cst_6 = arith.constant dense<0.000000e+00> : vector<512xf32>
    %6 = vector.multi_reduction <add>, %3, %cst_6 [0] : vector<128x512xf32> to vector<512xf32>
    %7 = vector.shape_cast %6 : vector<512xf32> to vector<1x512xf32>
    %8 = arith.mulf %3, %3 : vector<128x512xf32>
    %cst_7 = arith.constant dense<0.000000e+00> : vector<512xf32>
    %9 = vector.multi_reduction <add>, %8, %cst_7 [0] : vector<128x512xf32> to vector<512xf32>
    %10 = vector.shape_cast %9 : vector<512xf32> to vector<1x512xf32>
    %cst_8 = arith.constant 7.812500e-03 : f32
    %11 = vector.broadcast %cst_8 : f32 to vector<1x512xf32>
    %12 = arith.mulf %7, %11 : vector<1x512xf32>
    %cst_9 = arith.constant 7.812500e-03 : f32
    %13 = vector.broadcast %cst_9 : f32 to vector<1x512xf32>
    %14 = arith.mulf %10, %13 : vector<1x512xf32>
    %15 = arith.mulf %12, %12 : vector<1x512xf32>
    %16 = arith.subf %14, %15 : vector<1x512xf32>
    %cst_10 = arith.constant 0.000000e+00 : f32
    %17 = vector.broadcast %cst_10 : f32 to vector<1x512xf32>
    %18 = arith.maximumf %16, %17 : vector<1x512xf32>
    %cst_11 = arith.constant 9.99999974E-6 : f32
    %19 = vector.broadcast %cst_11 : f32 to vector<1x512xf32>
    %20 = arith.addf %18, %19 : vector<1x512xf32>
    %21 = math.rsqrt %20 : vector<1x512xf32>
    %22 = arith.mulf %4, %21 : vector<1x512xf32>
    %23 = arith.mulf %12, %22 : vector<1x512xf32>
    %24 = arith.subf %5, %23 : vector<1x512xf32>
    %25 = vector.broadcast %22 : vector<1x512xf32> to vector<128x512xf32>
    %26 = arith.mulf %3, %25 : vector<128x512xf32>
    %27 = vector.broadcast %24 : vector<1x512xf32> to vector<128x512xf32>
    %28 = arith.addf %26, %27 : vector<128x512xf32>
    %cst_12 = arith.constant 0.000000e+00 : f32
    %29 = vector.broadcast %cst_12 : f32 to vector<128x512xf32>
    %30 = arith.maximumf %28, %29 : vector<128x512xf32>
    %31 = arith.truncf %30 : vector<128x512xf32> to vector<128x512xbf16>
    %c0_13 = arith.constant 0 : index
    %c0_14 = arith.constant 0 : index
    %32 = vector.load %arg2[%c0_13, %c0_14] : memref<512x512xbf16, #tpu.memory_space<vmem>>, vector<512x512xbf16>
    %cst_15 = arith.constant dense<0.000000e+00> : vector<128x512xf32>
    %33 = tpu.matmul %31, %32, %cst_15 {dimension_numbers = #tpu.dot_dimension_numbers<[1], [0], [0], [1], [0, 0, 1, 1], [], []>} : vector<128x512xbf16>, vector<512x512xbf16>, vector<128x512xf32> -> vector<128x512xf32>
    %c2 = arith.constant 2 : index
    %c0_16 = arith.constant 0 : index
    %34 = vector.load %arg5[%c2, %c0_16] : memref<8x512xf32, #tpu.memory_space<vmem>>, vector<1x512xf32>
    %c3 = arith.constant 3 : index
    %c0_17 = arith.constant 0 : index
    %35 = vector.load %arg5[%c3, %c0_17] : memref<8x512xf32, #tpu.memory_space<vmem>>, vector<1x512xf32>
    %cst_18 = arith.constant dense<0.000000e+00> : vector<512xf32>
    %36 = vector.multi_reduction <add>, %33, %cst_18 [0] : vector<128x512xf32> to vector<512xf32>
    %37 = vector.shape_cast %36 : vector<512xf32> to vector<1x512xf32>
    %38 = arith.mulf %33, %33 : vector<128x512xf32>
    %cst_19 = arith.constant dense<0.000000e+00> : vector<512xf32>
    %39 = vector.multi_reduction <add>, %38, %cst_19 [0] : vector<128x512xf32> to vector<512xf32>
    %40 = vector.shape_cast %39 : vector<512xf32> to vector<1x512xf32>
    %cst_20 = arith.constant 7.812500e-03 : f32
    %41 = vector.broadcast %cst_20 : f32 to vector<1x512xf32>
    %42 = arith.mulf %37, %41 : vector<1x512xf32>
    %cst_21 = arith.constant 7.812500e-03 : f32
    %43 = vector.broadcast %cst_21 : f32 to vector<1x512xf32>
    %44 = arith.mulf %40, %43 : vector<1x512xf32>
    %45 = arith.mulf %42, %42 : vector<1x512xf32>
    %46 = arith.subf %44, %45 : vector<1x512xf32>
    %cst_22 = arith.constant 0.000000e+00 : f32
    %47 = vector.broadcast %cst_22 : f32 to vector<1x512xf32>
    %48 = arith.maximumf %46, %47 : vector<1x512xf32>
    %cst_23 = arith.constant 9.99999974E-6 : f32
    %49 = vector.broadcast %cst_23 : f32 to vector<1x512xf32>
    %50 = arith.addf %48, %49 : vector<1x512xf32>
    %51 = math.rsqrt %50 : vector<1x512xf32>
    %52 = arith.mulf %34, %51 : vector<1x512xf32>
    %53 = arith.mulf %42, %52 : vector<1x512xf32>
    %54 = arith.subf %35, %53 : vector<1x512xf32>
    %55 = vector.broadcast %52 : vector<1x512xf32> to vector<128x512xf32>
    %56 = arith.mulf %33, %55 : vector<128x512xf32>
    %57 = vector.broadcast %54 : vector<1x512xf32> to vector<128x512xf32>
    %58 = arith.addf %56, %57 : vector<128x512xf32>
    %cst_24 = arith.constant 0.000000e+00 : f32
    %59 = vector.broadcast %cst_24 : f32 to vector<128x512xf32>
    %60 = arith.maximumf %58, %59 : vector<128x512xf32>
    %61 = arith.truncf %60 : vector<128x512xf32> to vector<128x512xbf16>
    %c0_25 = arith.constant 0 : index
    %c0_26 = arith.constant 0 : index
    %62 = vector.load %arg3[%c0_25, %c0_26] : memref<512x256xbf16, #tpu.memory_space<vmem>>, vector<512x256xbf16>
    %cst_27 = arith.constant dense<0.000000e+00> : vector<128x256xf32>
    %63 = tpu.matmul %61, %62, %cst_27 {dimension_numbers = #tpu.dot_dimension_numbers<[1], [0], [0], [1], [0, 0, 1, 1], [], []>} : vector<128x512xbf16>, vector<512x256xbf16>, vector<128x256xf32> -> vector<128x256xf32>
    %c4 = arith.constant 4 : index
    %c0_28 = arith.constant 0 : index
    %64 = vector.load %arg5[%c4, %c0_28] : memref<8x512xf32, #tpu.memory_space<vmem>>, vector<1x256xf32>
    %c5 = arith.constant 5 : index
    %c0_29 = arith.constant 0 : index
    %65 = vector.load %arg5[%c5, %c0_29] : memref<8x512xf32, #tpu.memory_space<vmem>>, vector<1x256xf32>
    %cst_30 = arith.constant dense<0.000000e+00> : vector<256xf32>
    %66 = vector.multi_reduction <add>, %63, %cst_30 [0] : vector<128x256xf32> to vector<256xf32>
    %67 = vector.shape_cast %66 : vector<256xf32> to vector<1x256xf32>
    %68 = arith.mulf %63, %63 : vector<128x256xf32>
    %cst_31 = arith.constant dense<0.000000e+00> : vector<256xf32>
    %69 = vector.multi_reduction <add>, %68, %cst_31 [0] : vector<128x256xf32> to vector<256xf32>
    %70 = vector.shape_cast %69 : vector<256xf32> to vector<1x256xf32>
    %cst_32 = arith.constant 7.812500e-03 : f32
    %71 = vector.broadcast %cst_32 : f32 to vector<1x256xf32>
    %72 = arith.mulf %67, %71 : vector<1x256xf32>
    %cst_33 = arith.constant 7.812500e-03 : f32
    %73 = vector.broadcast %cst_33 : f32 to vector<1x256xf32>
    %74 = arith.mulf %70, %73 : vector<1x256xf32>
    %75 = arith.mulf %72, %72 : vector<1x256xf32>
    %76 = arith.subf %74, %75 : vector<1x256xf32>
    %cst_34 = arith.constant 0.000000e+00 : f32
    %77 = vector.broadcast %cst_34 : f32 to vector<1x256xf32>
    %78 = arith.maximumf %76, %77 : vector<1x256xf32>
    %cst_35 = arith.constant 9.99999974E-6 : f32
    %79 = vector.broadcast %cst_35 : f32 to vector<1x256xf32>
    %80 = arith.addf %78, %79 : vector<1x256xf32>
    %81 = math.rsqrt %80 : vector<1x256xf32>
    %82 = arith.mulf %64, %81 : vector<1x256xf32>
    %83 = arith.mulf %72, %82 : vector<1x256xf32>
    %84 = arith.subf %65, %83 : vector<1x256xf32>
    %85 = vector.broadcast %82 : vector<1x256xf32> to vector<128x256xf32>
    %86 = arith.mulf %63, %85 : vector<128x256xf32>
    %87 = vector.broadcast %84 : vector<1x256xf32> to vector<128x256xf32>
    %88 = arith.addf %86, %87 : vector<128x256xf32>
    %cst_36 = arith.constant 0.000000e+00 : f32
    %89 = vector.broadcast %cst_36 : f32 to vector<128x256xf32>
    %90 = arith.maximumf %88, %89 : vector<128x256xf32>
    %91 = arith.truncf %90 : vector<128x256xf32> to vector<128x256xbf16>
    %c0_37 = arith.constant 0 : index
    %c0_38 = arith.constant 0 : index
    %92 = vector.load %arg4[%c0_37, %c0_38] : memref<256x8xbf16, #tpu.memory_space<vmem>>, vector<256x8xbf16>
    %cst_39 = arith.constant dense<0.000000e+00> : vector<128x8xf32>
    %93 = tpu.matmul %91, %92, %cst_39 {dimension_numbers = #tpu.dot_dimension_numbers<[1], [0], [0], [1], [0, 0, 1, 1], [], []>} : vector<128x256xbf16>, vector<256x8xbf16>, vector<128x8xf32> -> vector<128x8xf32>
    %c6 = arith.constant 6 : index
    %c0_40 = arith.constant 0 : index
    %94 = vector.load %arg5[%c6, %c0_40] : memref<8x512xf32, #tpu.memory_space<vmem>>, vector<1x8xf32>
    %c7 = arith.constant 7 : index
    %c0_41 = arith.constant 0 : index
    %95 = vector.load %arg5[%c7, %c0_41] : memref<8x512xf32, #tpu.memory_space<vmem>>, vector<1x8xf32>
    %cst_42 = arith.constant dense<0.000000e+00> : vector<8xf32>
    %96 = vector.multi_reduction <add>, %93, %cst_42 [0] : vector<128x8xf32> to vector<8xf32>
    %97 = vector.shape_cast %96 : vector<8xf32> to vector<1x8xf32>
    %98 = arith.mulf %93, %93 : vector<128x8xf32>
    %cst_43 = arith.constant dense<0.000000e+00> : vector<8xf32>
    %99 = vector.multi_reduction <add>, %98, %cst_43 [0] : vector<128x8xf32> to vector<8xf32>
    %100 = vector.shape_cast %99 : vector<8xf32> to vector<1x8xf32>
    %cst_44 = arith.constant 7.812500e-03 : f32
    %101 = vector.broadcast %cst_44 : f32 to vector<1x8xf32>
    %102 = arith.mulf %97, %101 : vector<1x8xf32>
    %cst_45 = arith.constant 7.812500e-03 : f32
    %103 = vector.broadcast %cst_45 : f32 to vector<1x8xf32>
    %104 = arith.mulf %100, %103 : vector<1x8xf32>
    %105 = arith.mulf %102, %102 : vector<1x8xf32>
    %106 = arith.subf %104, %105 : vector<1x8xf32>
    %cst_46 = arith.constant 0.000000e+00 : f32
    %107 = vector.broadcast %cst_46 : f32 to vector<1x8xf32>
    %108 = arith.maximumf %106, %107 : vector<1x8xf32>
    %cst_47 = arith.constant 9.99999974E-6 : f32
    %109 = vector.broadcast %cst_47 : f32 to vector<1x8xf32>
    %110 = arith.addf %108, %109 : vector<1x8xf32>
    %111 = math.rsqrt %110 : vector<1x8xf32>
    %112 = arith.mulf %94, %111 : vector<1x8xf32>
    %113 = arith.mulf %102, %112 : vector<1x8xf32>
    %114 = arith.subf %95, %113 : vector<1x8xf32>
    %115 = vector.broadcast %112 : vector<1x8xf32> to vector<128x8xf32>
    %116 = arith.mulf %93, %115 : vector<128x8xf32>
    %117 = vector.broadcast %114 : vector<1x8xf32> to vector<128x8xf32>
    %118 = arith.addf %116, %117 : vector<128x8xf32>
    %cst_48 = arith.constant 5.000000e-01 : f32
    %119 = vector.broadcast %cst_48 : f32 to vector<128x8xf32>
    %120 = arith.mulf %119, %118 : vector<128x8xf32>
    %121 = math.tanh %120 : vector<128x8xf32>
    %cst_49 = arith.constant 1.000000e+00 : f32
    %122 = vector.broadcast %cst_49 : f32 to vector<128x8xf32>
    %123 = arith.addf %121, %122 : vector<128x8xf32>
    %cst_50 = arith.constant 5.000000e-01 : f32
    %124 = vector.broadcast %cst_50 : f32 to vector<128x8xf32>
    %125 = arith.mulf %124, %123 : vector<128x8xf32>
    %c0_51 = arith.constant 0 : index
    %c0_52 = arith.constant 0 : index
    %126 = vector.load %arg6[%c0_51, %c0_52] : memref<128x8xf32, #tpu.memory_space<vmem>>, vector<128x8xf32>
    tpu.vector_store %arg6[%c0_51, %c0_52], %125 {strides = array<i32>} : memref<128x8xf32, #tpu.memory_space<vmem>>, vector<128x8xf32>,
    return
  }
}

</mosaic_0001>

<llo_original>
// kernel: tpu_custom_call.1
$region0: #{tpu_custom_call.1}
  #allocation0 [shape = 'u32[]', space=smem, size = 0x4, offset = 0x4, fixed_abs, tag = 'smem constant byte address 0x4 - core index']
  #allocation1 [shape = 'u32[144,128]{1,0:T(1,128)}', space=vmem, size = 0x12000, scoped, tag = 'internal scratch']
  %s0 = inlined_call_operand.vmem [shape: f32[128,20], index: 0, kind: input, shape index: {}]
  %s1 = inlined_call_operand.vmem [shape: bf16[20,512], index: 1, kind: input, shape index: {}]
  %s2 = inlined_call_operand.hbm [shape: bf16[512,512], index: 2, kind: input, shape index: {}]
  %s3 = inlined_call_operand.hbm [shape: bf16[512,256], index: 3, kind: input, shape index: {}]
  %s4 = inlined_call_operand.vmem [shape: bf16[256,8], index: 4, kind: input, shape index: {}]
  %s5 = inlined_call_operand.vmem [shape: f32[8,512], index: 5, kind: input, shape index: {}]
  %s6 = inlined_call_operand.vmem [shape: f32[128,8], index: 6, kind: output, shape index: {}]
  %s7 = sld [smem:[#allocation0]]
  $region42: #{tpu_custom_call.1} parent=0
    _
  %s9 = ssub.s32 1, %s7
  %s10 = scalar_select 0, %s9, %s7
  $region1: #{tpu_custom_call.1} parent=0
    #allocation2 [shape = 'u8[524288]{0}', space=vmem, size = 0x80000, scoped, tag = 'input window, operand 2, single buffered']
    #allocation3 [shape = 's32[1]{0}', space=sflag, size = 0x4, scoped, tag = 'scoped memory for tpu_custom_call.1']
    #allocation4 [shape = 'u8[262144]{0}', space=vmem, size = 0x40000, scoped, tag = 'input window, operand 3, single buffered']
    #allocation5 [shape = 's32[1]{0}', space=sflag, size = 0x4, scoped, tag = 'scoped memory for tpu_custom_call.1']
    %11 = vsyncpa [#allocation3], 0
    %12 = vsyncpa [#allocation5], 0
    // Predicated region
    $region2: #{tpu_custom_call.1} parent=1 // pred_check
      _
    $region3: #{tpu_custom_call.1} parent=1 // pred_check_branch
      %14 = sbr.rel (0) target = $region5
    $region4: #{tpu_custom_call.1} parent=1 // pred_region
      _
    $region5: #{tpu_custom_call.1} parent=1 // pred_fallthru
      _
    // Predicated region
    $region6: #{tpu_custom_call.1} parent=1 // pred_check
      _
    $region7: #{tpu_custom_call.1} parent=1 // pred_check_branch
      %16 = sbr.rel (0) target = $region9
    $region8: #{tpu_custom_call.1} parent=1 // pred_region
      _
    $region9: #{tpu_custom_call.1} parent=1 // pred_fallthru
      _
    // Predicated region
    $region10: #{tpu_custom_call.1} parent=1 // pred_check
      _
    $region11: #{tpu_custom_call.1} parent=1 // pred_check_branch
      %18 = sbr.rel (0) target = $region13
    $region12: #{tpu_custom_call.1} parent=1 // pred_region
      %s20 = ssub.s32 16384, 16384
      %21 = vsyncadd [#allocation3], %s20
      %s22 = sshll.u32 [#allocation2], 4
      %s23 = int_to_ptr.vmem [resolvable:$true] %s22
      %28 = dma.hbm_to_vmem [thread:$0]  %s2, 16384, %s23, [#allocation3], 256, 256, 16
    $region13: #{tpu_custom_call.1} parent=1 // pred_fallthru
      _
    // Predicated region
    $region14: #{tpu_custom_call.1} parent=1 // pred_check
      _
    $region15: #{tpu_custom_call.1} parent=1 // pred_check_branch
      %30 = sbr.rel (0) target = $region17
    $region16: #{tpu_custom_call.1} parent=1 // pred_region
      %s32 = ssub.s32 8192, 8192
      %33 = vsyncadd [#allocation5], %s32
      %s34 = sshll.u32 [#allocation4], 4
      %s35 = int_to_ptr.vmem [resolvable:$true] %s34
      %40 = dma.hbm_to_vmem [thread:$0]  %s3, 8192, %s35, [#allocation5], 128, 128, 8
    $region17: #{tpu_custom_call.1} parent=1 // pred_fallthru
      _
    // Predicated region
    $region18: #{tpu_custom_call.1} parent=1 // pred_check
      _
    $region19: #{tpu_custom_call.1} parent=1 // pred_check_branch
      %42 = sbr.rel (0) target = $region21
    $region20: #{tpu_custom_call.1} parent=1 // pred_region
      _
    $region21: #{tpu_custom_call.1} parent=1 // pred_fallthru
      _
    // Predicated region
    $region22: #{tpu_custom_call.1} parent=1 // pred_check
      _
    $region23: #{tpu_custom_call.1} parent=1 // pred_check_branch
      %44 = sbr.rel (0) target = $region25
    $region24: #{tpu_custom_call.1} parent=1 // pred_region
      _
    $region25: #{tpu_custom_call.1} parent=1 // pred_fallthru
      _
    // Predicated region
    $region26: #{tpu_custom_call.1} parent=1 // pred_check
      _
    $region27: #{tpu_custom_call.1} parent=1 // pred_check_branch
      %46 = sbr.rel (0) target = $region29
    $region28: #{tpu_custom_call.1} parent=1 // pred_region
      %47 = dma.done [#allocation3], 16384
    $region29: #{tpu_custom_call.1} parent=1 // pred_fallthru
      _
    // Predicated region
    $region30: #{tpu_custom_call.1} parent=1 // pred_check
      _
    $region31: #{tpu_custom_call.1} parent=1 // pred_check_branch
      %49 = sbr.rel (0) target = $region33
    $region32: #{tpu_custom_call.1} parent=1 // pred_region
      %50 = dma.done [#allocation5], 8192
    $region33: #{tpu_custom_call.1} parent=1 // pred_fallthru
      _
    %v52 = vld [vmem:[%s0] sm:$0xff]
    %v53 = vld [vmem:[%s0 + $0x8] sm:$0xff]
    %v54 = vld [vmem:[%s0 + $0x10] sm:$0xff]
    %v55 = vld [vmem:[%s0 + $0x18] sm:$0xff]
    %v56 = vld [vmem:[%s0 + $0x20] sm:$0xff]
    %v57 = vld [vmem:[%s0 + $0x28] sm:$0xff]
    %v58 = vld [vmem:[%s0 + $0x30] sm:$0xff]
    %v59 = vld [vmem:[%s0 + $0x38] sm:$0xff]
    %v60 = vld [vmem:[%s0 + $0x40] sm:$0xff]
    %v61 = vld [vmem:[%s0 + $0x48] sm:$0xff]
    %v62 = vld [vmem:[%s0 + $0x50] sm:$0xff]
    %v63 = vld [vmem:[%s0 + $0x58] sm:$0xff]
    %v64 = vld [vmem:[%s0 + $0x60] sm:$0xff]
    %v65 = vld [vmem:[%s0 + $0x68] sm:$0xff]
    %v66 = vld [vmem:[%s0 + $0x70] sm:$0xff]
    %v67 = vld [vmem:[%s0 + $0x78] sm:$0xff]
    %v68 = vpack.c.bf16 %v53, %v52
    %v69 = vpack.c.bf16 %v55, %v54
    %v70 = vpack.c.bf16 %v57, %v56
    %v71 = vpack.c.bf16 %v59, %v58
    %v72 = vpack.c.bf16 %v61, %v60
    %v73 = vpack.c.bf16 %v63, %v62
    %v74 = vpack.c.bf16 %v65, %v64
    %v75 = vpack.c.bf16 %v67, %v66
    %v76 = vld [vmem:[%s1] sm:$0xff]
    %v77 = vld [vmem:[%s1 + $0x8] sm:$0xff]
    %v78 = vld [vmem:[%s1 + $0x10] sm:$0xff]
    %v79 = vld [vmem:[%s1 + $0x18] sm:$0xff]
    %v80 = vld [vmem:[%s1 + $0x20] sm:$0x33]
    %v81 = vld [vmem:[%s1 + $0x28] sm:$0x33]
    %v88 = vunpack.c.l.b16 %v76
    %v89 = vunpack.c.h.b16 %v76
    %v90 = vunpack.c.l.b16 %v77
    %v91 = vunpack.c.h.b16 %v77
    %v92 = vunpack.c.l.b16 %v78
    %v93 = vunpack.c.h.b16 %v78
    %v94 = vunpack.c.l.b16 %v79
    %v95 = vunpack.c.h.b16 %v79
    %v96 = vunpack.c.l.b16 %v80
    %v97 = vunpack.c.h.b16 %v80
    %v98 = vunpack.c.l.b16 %v81
    %v99 = vunpack.c.h.b16 %v81
    %v100 = vpack.c.b16 %v92, %v88
    %v101 = vpack.c.b16 %v93, %v89
    %v102 = vpack.c.b16 %v94, %v90
    %v103 = vpack.c.b16 %v95, %v91
    %v104 = vpack.c.b16 %v96, %v96
    %v105 = vpack.c.b16 %v97, %v97
    %v106 = vpack.c.b16 %v98, %v98
    %v107 = vpack.c.b16 %v99, %v99
    %vm112 = vcmask 162816
    %v114 = vsel %vm112, %v68, 0
    %v117 = vsel %vm112, %v69, 0
    %v120 = vsel %vm112, %v70, 0
    %v123 = vsel %vm112, %v71, 0
    %v126 = vsel %vm112, %v72, 0
    %v129 = vsel %vm112, %v73, 0
    %v132 = vsel %vm112, %v74, 0
    %v135 = vsel %vm112, %v75, 0
    %vm137 = vcmask 1041408
    %v139 = vsel %vm137, %v104, 0
    %v142 = vsel %vm137, %v105, 0
    %v145 = vsel %vm137, %v106, 0
    %v148 = vsel %vm137, %v107, 0
    %150 = vmatprep.subr.bf16.mxu0 %v101
    %151 = vmatpush1.bf16.msra.mxu0 %v100
    %152 = vmatprep.subr.bf16.mxu0 %v142
    %153 = vmatpush1.bf16.msra.mxu0 %v139
    %154 = vmatprep.subr.bf16.mxu0 0
    %155 = vmatpush1.bf16.msra.mxu0 0
    %156 = vmatprep.subr.bf16.mxu0 0
    %157 = vmatpush1.bf16.msra.mxu0 0
    %158 = vmatprep.subr.bf16.mxu0 0
    %159 = vmatpush1.bf16.msra.mxu0 0
    %160 = vmatprep.subr.bf16.mxu0 0
    %161 = vmatpush1.bf16.msra.mxu0 0
    %162 = vmatprep.subr.bf16.mxu0 0
    %163 = vmatpush1.bf16.msra.mxu0 0
    %164 = vmatprep.subr.bf16.mxu0 0
    %165 = vmatpush1.bf16.msra.mxu0 0
    %166 = vmatprep.subr.bf16.mxu0 0
    %167 = vmatpush1.bf16.msra.mxu0 0
    %168 = vmatprep.subr.bf16.mxu0 0
    %169 = vmatpush1.bf16.msra.mxu0 0
    %170 = vmatprep.subr.bf16.mxu0 0
    %171 = vmatpush1.bf16.msra.mxu0 0
    %172 = vmatprep.subr.bf16.mxu0 0
    %173 = vmatpush1.bf16.msra.mxu0 0
    %174 = vmatprep.subr.bf16.mxu0 0
    %175 = vmatpush1.bf16.msra.mxu0 0
    %176 = vmatprep.subr.bf16.mxu0 0
    %177 = vmatpush1.bf16.msra.mxu0 0
    %178 = vmatprep.subr.bf16.mxu0 0
    %179 = vmatpush1.bf16.msra.mxu0 0
    %180 = vmatprep.subr.bf16.mxu0 0
    %181 = vmatpush1.bf16.msra.mxu0 0
    %182 = vmatprep.mubr.bf16.mxu0 0
    %183 = vmatmul.mubr.bf16.gmra.mrb[0].mxu0 %v114
    %v184 = vpop.f32.mrb[0].mxu0
    %v185 = vadd.f32 0.0, %v184
    %v186 = vpop.f32.mrb[0].mxu0
    %v187 = vadd.f32 0.0, %v186
    %v188 = vpop.f32.mrb[0].mxu0
    %v189 = vadd.f32 0.0, %v188
    %v190 = vpop.f32.mrb[0].mxu0
    %v191 = vadd.f32 0.0, %v190
    %192 = vmatprep.mubr.bf16.mxu0 0
    %193 = vmatmul.mubr.bf16.gmra.mrb[0].mxu0 %v117
    %v194 = vpop.f32.mrb[0].mxu0
    %v195 = vadd.f32 0.0, %v194
    %v196 = vpop.f32.mrb[0].mxu0
    %v197 = vadd.f32 0.0, %v196
    %v198 = vpop.f32.mrb[0].mxu0
    %v199 = vadd.f32 0.0, %v198
    %v200 = vpop.f32.mrb[0].mxu0
    %v201 = vadd.f32 0.0, %v200
    %202 = vmatprep.mubr.bf16.mxu0 0
    %203 = vmatmul.mubr.bf16.gmra.mrb[0].mxu0 %v120
    %v204 = vpop.f32.mrb[0].mxu0
    %v205 = vadd.f32 0.0, %v204
    %v206 = vpop.f32.mrb[0].mxu0
    %v207 = vadd.f32 0.0, %v206
    %v208 = vpop.f32.mrb[0].mxu0
    %v209 = vadd.f32 0.0, %v208
    %v210 = vpop.f32.mrb[0].mxu0
    %v211 = vadd.f32 0.0, %v210
    %212 = vmatprep.mubr.bf16.mxu0 0
    %213 = vmatmul.mubr.bf16.gmra.mrb[0].mxu0 %v123
    %v214 = vpop.f32.mrb[0].mxu0
    %v215 = vadd.f32 0.0, %v214
    %v216 = vpop.f32.mrb[0].mxu0
    %v217 = vadd.f32 0.0, %v216
    %v218 = vpop.f32.mrb[0].mxu0
    %v219 = vadd.f32 0.0, %v218
    %v220 = vpop.f32.mrb[0].mxu0
    %v221 = vadd.f32 0.0, %v220
    %222 = vmatprep.mubr.bf16.mxu0 0
    %223 = vmatmul.mubr.bf16.gmra.mrb[0].mxu0 %v126
    %v224 = vpop.f32.mrb[0].mxu0
    %v225 = vadd.f32 0.0, %v224
    %v226 = vpop.f32.mrb[0].mxu0
    %v227 = vadd.f32 0.0, %v226
    %v228 = vpop.f32.mrb[0].mxu0
    %v229 = vadd.f32 0.0, %v228
    %v230 = vpop.f32.mrb[0].mxu0
    %v231 = vadd.f32 0.0, %v230
    %232 = vmatprep.mubr.bf16.mxu0 0
    %233 = vmatmul.mubr.bf16.gmra.mrb[0].mxu0 %v129
    %v234 = vpop.f32.mrb[0].mxu0
    %v235 = vadd.f32 0.0, %v234
    %v236 = vpop.f32.mrb[0].mxu0
    %v237 = vadd.f32 0.0, %v236
    %v238 = vpop.f32.mrb[0].mxu0
    %v239 = vadd.f32 0.0, %v238
    %v240 = vpop.f32.mrb[0].mxu0
    %v241 = vadd.f32 0.0, %v240
    %242 = vmatprep.mubr.bf16.mxu0 0
    %243 = vmatmul.mubr.bf16.gmra.mrb[0].mxu0 %v132
    %v244 = vpop.f32.mrb[0].mxu0
    %v245 = vadd.f32 0.0, %v244
    %v246 = vpop.f32.mrb[0].mxu0
    %v247 = vadd.f32 0.0, %v246
    %v248 = vpop.f32.mrb[0].mxu0
    %v249 = vadd.f32 0.0, %v248
    %v250 = vpop.f32.mrb[0].mxu0
    %v251 = vadd.f32 0.0, %v250
    %252 = vmatprep.mubr.bf16.mxu0 0
    %253 = vmatmul.mubr.bf16.gmra.mrb[0].mxu0 %v135
    %v254 = vpop.f32.mrb[0].mxu0
    %v255 = vadd.f32 0.0, %v254
    %v256 = vpop.f32.mrb[0].mxu0
    %v257 = vadd.f32 0.0, %v256
    %v258 = vpop.f32.mrb[0].mxu0
    %v259 = vadd.f32 0.0, %v258
    %v260 = vpop.f32.mrb[0].mxu0
    %v261 = vadd.f32 0.0, %v260
    %262 = vdwg.mxu0
    %263 = vmatprep.subr.bf16.mxu0 %v103
    %264 = vmatpush1.bf16.msra.mxu0 %v102
    %265 = vmatprep.subr.bf16.mxu0 %v148
    %266 = vmatpush1.bf16.msra.mxu0 %v145
    %267 = vmatprep.subr.bf16.mxu0 0
    %268 = vmatpush1.bf16.msra.mxu0 0
    %269 = vmatprep.subr.bf16.mxu0 0
    %270 = vmatpush1.bf16.msra.mxu0 0
    %271 = vmatprep.subr.bf16.mxu0 0
    %272 = vmatpush1.bf16.msra.mxu0 0
    %273 = vmatprep.subr.bf16.mxu0 0
    %274 = vmatpush1.bf16.msra.mxu0 0
    %275 = vmatprep.subr.bf16.mxu0 0
    %276 = vmatpush1.bf16.msra.mxu0 0
    %277 = vmatprep.subr.bf16.mxu0 0
    %278 = vmatpush1.bf16.msra.mxu0 0
    %279 = vmatprep.subr.bf16.mxu0 0
    %280 = vmatpush1.bf16.msra.mxu0 0
    %281 = vmatprep.subr.bf16.mxu0 0
    %282 = vmatpush1.bf16.msra.mxu0 0
    %283 = vmatprep.subr.bf16.mxu0 0
    %284 = vmatpush1.bf16.msra.mxu0 0
    %285 = vmatprep.subr.bf16.mxu0 0
    %286 = vmatpush1.bf16.msra.mxu0 0
    %287 = vmatprep.subr.bf16.mxu0 0
    %288 = vmatpush1.bf16.msra.mxu0 0
    %289 = vmatprep.subr.bf16.mxu0 0
    %290 = vmatpush1.bf16.msra.mxu0 0
    %291 = vmatprep.subr.bf16.mxu0 0
    %292 = vmatpush1.bf16.msra.mxu0 0
    %293 = vmatprep.subr.bf16.mxu0 0
    %294 = vmatpush1.bf16.msra.mxu0 0
    %295 = vmatprep.mubr.bf16.mxu0 0
    %296 = vmatmul.mubr.bf16.gmra.mrb[0].mxu0 %v114
    %v297 = vpop.f32.mrb[0].mxu0
    %v298 = vadd.f32 0.0, %v297
    %v299 = vpop.f32.mrb[0].mxu0
    %v300 = vadd.f32 0.0, %v299
    %v301 = vpop.f32.mrb[0].mxu0
    %v302 = vadd.f32 0.0, %v301
    %v303 = vpop.f32.mrb[0].mxu0
    %v304 = vadd.f32 0.0, %v303
    %305 = vmatprep.mubr.bf16.mxu0 0
    %306 = vmatmul.mubr.bf16.gmra.mrb[0].mxu0 %v117
    %v307 = vpop.f32.mrb[0].mxu0
    %v308 = vadd.f32 0.0, %v307
    %v309 = vpop.f32.mrb[0].mxu0
    %v310 = vadd.f32 0.0, %v309
    %v311 = vpop.f32.mrb[0].mxu0
    %v312 = vadd.f32 0.0, %v311
    %v313 = vpop.f32.mrb[0].mxu0
    %v314 = vadd.f32 0.0, %v313
    %315 = vmatprep.mubr.bf16.mxu0 0
    %316 = vmatmul.mubr.bf16.gmra.mrb[0].mxu0 %v120
    %v317 = vpop.f32.mrb[0].mxu0
    %v318 = vadd.f32 0.0, %v317
    %v319 = vpop.f32.mrb[0].mxu0
    %v320 = vadd.f32 0.0, %v319
    %v321 = vpop.f32.mrb[0].mxu0
    %v322 = vadd.f32 0.0, %v321
    %v323 = vpop.f32.mrb[0].mxu0
    %v324 = vadd.f32 0.0, %v323
    %325 = vmatprep.mubr.bf16.mxu0 0
    %326 = vmatmul.mubr.bf16.gmra.mrb[0].mxu0 %v123
    %v327 = vpop.f32.mrb[0].mxu0
    %v328 = vadd.f32 0.0, %v327
    %v329 = vpop.f32.mrb[0].mxu0
    %v330 = vadd.f32 0.0, %v329
    %v331 = vpop.f32.mrb[0].mxu0
    %v332 = vadd.f32 0.0, %v331
    %v333 = vpop.f32.mrb[0].mxu0
    %v334 = vadd.f32 0.0, %v333
    %335 = vmatprep.mubr.bf16.mxu0 0
    %336 = vmatmul.mubr.bf16.gmra.mrb[0].mxu0 %v126
    %v337 = vpop.f32.mrb[0].mxu0
    %v338 = vadd.f32 0.0, %v337
    %v339 = vpop.f32.mrb[0].mxu0
    %v340 = vadd.f32 0.0, %v339
    %v341 = vpop.f32.mrb[0].mxu0
    %v342 = vadd.f32 0.0, %v341
    %v343 = vpop.f32.mrb[0].mxu0
    %v344 = vadd.f32 0.0, %v343
    %345 = vmatprep.mubr.bf16.mxu0 0
    %346 = vmatmul.mubr.bf16.gmra.mrb[0].mxu0 %v129
    %v347 = vpop.f32.mrb[0].mxu0
    %v348 = vadd.f32 0.0, %v347
    %v349 = vpop.f32.mrb[0].mxu0
    %v350 = vadd.f32 0.0, %v349
    %v351 = vpop.f32.mrb[0].mxu0
    %v352 = vadd.f32 0.0, %v351
    %v353 = vpop.f32.mrb[0].mxu0
    %v354 = vadd.f32 0.0, %v353
    %355 = vmatprep.mubr.bf16.mxu0 0
    %356 = vmatmul.mubr.bf16.gmra.mrb[0].mxu0 %v132
    %v357 = vpop.f32.mrb[0].mxu0
    %v358 = vadd.f32 0.0, %v357
    %v359 = vpop.f32.mrb[0].mxu0
    %v360 = vadd.f32 0.0, %v359
    %v361 = vpop.f32.mrb[0].mxu0
    %v362 = vadd.f32 0.0, %v361
    %v363 = vpop.f32.mrb[0].mxu0
    %v364 = vadd.f32 0.0, %v363
    %365 = vmatprep.mubr.bf16.mxu0 0
    %366 = vmatmul.mubr.bf16.gmra.mrb[0].mxu0 %v135
    %v367 = vpop.f32.mrb[0].mxu0
    %v368 = vadd.f32 0.0, %v367
    %v369 = vpop.f32.mrb[0].mxu0
    %v370 = vadd.f32 0.0, %v369
    %v371 = vpop.f32.mrb[0].mxu0
    %v372 = vadd.f32 0.0, %v371
    %v373 = vpop.f32.mrb[0].mxu0
    %v374 = vadd.f32 0.0, %v373
    %375 = vdwg.mxu0
    %v376 = vld [vmem:[%s5] ss:$8 sm:$0xf]
    %s377 = scalar_lea.vmem %s5, 1
    %v378 = vld [vmem:[%s377] ss:$8 sm:$0xf]
    %v379 = vadd.f32 %v185, %v189
    %v380 = vadd.f32 %v379, %v195
    %v381 = vadd.f32 %v380, %v199
    %v382 = vadd.f32 %v381, %v205
    %v383 = vadd.f32 %v382, %v209
    %v384 = vadd.f32 %v383, %v215
    %v385 = vadd.f32 %v384, %v219
    %v386 = vadd.f32 %v385, %v225
    %v387 = vadd.f32 %v386, %v229
    %v388 = vadd.f32 %v387, %v235
    %v389 = vadd.f32 %v388, %v239
    %v390 = vadd.f32 %v389, %v245
    %v391 = vadd.f32 %v390, %v249
    %v392 = vadd.f32 %v391, %v255
    %v393 = vadd.f32 %v392, %v259
    %v394 = vrot.slane %v393, 4
    %v395 = vadd.f32 %v393, %v394
    %v396 = vrot.slane %v395, 2
    %v397 = vadd.f32 %v395, %v396
    %v398 = vrot.slane %v397, 1
    %v399 = vadd.f32 %v397, %v398
    %v400 = vadd.f32 %v187, %v191
    %v401 = vadd.f32 %v400, %v197
    %v402 = vadd.f32 %v401, %v201
    %v403 = vadd.f32 %v402, %v207
    %v404 = vadd.f32 %v403, %v211
    %v405 = vadd.f32 %v404, %v217
    %v406 = vadd.f32 %v405, %v221
    %v407 = vadd.f32 %v406, %v227
    %v408 = vadd.f32 %v407, %v231
    %v409 = vadd.f32 %v408, %v237
    %v410 = vadd.f32 %v409, %v241
    %v411 = vadd.f32 %v410, %v247
    %v412 = vadd.f32 %v411, %v251
    %v413 = vadd.f32 %v412, %v257
    %v414 = vadd.f32 %v413, %v261
    %v415 = vrot.slane %v414, 4
    %v416 = vadd.f32 %v414, %v415
    %v417 = vrot.slane %v416, 2
    %v418 = vadd.f32 %v416, %v417
    %v419 = vrot.slane %v418, 1
    %v420 = vadd.f32 %v418, %v419
    %v421 = vadd.f32 %v298, %v302
    %v422 = vadd.f32 %v421, %v308
    %v423 = vadd.f32 %v422, %v312
    %v424 = vadd.f32 %v423, %v318
    %v425 = vadd.f32 %v424, %v322
    %v426 = vadd.f32 %v425, %v328
    %v427 = vadd.f32 %v426, %v332
    %v428 = vadd.f32 %v427, %v338
    %v429 = vadd.f32 %v428, %v342
    %v430 = vadd.f32 %v429, %v348
    %v431 = vadd.f32 %v430, %v352
    %v432 = vadd.f32 %v431, %v358
    %v433 = vadd.f32 %v432, %v362
    %v434 = vadd.f32 %v433, %v368
    %v435 = vadd.f32 %v434, %v372
    %v436 = vrot.slane %v435, 4
    %v437 = vadd.f32 %v435, %v436
    %v438 = vrot.slane %v437, 2
    %v439 = vadd.f32 %v437, %v438
    %v440 = vrot.slane %v439, 1
    %v441 = vadd.f32 %v439, %v440
    %v442 = vadd.f32 %v300, %v304
    %v443 = vadd.f32 %v442, %v310
    %v444 = vadd.f32 %v443, %v314
    %v445 = vadd.f32 %v444, %v320
    %v446 = vadd.f32 %v445, %v324
    %v447 = vadd.f32 %v446, %v330
    %v448 = vadd.f32 %v447, %v334
    %v449 = vadd.f32 %v448, %v340
    %v450 = vadd.f32 %v449, %v344
    %v451 = vadd.f32 %v450, %v350
    %v452 = vadd.f32 %v451, %v354
    %v453 = vadd.f32 %v452, %v360
    %v454 = vadd.f32 %v453, %v364
    %v455 = vadd.f32 %v454, %v370
    %v456 = vadd.f32 %v455, %v374
    %v457 = vrot.slane %v456, 4
    %v458 = vadd.f32 %v456, %v457
    %v459 = vrot.slane %v458, 2
    %v460 = vadd.f32 %v458, %v459
    %v461 = vrot.slane %v460, 1
    %v462 = vadd.f32 %v460, %v461
    %v463 = vmul.f32 %v185, %v185
    %v464 = vmul.f32 %v187, %v187
    %v465 = vmul.f32 %v298, %v298
    %v466 = vmul.f32 %v300, %v300
    %v467 = vmul.f32 %v189, %v189
    %v468 = vmul.f32 %v191, %v191
    %v469 = vmul.f32 %v302, %v302
    %v470 = vmul.f32 %v304, %v304
    %v471 = vmul.f32 %v195, %v195
    %v472 = vmul.f32 %v197, %v197
    %v473 = vmul.f32 %v308, %v308
    %v474 = vmul.f32 %v310, %v310
    %v475 = vmul.f32 %v199, %v199
    %v476 = vmul.f32 %v201, %v201
    %v477 = vmul.f32 %v312, %v312
    %v478 = vmul.f32 %v314, %v314
    %v479 = vmul.f32 %v205, %v205
    %v480 = vmul.f32 %v207, %v207
    %v481 = vmul.f32 %v318, %v318
    %v482 = vmul.f32 %v320, %v320
    %v483 = vmul.f32 %v209, %v209
    %v484 = vmul.f32 %v211, %v211
    %v485 = vmul.f32 %v322, %v322
    %v486 = vmul.f32 %v324, %v324
    %v487 = vmul.f32 %v215, %v215
    %v488 = vmul.f32 %v217, %v217
    %v489 = vmul.f32 %v328, %v328
    %v490 = vmul.f32 %v330, %v330
    %v491 = vmul.f32 %v219, %v219
    %v492 = vmul.f32 %v221, %v221
    %v493 = vmul.f32 %v332, %v332
    %v494 = vmul.f32 %v334, %v334
    %v495 = vmul.f32 %v225, %v225
    %v496 = vmul.f32 %v227, %v227
    %v497 = vmul.f32 %v338, %v338
    %v498 = vmul.f32 %v340, %v340
    %v499 = vmul.f32 %v229, %v229
    %v500 = vmul.f32 %v231, %v231
    %v501 = vmul.f32 %v342, %v342
    %v502 = vmul.f32 %v344, %v344
    %v503 = vmul.f32 %v235, %v235
    %v504 = vmul.f32 %v237, %v237
    %v505 = vmul.f32 %v348, %v348
    %v506 = vmul.f32 %v350, %v350
    %v507 = vmul.f32 %v239, %v239
    %v508 = vmul.f32 %v241, %v241
    %v509 = vmul.f32 %v352, %v352
    %v510 = vmul.f32 %v354, %v354
    %v511 = vmul.f32 %v245, %v245
    %v512 = vmul.f32 %v247, %v247
    %v513 = vmul.f32 %v358, %v358
    %v514 = vmul.f32 %v360, %v360
    %v515 = vmul.f32 %v249, %v249
    %v516 = vmul.f32 %v251, %v251
    %v517 = vmul.f32 %v362, %v362
    %v518 = vmul.f32 %v364, %v364
    %v519 = vmul.f32 %v255, %v255
    %v520 = vmul.f32 %v257, %v257
    %v521 = vmul.f32 %v368, %v368
    %v522 = vmul.f32 %v370, %v370
    %v523 = vmul.f32 %v259, %v259
    %v524 = vmul.f32 %v261, %v261
    %v525 = vmul.f32 %v372, %v372
    %v526 = vmul.f32 %v374, %v374
    %v527 = vadd.f32 %v463, %v467
    %v528 = vadd.f32 %v527, %v471
    %v529 = vadd.f32 %v528, %v475
    %v530 = vadd.f32 %v529, %v479
    %v531 = vadd.f32 %v530, %v483
    %v532 = vadd.f32 %v531, %v487
    %v533 = vadd.f32 %v532, %v491
    %v534 = vadd.f32 %v533, %v495
    %v535 = vadd.f32 %v534, %v499
    %v536 = vadd.f32 %v535, %v503
    %v537 = vadd.f32 %v536, %v507
    %v538 = vadd.f32 %v537, %v511
    %v539 = vadd.f32 %v538, %v515
    %v540 = vadd.f32 %v539, %v519
    %v541 = vadd.f32 %v540, %v523
    %v542 = vrot.slane %v541, 4
    %v543 = vadd.f32 %v541, %v542
    %v544 = vrot.slane %v543, 2
    %v545 = vadd.f32 %v543, %v544
    %v546 = vrot.slane %v545, 1
    %v547 = vadd.f32 %v545, %v546
    %v548 = vadd.f32 %v464, %v468
    %v549 = vadd.f32 %v548, %v472
    %v550 = vadd.f32 %v549, %v476
    %v551 = vadd.f32 %v550, %v480
    %v552 = vadd.f32 %v551, %v484
    %v553 = vadd.f32 %v552, %v488
    %v554 = vadd.f32 %v553, %v492
    %v555 = vadd.f32 %v554, %v496
    %v556 = vadd.f32 %v555, %v500
    %v557 = vadd.f32 %v556, %v504
    %v558 = vadd.f32 %v557, %v508
    %v559 = vadd.f32 %v558, %v512
    %v560 = vadd.f32 %v559, %v516
    %v561 = vadd.f32 %v560, %v520
    %v562 = vadd.f32 %v561, %v524
    %v563 = vrot.slane %v562, 4
    %v564 = vadd.f32 %v562, %v563
    %v565 = vrot.slane %v564, 2
    %v566 = vadd.f32 %v564, %v565
    %v567 = vrot.slane %v566, 1
    %v568 = vadd.f32 %v566, %v567
    %v569 = vadd.f32 %v465, %v469
    %v570 = vadd.f32 %v569, %v473
    %v571 = vadd.f32 %v570, %v477
    %v572 = vadd.f32 %v571, %v481
    %v573 = vadd.f32 %v572, %v485
    %v574 = vadd.f32 %v573, %v489
    %v575 = vadd.f32 %v574, %v493
    %v576 = vadd.f32 %v575, %v497
    %v577 = vadd.f32 %v576, %v501
    %v578 = vadd.f32 %v577, %v505
    %v579 = vadd.f32 %v578, %v509
    %v580 = vadd.f32 %v579, %v513
    %v581 = vadd.f32 %v580, %v517
    %v582 = vadd.f32 %v581, %v521
    %v583 = vadd.f32 %v582, %v525
    %v584 = vrot.slane %v583, 4
    %v585 = vadd.f32 %v583, %v584
    %v586 = vrot.slane %v585, 2
    %v587 = vadd.f32 %v585, %v586
    %v588 = vrot.slane %v587, 1
    %v589 = vadd.f32 %v587, %v588
    %v590 = vadd.f32 %v466, %v470
    %v591 = vadd.f32 %v590, %v474
    %v592 = vadd.f32 %v591, %v478
    %v593 = vadd.f32 %v592, %v482
    %v594 = vadd.f32 %v593, %v486
    %v595 = vadd.f32 %v594, %v490
    %v596 = vadd.f32 %v595, %v494
    %v597 = vadd.f32 %v596, %v498
    %v598 = vadd.f32 %v597, %v502
    %v599 = vadd.f32 %v598, %v506
    %v600 = vadd.f32 %v599, %v510
    %v601 = vadd.f32 %v600, %v514
    %v602 = vadd.f32 %v601, %v518
    %v603 = vadd.f32 %v602, %v522
    %v604 = vadd.f32 %v603, %v526
    %v605 = vrot.slane %v604, 4
    %v606 = vadd.f32 %v604, %v605
    %v607 = vrot.slane %v606, 2
    %v608 = vadd.f32 %v606, %v607
    %v609 = vrot.slane %v608, 1
    %v610 = vadd.f32 %v608, %v609
    %v611 = vmul.f32 %v399, 0.0078125
    %v612 = vmul.f32 %v420, 0.0078125
    %v613 = vmul.f32 %v441, 0.0078125
    %v614 = vmul.f32 %v462, 0.0078125
    %v615 = vmul.f32 %v547, 0.0078125
    %v616 = vmul.f32 %v568, 0.0078125
    %v617 = vmul.f32 %v589, 0.0078125
    %v618 = vmul.f32 %v610, 0.0078125
    %v619 = vmul.f32 %v611, %v611
    %v620 = vmul.f32 %v612, %v612
    %v621 = vmul.f32 %v613, %v613
    %v622 = vmul.f32 %v614, %v614
    %v623 = vsub.f32 %v615, %v619
    %v624 = vsub.f32 %v616, %v620
    %v625 = vsub.f32 %v617, %v621
    %v626 = vsub.f32 %v618, %v622
    %v627 = vmax.f32 %v623, 0.0
    %v628 = vmax.f32 %v624, 0.0
    %v629 = vmax.f32 %v625, 0.0
    %v630 = vmax.f32 %v626, 0.0
    %v631 = vadd.f32 %v627, 1e-05
    %v632 = vadd.f32 %v628, 1e-05
    %v633 = vadd.f32 %v629, 1e-05
    %v634 = vadd.f32 %v630, 1e-05
    %v635 = vrsqrt.pop %v631
    %v636 = vrsqrt.pop %v632
    %v637 = vrsqrt.pop %v633
    %v638 = vrsqrt.pop %v634
    %v643 = vcombine.low %v635, %v636
    %v644 = vcombine.low %v637, %v638
    %v646 = vunpack.c.l.s4 1966171168
    %v647 = vunpack.c.0.s8 %v646
    %v648 = vlaneseq
    %v649 = vshrl.u32 %v648, 7
    %v650 = vsub.s32 %v647, %v649
    %v651 = vrot.slane %v643, %v650
    %v653 = vunpack.c.l.s4 1966171168
    %v654 = vunpack.c.0.s8 %v653
    %v655 = vlaneseq
    %v656 = vshrl.u32 %v655, 7
    %v657 = vsub.s32 %v654, %v656
    %v658 = vrot.slane %v644, %v657
    %v659 = vcombine.low %v651, %v658
    %v661 = vunpack.c.l.s4 1966171168
    %v662 = vunpack.c.0.s8 %v661
    %v663 = vlaneseq
    %v664 = vshrl.u32 %v663, 7
    %v665 = vsub.s32 %v662, %v664
    %v666 = vrot.slane %v659, %v665
    %v668 = vmul.f32 %v376, %v666
    %v670 = vlaneseq
    %v671 = vshrl.u32 %v670, 7
    %v672 = vsub.s32 0, %v671
    %v673 = vrot.slane %v668, %v672
    %v674 = vlaneseq
    %v675 = vshrl.u32 %v674, 7
    %v676 = vsub.s32 1, %v675
    %v677 = vrot.slane %v668, %v676
    %v678 = vlaneseq
    %v679 = vshrl.u32 %v678, 7
    %v680 = vsub.s32 2, %v679
    %v681 = vrot.slane %v668, %v680
    %v682 = vlaneseq
    %v683 = vshrl.u32 %v682, 7
    %v684 = vsub.s32 3, %v683
    %v685 = vrot.slane %v668, %v684
    %v690 = vmul.f32 %v611, %v673
    %v691 = vmul.f32 %v612, %v677
    %v692 = vmul.f32 %v613, %v681
    %v693 = vmul.f32 %v614, %v685
    %v698 = vcombine.low %v690, %v691
    %v699 = vcombine.low %v692, %v693
    %v701 = vunpack.c.l.s4 1966171168
    %v702 = vunpack.c.0.s8 %v701
    %v703 = vlaneseq
    %v704 = vshrl.u32 %v703, 7
    %v705 = vsub.s32 %v702, %v704
    %v706 = vrot.slane %v698, %v705
    %v708 = vunpack.c.l.s4 1966171168
    %v709 = vunpack.c.0.s8 %v708
    %v710 = vlaneseq
    %v711 = vshrl.u32 %v710, 7
    %v712 = vsub.s32 %v709, %v711
    %v713 = vrot.slane %v699, %v712
    %v714 = vcombine.low %v706, %v713
    %v716 = vunpack.c.l.s4 1966171168
    %v717 = vunpack.c.0.s8 %v716
    %v718 = vlaneseq
    %v719 = vshrl.u32 %v718, 7
    %v720 = vsub.s32 %v717, %v719
    %v721 = vrot.slane %v714, %v720
    %v723 = vsub.f32 %v378, %v721
    %v724 = vmul.f32 %v185, %v673
    %v725 = vmul.f32 %v187, %v677
    %v726 = vmul.f32 %v298, %v681
    %v727 = vmul.f32 %v300, %v685
    %v728 = vmul.f32 %v189, %v673
    %v729 = vmul.f32 %v191, %v677
    %v730 = vmul.f32 %v302, %v681
    %v731 = vmul.f32 %v304, %v685
    %v732 = vmul.f32 %v195, %v673
    %v733 = vmul.f32 %v197, %v677
    %v734 = vmul.f32 %v308, %v681
    %v735 = vmul.f32 %v310, %v685
    %v736 = vmul.f32 %v199, %v673
    %v737 = vmul.f32 %v201, %v677
    %v738 = vmul.f32 %v312, %v681
    %v739 = vmul.f32 %v314, %v685
    %v740 = vmul.f32 %v205, %v673
    %v741 = vmul.f32 %v207, %v677
    %v742 = vmul.f32 %v318, %v681
    %v743 = vmul.f32 %v320, %v685
    %v744 = vmul.f32 %v209, %v673
    %v745 = vmul.f32 %v211, %v677
    %v746 = vmul.f32 %v322, %v681
    %v747 = vmul.f32 %v324, %v685
    %v748 = vmul.f32 %v215, %v673
    %v749 = vmul.f32 %v217, %v677
    %v750 = vmul.f32 %v328, %v681
    %v751 = vmul.f32 %v330, %v685
    %v752 = vmul.f32 %v219, %v673
    %v753 = vmul.f32 %v221, %v677
    %v754 = vmul.f32 %v332, %v681
    %v755 = vmul.f32 %v334, %v685
    %v756 = vmul.f32 %v225, %v673
    %v757 = vmul.f32 %v227, %v677
    %v758 = vmul.f32 %v338, %v681
    %v759 = vmul.f32 %v340, %v685
    %v760 = vmul.f32 %v229, %v673
    %v761 = vmul.f32 %v231, %v677
    %v762 = vmul.f32 %v342, %v681
    %v763 = vmul.f32 %v344, %v685
    %v764 = vmul.f32 %v235, %v673
    %v765 = vmul.f32 %v237, %v677
    %v766 = vmul.f32 %v348, %v681
    %v767 = vmul.f32 %v350, %v685
    %v768 = vmul.f32 %v239, %v673
    %v769 = vmul.f32 %v241, %v677
    %v770 = vmul.f32 %v352, %v681
    %v771 = vmul.f32 %v354, %v685
    %v772 = vmul.f32 %v245, %v673
    %v773 = vmul.f32 %v247, %v677
    %v774 = vmul.f32 %v358, %v681
    %v775 = vmul.f32 %v360, %v685
    %v776 = vmul.f32 %v249, %v673
    %v777 = vmul.f32 %v251, %v677
    %v778 = vmul.f32 %v362, %v681
    %v779 = vmul.f32 %v364, %v685
    %v780 = vmul.f32 %v255, %v673
    %v781 = vmul.f32 %v257, %v677
    %v782 = vmul.f32 %v368, %v681
    %v783 = vmul.f32 %v370, %v685
    %v784 = vmul.f32 %v259, %v673
    %v785 = vmul.f32 %v261, %v677
    %v786 = vmul.f32 %v372, %v681
    %v787 = vmul.f32 %v374, %v685
    %v789 = vlaneseq
    %v790 = vshrl.u32 %v789, 7
    %v791 = vsub.s32 0, %v790
    %v792 = vrot.slane %v723, %v791
    %v793 = vlaneseq
    %v794 = vshrl.u32 %v793, 7
    %v795 = vsub.s32 1, %v794
    %v796 = vrot.slane %v723, %v795
    %v797 = vlaneseq
    %v798 = vshrl.u32 %v797, 7
    %v799 = vsub.s32 2, %v798
    %v800 = vrot.slane %v723, %v799
    %v801 = vlaneseq
    %v802 = vshrl.u32 %v801, 7
    %v803 = vsub.s32 3, %v802
    %v804 = vrot.slane %v723, %v803
    %v809 = vadd.f32 %v724, %v792
    %v810 = vadd.f32 %v725, %v796
    %v811 = vadd.f32 %v726, %v800
    %v812 = vadd.f32 %v727, %v804
    %v813 = vadd.f32 %v728, %v792
    %v814 = vadd.f32 %v729, %v796
    %v815 = vadd.f32 %v730, %v800
    %v816 = vadd.f32 %v731, %v804
    %v817 = vadd.f32 %v732, %v792
    %v818 = vadd.f32 %v733, %v796
    %v819 = vadd.f32 %v734, %v800
    %v820 = vadd.f32 %v735, %v804
    %v821 = vadd.f32 %v736, %v792
    %v822 = vadd.f32 %v737, %v796
    %v823 = vadd.f32 %v738, %v800
    %v824 = vadd.f32 %v739, %v804
    %v825 = vadd.f32 %v740, %v792
    %v826 = vadd.f32 %v741, %v796
    %v827 = vadd.f32 %v742, %v800
    %v828 = vadd.f32 %v743, %v804
    %v829 = vadd.f32 %v744, %v792
    %v830 = vadd.f32 %v745, %v796
    %v831 = vadd.f32 %v746, %v800
    %v832 = vadd.f32 %v747, %v804
    %v833 = vadd.f32 %v748, %v792
    %v834 = vadd.f32 %v749, %v796
    %v835 = vadd.f32 %v750, %v800
    %v836 = vadd.f32 %v751, %v804
    %v837 = vadd.f32 %v752, %v792
    %v838 = vadd.f32 %v753, %v796
    %v839 = vadd.f32 %v754, %v800
    %v840 = vadd.f32 %v755, %v804
    %v841 = vadd.f32 %v756, %v792
    %v842 = vadd.f32 %v757, %v796
    %v843 = vadd.f32 %v758, %v800
    %v844 = vadd.f32 %v759, %v804
    %v845 = vadd.f32 %v760, %v792
    %v846 = vadd.f32 %v761, %v796
    %v847 = vadd.f32 %v762, %v800
    %v848 = vadd.f32 %v763, %v804
    %v849 = vadd.f32 %v764, %v792
    %v850 = vadd.f32 %v765, %v796
    %v851 = vadd.f32 %v766, %v800
    %v852 = vadd.f32 %v767, %v804
    %v853 = vadd.f32 %v768, %v792
    %v854 = vadd.f32 %v769, %v796
    %v855 = vadd.f32 %v770, %v800
    %v856 = vadd.f32 %v771, %v804
    %v857 = vadd.f32 %v772, %v792
    %v858 = vadd.f32 %v773, %v796
    %v859 = vadd.f32 %v774, %v800
    %v860 = vadd.f32 %v775, %v804
    %v861 = vadd.f32 %v776, %v792
    %v862 = vadd.f32 %v777, %v796
    %v863 = vadd.f32 %v778, %v800
    %v864 = vadd.f32 %v779, %v804
    %v865 = vadd.f32 %v780, %v792
    %v866 = vadd.f32 %v781, %v796
    %v867 = vadd.f32 %v782, %v800
    %v868 = vadd.f32 %v783, %v804
    %v869 = vadd.f32 %v784, %v792
    %v870 = vadd.f32 %v785, %v796
    %v871 = vadd.f32 %v786, %v800
    %v872 = vadd.f32 %v787, %v804
    %v873 = vmax.f32 %v809, 0.0
    %v874 = vmax.f32 %v810, 0.0
    %v875 = vmax.f32 %v811, 0.0
    %v876 = vmax.f32 %v812, 0.0
    %v877 = vmax.f32 %v813, 0.0
    %v878 = vmax.f32 %v814, 0.0
    %v879 = vmax.f32 %v815, 0.0
    %v880 = vmax.f32 %v816, 0.0
    %v881 = vmax.f32 %v817, 0.0
    %v882 = vmax.f32 %v818, 0.0
    %v883 = vmax.f32 %v819, 0.0
    %v884 = vmax.f32 %v820, 0.0
    %v885 = vmax.f32 %v821, 0.0
    %v886 = vmax.f32 %v822, 0.0
    %v887 = vmax.f32 %v823, 0.0
    %v888 = vmax.f32 %v824, 0.0
    %v889 = vmax.f32 %v825, 0.0
    %v890 = vmax.f32 %v826, 0.0
    %v891 = vmax.f32 %v827, 0.0
    %v892 = vmax.f32 %v828, 0.0
    %v893 = vmax.f32 %v829, 0.0
    %v894 = vmax.f32 %v830, 0.0
    %v895 = vmax.f32 %v831, 0.0
    %v896 = vmax.f32 %v832, 0.0
    %v897 = vmax.f32 %v833, 0.0
    %v898 = vmax.f32 %v834, 0.0
    %v899 = vmax.f32 %v835, 0.0
    %v900 = vmax.f32 %v836, 0.0
    %v901 = vmax.f32 %v837, 0.0
    %v902 = vmax.f32 %v838, 0.0
    %v903 = vmax.f32 %v839, 0.0
    %v904 = vmax.f32 %v840, 0.0
    %v905 = vmax.f32 %v841, 0.0
    %v906 = vmax.f32 %v842, 0.0
    %v907 = vmax.f32 %v843, 0.0
    %v908 = vmax.f32 %v844, 0.0
    %v909 = vmax.f32 %v845, 0.0
    %v910 = vmax.f32 %v846, 0.0
    %v911 = vmax.f32 %v847, 0.0
    %v912 = vmax.f32 %v848, 0.0
    %v913 = vmax.f32 %v849, 0.0
    %v914 = vmax.f32 %v850, 0.0
    %v915 = vmax.f32 %v851, 0.0
    %v916 = vmax.f32 %v852, 0.0
    %v917 = vmax.f32 %v853, 0.0
    %v918 = vmax.f32 %v854, 0.0
    %v919 = vmax.f32 %v855, 0.0
    %v920 = vmax.f32 %v856, 0.0
    %v921 = vmax.f32 %v857, 0.0
    %v922 = vmax.f32 %v858, 0.0
    %v923 = vmax.f32 %v859, 0.0
    %v924 = vmax.f32 %v860, 0.0
    %v925 = vmax.f32 %v861, 0.0
    %v926 = vmax.f32 %v862, 0.0
    %v927 = vmax.f32 %v863, 0.0
    %v928 = vmax.f32 %v864, 0.0
    %v929 = vmax.f32 %v865, 0.0
    %v930 = vmax.f32 %v866, 0.0
    %v931 = vmax.f32 %v867, 0.0
    %v932 = vmax.f32 %v868, 0.0
    %v933 = vmax.f32 %v869, 0.0
    %v934 = vmax.f32 %v870, 0.0
    %v935 = vmax.f32 %v871, 0.0
    %v936 = vmax.f32 %v872, 0.0
    %v937 = vpack.c.bf16 %v877, %v873
    %v938 = vpack.c.bf16 %v878, %v874
    %v939 = vpack.c.bf16 %v879, %v875
    %v940 = vpack.c.bf16 %v880, %v876
    %v941 = vpack.c.bf16 %v885, %v881
    %v942 = vpack.c.bf16 %v886, %v882
    %v943 = vpack.c.bf16 %v887, %v883
    %v944 = vpack.c.bf16 %v888, %v884
    %v945 = vpack.c.bf16 %v893, %v889
    %v946 = vpack.c.bf16 %v894, %v890
    %v947 = vpack.c.bf16 %v895, %v891
    %v948 = vpack.c.bf16 %v896, %v892
    %v949 = vpack.c.bf16 %v901, %v897
    %v950 = vpack.c.bf16 %v902, %v898
    %v951 = vpack.c.bf16 %v903, %v899
    %v952 = vpack.c.bf16 %v904, %v900
    %v953 = vpack.c.bf16 %v909, %v905
    %v954 = vpack.c.bf16 %v910, %v906
    %v955 = vpack.c.bf16 %v911, %v907
    %v956 = vpack.c.bf16 %v912, %v908
    %v957 = vpack.c.bf16 %v917, %v913
    %v958 = vpack.c.bf16 %v918, %v914
    %v959 = vpack.c.bf16 %v919, %v915
    %v960 = vpack.c.bf16 %v920, %v916
    %v961 = vpack.c.bf16 %v925, %v921
    %v962 = vpack.c.bf16 %v926, %v922
    %v963 = vpack.c.bf16 %v927, %v923
    %v964 = vpack.c.bf16 %v928, %v924
    %v965 = vpack.c.bf16 %v933, %v929
    %v966 = vpack.c.bf16 %v934, %v930
    %v967 = vpack.c.bf16 %v935, %v931
    %v968 = vpack.c.bf16 %v936, %v932
    %v969 = vld [vmem:[#allocation2] sm:$0xff]
    %v970 = vld [vmem:[#allocation2 + $0x8] sm:$0xff]
    %v971 = vld [vmem:[#allocation2 + $0x10] sm:$0xff]
    %v972 = vld [vmem:[#allocation2 + $0x18] sm:$0xff]
    %v973 = vld [vmem:[#allocation2 + $0x20] sm:$0xff]
    %v974 = vld [vmem:[#allocation2 + $0x28] sm:$0xff]
    %v975 = vld [vmem:[#allocation2 + $0x30] sm:$0xff]
    %v976 = vld [vmem:[#allocation2 + $0x38] sm:$0xff]
    %v977 = vld [vmem:[#allocation2 + $0x40] sm:$0xff]
    %v978 = vld [vmem:[#allocation2 + $0x48] sm:$0xff]
    %v979 = vld [vmem:[#allocation2 + $0x50] sm:$0xff]
    %v980 = vld [vmem:[#allocation2 + $0x58] sm:$0xff]
    %v981 = vld [vmem:[#allocation2 + $0x60] sm:$0xff]
    %v982 = vld [vmem:[#allocation2 + $0x68] sm:$0xff]
    %v983 = vld [vmem:[#allocation2 + $0x70] sm:$0xff]
    %v984 = vld [vmem:[#allocation2 + $0x78] sm:$0xff]
    %v985 = vld [vmem:[#allocation2 + $0x80] sm:$0xff]
    %v986 = vld [vmem:[#allocation2 + $0x88] sm:$0xff]
    %v987 = vld [vmem:[#allocation2 + $0x90] sm:$0xff]
    %v988 = vld [vmem:[#allocation2 + $0x98] sm:$0xff]
    %v989 = vld [vmem:[#allocation2 + $0xa0] sm:$0xff]
    %v990 = vld [vmem:[#allocation2 + $0xa8] sm:$0xff]
    %v991 = vld [vmem:[#allocation2 + $0xb0] sm:$0xff]
    %v992 = vld [vmem:[#allocation2 + $0xb8] sm:$0xff]
    %v993 = vld [vmem:[#allocation2 + $0xc0] sm:$0xff]
    %v994 = vld [vmem:[#allocation2 + $0xc8] sm:$0xff]
    %v995 = vld [vmem:[#allocation2 + $0xd0] sm:$0xff]
    %v996 = vld [vmem:[#allocation2 + $0xd8] sm:$0xff]
    %v997 = vld [vmem:[#allocation2 + $0xe0] sm:$0xff]
    %v998 = vld [vmem:[#allocation2 + $0xe8] sm:$0xff]
    %v999 = vld [vmem:[#allocation2 + $0xf0] sm:$0xff]
    %v1000 = vld [vmem:[#allocation2 + $0xf8] sm:$0xff]
    %v1001 = vld [vmem:[#allocation2 + $0x100] sm:$0xff]
    %v1002 = vld [vmem:[#allocation2 + $0x108] sm:$0xff]
    %v1003 = vld [vmem:[#allocation2 + $0x110] sm:$0xff]
    %v1004 = vld [vmem:[#allocation2 + $0x118] sm:$0xff]
    %v1005 = vld [vmem:[#allocation2 + $0x120] sm:$0xff]
    %v1006 = vld [vmem:[#allocation2 + $0x128] sm:$0xff]
    %v1007 = vld [vmem:[#allocation2 + $0x130] sm:$0xff]
    %v1008 = vld [vmem:[#allocation2 + $0x138] sm:$0xff]
    %v1009 = vld [vmem:[#allocation2 + $0x140] sm:$0xff]
    %v1010 = vld [vmem:[#allocation2 + $0x148] sm:$0xff]
    %v1011 = vld [vmem:[#allocation2 + $0x150] sm:$0xff]
    %v1012 = vld [vmem:[#allocation2 + $0x158] sm:$0xff]
    %v1013 = vld [vmem:[#allocation2 + $0x160] sm:$0xff]
    %v1014 = vld [vmem:[#allocation2 + $0x168] sm:$0xff]
    %v1015 = vld [vmem:[#allocation2 + $0x170] sm:$0xff]
    %v1016 = vld [vmem:[#allocation2 + $0x178] sm:$0xff]
    %v1017 = vld [vmem:[#allocation2 + $0x180] sm:$0xff]
    %v1018 = vld [vmem:[#allocation2 + $0x188] sm:$0xff]
    %v1019 = vld [vmem:[#allocation2 + $0x190] sm:$0xff]
    %v1020 = vld [vmem:[#allocation2 + $0x198] sm:$0xff]
    %v1021 = vld [vmem:[#allocation2 + $0x1a0] sm:$0xff]
    %v1022 = vld [vmem:[#allocation2 + $0x1a8] sm:$0xff]
    %v1023 = vld [vmem:[#allocation2 + $0x1b0] sm:$0xff]
    %v1024 = vld [vmem:[#allocation2 + $0x1b8] sm:$0xff]
    %v1025 = vld [vmem:[#allocation2 + $0x1c0] sm:$0xff]
    %v1026 = vld [vmem:[#allocation2 + $0x1c8] sm:$0xff]
    %v1027 = vld [vmem:[#allocation2 + $0x1d0] sm:$0xff]
    %v1028 = vld [vmem:[#allocation2 + $0x1d8] sm:$0xff]
    %v1029 = vld [vmem:[#allocation2 + $0x1e0] sm:$0xff]
    %v1030 = vld [vmem:[#allocation2 + $0x1e8] sm:$0xff]
    %v1031 = vld [vmem:[#allocation2 + $0x1f0] sm:$0xff]
    %v1032 = vld [vmem:[#allocation2 + $0x1f8] sm:$0xff]
    %v1033 = vld [vmem:[#allocation2 + $0x200] sm:$0xff]
    %v1034 = vld [vmem:[#allocation2 + $0x208] sm:$0xff]
    %v1035 = vld [vmem:[#allocation2 + $0x210] sm:$0xff]
    %v1036 = vld [vmem:[#allocation2 + $0x218] sm:$0xff]
    %v1037 = vld [vmem:[#allocation2 + $0x220] sm:$0xff]
    %v1038 = vld [vmem:[#allocation2 + $0x228] sm:$0xff]
    %v1039 = vld [vmem:[#allocation2 + $0x230] sm:$0xff]
    %v1040 = vld [vmem:[#allocation2 + $0x238] sm:$0xff]
    %v1041 = vld [vmem:[#allocation2 + $0x240] sm:$0xff]
    %v1042 = vld [vmem:[#allocation2 + $0x248] sm:$0xff]
    %v1043 = vld [vmem:[#allocation2 + $0x250] sm:$0xff]
    %v1044 = vld [vmem:[#allocation2 + $0x258] sm:$0xff]
    %v1045 = vld [vmem:[#allocation2 + $0x260] sm:$0xff]
    %v1046 = vld [vmem:[#allocation2 + $0x268] sm:$0xff]
    %v1047 = vld [vmem:[#allocation2 + $0x270] sm:$0xff]
    %v1048 = vld [vmem:[#allocation2 + $0x278] sm:$0xff]
    %v1049 = vld [vmem:[#allocation2 + $0x280] sm:$0xff]
    %v1050 = vld [vmem:[#allocation2 + $0x288] sm:$0xff]
    %v1051 = vld [vmem:[#allocation2 + $0x290] sm:$0xff]
    %v1052 = vld [vmem:[#allocation2 + $0x298] sm:$0xff]
    %v1053 = vld [vmem:[#allocation2 + $0x2a0] sm:$0xff]
    %v1054 = vld [vmem:[#allocation2 + $0x2a8] sm:$0xff]
    %v1055 = vld [vmem:[#allocation2 + $0x2b0] sm:$0xff]
    %v1056 = vld [vmem:[#allocation2 + $0x2b8] sm:$0xff]
    %v1057 = vld [vmem:[#allocation2 + $0x2c0] sm:$0xff]
    %v1058 = vld [vmem:[#allocation2 + $0x2c8] sm:$0xff]
    %v1059 = vld [vmem:[#allocation2 + $0x2d0] sm:$0xff]
    %v1060 = vld [vmem:[#allocation2 + $0x2d8] sm:$0xff]
    %v1061 = vld [vmem:[#allocation2 + $0x2e0] sm:$0xff]
    %v1062 = vld [vmem:[#allocation2 + $0x2e8] sm:$0xff]
    %v1063 = vld [vmem:[#allocation2 + $0x2f0] sm:$0xff]
    %v1064 = vld [vmem:[#allocation2 + $0x2f8] sm:$0xff]
    %v1065 = vld [vmem:[#allocation2 + $0x300] sm:$0xff]
    %v1066 = vld [vmem:[#allocation2 + $0x308] sm:$0xff]
    %v1067 = vld [vmem:[#allocation2 + $0x310] sm:$0xff]
    %v1068 = vld [vmem:[#allocation2 + $0x318] sm:$0xff]
    %v1069 = vld [vmem:[#allocation2 + $0x320] sm:$0xff]
    %v1070 = vld [vmem:[#allocation2 + $0x328] sm:$0xff]
    %v1071 = vld [vmem:[#allocation2 + $0x330] sm:$0xff]
    %v1072 = vld [vmem:[#allocation2 + $0x338] sm:$0xff]
    %v1073 = vld [vmem:[#allocation2 + $0x340] sm:$0xff]
    %v1074 = vld [vmem:[#allocation2 + $0x348] sm:$0xff]
    %v1075 = vld [vmem:[#allocation2 + $0x350] sm:$0xff]
    %v1076 = vld [vmem:[#allocation2 + $0x358] sm:$0xff]
    %v1077 = vld [vmem:[#allocation2 + $0x360] sm:$0xff]
    %v1078 = vld [vmem:[#allocation2 + $0x368] sm:$0xff]
    %v1079 = vld [vmem:[#allocation2 + $0x370] sm:$0xff]
    %v1080 = vld [vmem:[#allocation2 + $0x378] sm:$0xff]
    %v1081 = vld [vmem:[#allocation2 + $0x380] sm:$0xff]
    %v1082 = vld [vmem:[#allocation2 + $0x388] sm:$0xff]
    %v1083 = vld [vmem:[#allocation2 + $0x390] sm:$0xff]
    %v1084 = vld [vmem:[#allocation2 + $0x398] sm:$0xff]
    %v1085 = vld [vmem:[#allocation2 + $0x3a0] sm:$0xff]
    %v1086 = vld [vmem:[#allocation2 + $0x3a8] sm:$0xff]
    %v1087 = vld [vmem:[#allocation2 + $0x3b0] sm:$0xff]
    %v1088 = vld [vmem:[#allocation2 + $0x3b8] sm:$0xff]
    %v1089 = vld [vmem:[#allocation2 + $0x3c0] sm:$0xff]
    %v1090 = vld [vmem:[#allocation2 + $0x3c8] sm:$0xff]
    %v1091 = vld [vmem:[#allocation2 + $0x3d0] sm:$0xff]
    %v1092 = vld [vmem:[#allocation2 + $0x3d8] sm:$0xff]
    %v1093 = vld [vmem:[#allocation2 + $0x3e0] sm:$0xff]
    %v1094 = vld [vmem:[#allocation2 + $0x3e8] sm:$0xff]
    %v1095 = vld [vmem:[#allocation2 + $0x3f0] sm:$0xff]
    %v1096 = vld [vmem:[#allocation2 + $0x3f8] sm:$0xff]
    %v1225 = vunpack.c.l.b16 %v969
    %v1226 = vunpack.c.h.b16 %v969
    %v1227 = vunpack.c.l.b16 %v970
    %v1228 = vunpack.c.h.b16 %v970
    %v1229 = vunpack.c.l.b16 %v971
    %v1230 = vunpack.c.h.b16 %v971
    %v1231 = vunpack.c.l.b16 %v972
    %v1232 = vunpack.c.h.b16 %v972
    %v1233 = vunpack.c.l.b16 %v973
    %v1234 = vunpack.c.h.b16 %v973
    %v1235 = vunpack.c.l.b16 %v974
    %v1236 = vunpack.c.h.b16 %v974
    %v1237 = vunpack.c.l.b16 %v975
    %v1238 = vunpack.c.h.b16 %v975
    %v1239 = vunpack.c.l.b16 %v976
    %v1240 = vunpack.c.h.b16 %v976
    %v1241 = vunpack.c.l.b16 %v977
    %v1242 = vunpack.c.h.b16 %v977
    %v1243 = vunpack.c.l.b16 %v978
    %v1244 = vunpack.c.h.b16 %v978
    %v1245 = vunpack.c.l.b16 %v979
    %v1246 = vunpack.c.h.b16 %v979
    %v1247 = vunpack.c.l.b16 %v980
    %v1248 = vunpack.c.h.b16 %v980
    %v1249 = vunpack.c.l.b16 %v981
    %v1250 = vunpack.c.h.b16 %v981
    %v1251 = vunpack.c.l.b16 %v982
    %v1252 = vunpack.c.h.b16 %v982
    %v1253 = vunpack.c.l.b16 %v983
    %v1254 = vunpack.c.h.b16 %v983
    %v1255 = vunpack.c.l.b16 %v984
    %v1256 = vunpack.c.h.b16 %v984
    %v1257 = vunpack.c.l.b16 %v985
    %v1258 = vunpack.c.h.b16 %v985
    %v1259 = vunpack.c.l.b16 %v986
    %v1260 = vunpack.c.h.b16 %v986
    %v1261 = vunpack.c.l.b16 %v987
    %v1262 = vunpack.c.h.b16 %v987
    %v1263 = vunpack.c.l.b16 %v988
    %v1264 = vunpack.c.h.b16 %v988
    %v1265 = vunpack.c.l.b16 %v989
    %v1266 = vunpack.c.h.b16 %v989
    %v1267 = vunpack.c.l.b16 %v990
    %v1268 = vunpack.c.h.b16 %v990
    %v1269 = vunpack.c.l.b16 %v991
    %v1270 = vunpack.c.h.b16 %v991
    %v1271 = vunpack.c.l.b16 %v992
    %v1272 = vunpack.c.h.b16 %v992
    %v1273 = vunpack.c.l.b16 %v993
    %v1274 = vunpack.c.h.b16 %v993
    %v1275 = vunpack.c.l.b16 %v994
    %v1276 = vunpack.c.h.b16 %v994
    %v1277 = vunpack.c.l.b16 %v995
    %v1278 = vunpack.c.h.b16 %v995
    %v1279 = vunpack.c.l.b16 %v996
    %v1280 = vunpack.c.h.b16 %v996
    %v1281 = vunpack.c.l.b16 %v997
    %v1282 = vunpack.c.h.b16 %v997
    %v1283 = vunpack.c.l.b16 %v998
    %v1284 = vunpack.c.h.b16 %v998
    %v1285 = vunpack.c.l.b16 %v999
    %v1286 = vunpack.c.h.b16 %v999
    %v1287 = vunpack.c.l.b16 %v1000
    %v1288 = vunpack.c.h.b16 %v1000
    %v1289 = vunpack.c.l.b16 %v1001
    %v1290 = vunpack.c.h.b16 %v1001
    %v1291 = vunpack.c.l.b16 %v1002
    %v1292 = vunpack.c.h.b16 %v1002
    %v1293 = vunpack.c.l.b16 %v1003
    %v1294 = vunpack.c.h.b16 %v1003
    %v1295 = vunpack.c.l.b16 %v1004
    %v1296 = vunpack.c.h.b16 %v1004
    %v1297 = vunpack.c.l.b16 %v1005
    %v1298 = vunpack.c.h.b16 %v1005
    %v1299 = vunpack.c.l.b16 %v1006
    %v1300 = vunpack.c.h.b16 %v1006
    %v1301 = vunpack.c.l.b16 %v1007
    %v1302 = vunpack.c.h.b16 %v1007
    %v1303 = vunpack.c.l.b16 %v1008
    %v1304 = vunpack.c.h.b16 %v1008
    %v1305 = vunpack.c.l.b16 %v1009
    %v1306 = vunpack.c.h.b16 %v1009
    %v1307 = vunpack.c.l.b16 %v1010
    %v1308 = vunpack.c.h.b16 %v1010
    %v1309 = vunpack.c.l.b16 %v1011
    %v1310 = vunpack.c.h.b16 %v1011
    %v1311 = vunpack.c.l.b16 %v1012
    %v1312 = vunpack.c.h.b16 %v1012
    %v1313 = vunpack.c.l.b16 %v1013
    %v1314 = vunpack.c.h.b16 %v1013
    %v1315 = vunpack.c.l.b16 %v1014
    %v1316 = vunpack.c.h.b16 %v1014
    %v1317 = vunpack.c.l.b16 %v1015
    %v1318 = vunpack.c.h.b16 %v1015
    %v1319 = vunpack.c.l.b16 %v1016
    %v1320 = vunpack.c.h.b16 %v1016
    %v1321 = vunpack.c.l.b16 %v1017
    %v1322 = vunpack.c.h.b16 %v1017
    %v1323 = vunpack.c.l.b16 %v1018
    %v1324 = vunpack.c.h.b16 %v1018
    %v1325 = vunpack.c.l.b16 %v1019
    %v1326 = vunpack.c.h.b16 %v1019
    %v1327 = vunpack.c.l.b16 %v1020
    %v1328 = vunpack.c.h.b16 %v1020
    %v1329 = vunpack.c.l.b16 %v1021
    %v1330 = vunpack.c.h.b16 %v1021
    %v1331 = vunpack.c.l.b16 %v1022
    %v1332 = vunpack.c.h.b16 %v1022
    %v1333 = vunpack.c.l.b16 %v1023
    %v1334 = vunpack.c.h.b16 %v1023
    %v1335 = vunpack.c.l.b16 %v1024
    %v1336 = vunpack.c.h.b16 %v1024
    %v1337 = vunpack.c.l.b16 %v1025
    %v1338 = vunpack.c.h.b16 %v1025
    %v1339 = vunpack.c.l.b16 %v1026
    %v1340 = vunpack.c.h.b16 %v1026
    %v1341 = vunpack.c.l.b16 %v1027
    %v1342 = vunpack.c.h.b16 %v1027
    %v1343 = vunpack.c.l.b16 %v1028
    %v1344 = vunpack.c.h.b16 %v1028
    %v1345 = vunpack.c.l.b16 %v1029
    %v1346 = vunpack.c.h.b16 %v1029
    %v1347 = vunpack.c.l.b16 %v1030
    %v1348 = vunpack.c.h.b16 %v1030
    %v1349 = vunpack.c.l.b16 %v1031
    %v1350 = vunpack.c.h.b16 %v1031
    %v1351 = vunpack.c.l.b16 %v1032
    %v1352 = vunpack.c.h.b16 %v1032
    %v1353 = vunpack.c.l.b16 %v1033
    %v1354 = vunpack.c.h.b16 %v1033
    %v1355 = vunpack.c.l.b16 %v1034
    %v1356 = vunpack.c.h.b16 %v1034
    %v1357 = vunpack.c.l.b16 %v1035
    %v1358 = vunpack.c.h.b16 %v1035
    %v1359 = vunpack.c.l.b16 %v1036
    %v1360 = vunpack.c.h.b16 %v1036
    %v1361 = vunpack.c.l.b16 %v1037
    %v1362 = vunpack.c.h.b16 %v1037
    %v1363 = vunpack.c.l.b16 %v1038
    %v1364 = vunpack.c.h.b16 %v1038
    %v1365 = vunpack.c.l.b16 %v1039
    %v1366 = vunpack.c.h.b16 %v1039
    %v1367 = vunpack.c.l.b16 %v1040
    %v1368 = vunpack.c.h.b16 %v1040
    %v1369 = vunpack.c.l.b16 %v1041
    %v1370 = vunpack.c.h.b16 %v1041
    %v1371 = vunpack.c.l.b16 %v1042
    %v1372 = vunpack.c.h.b16 %v1042
    %v1373 = vunpack.c.l.b16 %v1043
    %v1374 = vunpack.c.h.b16 %v1043
    %v1375 = vunpack.c.l.b16 %v1044
    %v1376 = vunpack.c.h.b16 %v1044
    %v1377 = vunpack.c.l.b16 %v1045
    %v1378 = vunpack.c.h.b16 %v1045
    %v1379 = vunpack.c.l.b16 %v1046
    %v1380 = vunpack.c.h.b16 %v1046
    %v1381 = vunpack.c.l.b16 %v1047
    %v1382 = vunpack.c.h.b16 %v1047
    %v1383 = vunpack.c.l.b16 %v1048
    %v1384 = vunpack.c.h.b16 %v1048
    %v1385 = vunpack.c.l.b16 %v1049
    %v1386 = vunpack.c.h.b16 %v1049
    %v1387 = vunpack.c.l.b16 %v1050
    %v1388 = vunpack.c.h.b16 %v1050
    %v1389 = vunpack.c.l.b16 %v1051
    %v1390 = vunpack.c.h.b16 %v1051
    %v1391 = vunpack.c.l.b16 %v1052
    %v1392 = vunpack.c.h.b16 %v1052
    %v1393 = vunpack.c.l.b16 %v1053
    %v1394 = vunpack.c.h.b16 %v1053
    %v1395 = vunpack.c.l.b16 %v1054
    %v1396 = vunpack.c.h.b16 %v1054
    %v1397 = vunpack.c.l.b16 %v1055
    %v1398 = vunpack.c.h.b16 %v1055
    %v1399 = vunpack.c.l.b16 %v1056
    %v1400 = vunpack.c.h.b16 %v1056
    %v1401 = vunpack.c.l.b16 %v1057
    %v1402 = vunpack.c.h.b16 %v1057
    %v1403 = vunpack.c.l.b16 %v1058
    %v1404 = vunpack.c.h.b16 %v1058
    %v1405 = vunpack.c.l.b16 %v1059
    %v1406 = vunpack.c.h.b16 %v1059
    %v1407 = vunpack.c.l.b16 %v1060
    %v1408 = vunpack.c.h.b16 %v1060
    %v1409 = vunpack.c.l.b16 %v1061
    %v1410 = vunpack.c.h.b16 %v1061
    %v1411 = vunpack.c.l.b16 %v1062
    %v1412 = vunpack.c.h.b16 %v1062
    %v1413 = vunpack.c.l.b16 %v1063
    %v1414 = vunpack.c.h.b16 %v1063
    %v1415 = vunpack.c.l.b16 %v1064
    %v1416 = vunpack.c.h.b16 %v1064
    %v1417 = vunpack.c.l.b16 %v1065
    %v1418 = vunpack.c.h.b16 %v1065
    %v1419 = vunpack.c.l.b16 %v1066
    %v1420 = vunpack.c.h.b16 %v1066
    %v1421 = vunpack.c.l.b16 %v1067
    %v1422 = vunpack.c.h.b16 %v1067
    %v1423 = vunpack.c.l.b16 %v1068
    %v1424 = vunpack.c.h.b16 %v1068
    %v1425 = vunpack.c.l.b16 %v1069
    %v1426 = vunpack.c.h.b16 %v1069
    %v1427 = vunpack.c.l.b16 %v1070
    %v1428 = vunpack.c.h.b16 %v1070
    %v1429 = vunpack.c.l.b16 %v1071
    %v1430 = vunpack.c.h.b16 %v1071
    %v1431 = vunpack.c.l.b16 %v1072
    %v1432 = vunpack.c.h.b16 %v1072
    %v1433 = vunpack.c.l.b16 %v1073
    %v1434 = vunpack.c.h.b16 %v1073
    %v1435 = vunpack.c.l.b16 %v1074
    %v1436 = vunpack.c.h.b16 %v1074
    %v1437 = vunpack.c.l.b16 %v1075
    %v1438 = vunpack.c.h.b16 %v1075
    %v1439 = vunpack.c.l.b16 %v1076
    %v1440 = vunpack.c.h.b16 %v1076
    %v1441 = vunpack.c.l.b16 %v1077
    %v1442 = vunpack.c.h.b16 %v1077
    %v1443 = vunpack.c.l.b16 %v1078
    %v1444 = vunpack.c.h.b16 %v1078
    %v1445 = vunpack.c.l.b16 %v1079
    %v1446 = vunpack.c.h.b16 %v1079
    %v1447 = vunpack.c.l.b16 %v1080
    %v1448 = vunpack.c.h.b16 %v1080
    %v1449 = vunpack.c.l.b16 %v1081
    %v1450 = vunpack.c.h.b16 %v1081
    %v1451 = vunpack.c.l.b16 %v1082
    %v1452 = vunpack.c.h.b16 %v1082
    %v1453 = vunpack.c.l.b16 %v1083
    %v1454 = vunpack.c.h.b16 %v1083
    %v1455 = vunpack.c.l.b16 %v1084
    %v1456 = vunpack.c.h.b16 %v1084
    %v1457 = vunpack.c.l.b16 %v1085
    %v1458 = vunpack.c.h.b16 %v1085
    %v1459 = vunpack.c.l.b16 %v1086
    %v1460 = vunpack.c.h.b16 %v1086
    %v1461 = vunpack.c.l.b16 %v1087
    %v1462 = vunpack.c.h.b16 %v1087
    %v1463 = vunpack.c.l.b16 %v1088
    %v1464 = vunpack.c.h.b16 %v1088
    %v1465 = vunpack.c.l.b16 %v1089
    %v1466 = vunpack.c.h.b16 %v1089
    %v1467 = vunpack.c.l.b16 %v1090
    %v1468 = vunpack.c.h.b16 %v1090
    %v1469 = vunpack.c.l.b16 %v1091
    %v1470 = vunpack.c.h.b16 %v1091
    %v1471 = vunpack.c.l.b16 %v1092
    %v1472 = vunpack.c.h.b16 %v1092
    %v1473 = vunpack.c.l.b16 %v1093
    %v1474 = vunpack.c.h.b16 %v1093
    %v1475 = vunpack.c.l.b16 %v1094
    %v1476 = vunpack.c.h.b16 %v1094
    %v1477 = vunpack.c.l.b16 %v1095
    %v1478 = vunpack.c.h.b16 %v1095
    %v1479 = vunpack.c.l.b16 %v1096
    %v1480 = vunpack.c.h.b16 %v1096
    %v1481 = vpack.c.b16 %v1229, %v1225
    %v1482 = vpack.c.b16 %v1230, %v1226
    %v1483 = vpack.c.b16 %v1231, %v1227
    %v1484 = vpack.c.b16 %v1232, %v1228
    %v1485 = vpack.c.b16 %v1237, %v1233
    %v1486 = vpack.c.b16 %v1238, %v1234
    %v1487 = vpack.c.b16 %v1239, %v1235
    %v1488 = vpack.c.b16 %v1240, %v1236
    %v1489 = vpack.c.b16 %v1245, %v1241
    %v1490 = vpack.c.b16 %v1246, %v1242
    %v1491 = vpack.c.b16 %v1247, %v1243
    %v1492 = vpack.c.b16 %v1248, %v1244
    %v1493 = vpack.c.b16 %v1253, %v1249
    %v1494 = vpack.c.b16 %v1254, %v1250
    %v1495 = vpack.c.b16 %v1255, %v1251
    %v1496 = vpack.c.b16 %v1256, %v1252
    %v1497 = vpack.c.b16 %v1261, %v1257
    %v1498 = vpack.c.b16 %v1262, %v1258
    %v1499 = vpack.c.b16 %v1263, %v1259
    %v1500 = vpack.c.b16 %v1264, %v1260
    %v1501 = vpack.c.b16 %v1269, %v1265
    %v1502 = vpack.c.b16 %v1270, %v1266
    %v1503 = vpack.c.b16 %v1271, %v1267
    %v1504 = vpack.c.b16 %v1272, %v1268
    %v1505 = vpack.c.b16 %v1277, %v1273
    %v1506 = vpack.c.b16 %v1278, %v1274
    %v1507 = vpack.c.b16 %v1279, %v1275
    %v1508 = vpack.c.b16 %v1280, %v1276
    %v1509 = vpack.c.b16 %v1285, %v1281
    %v1510 = vpack.c.b16 %v1286, %v1282
    %v1511 = vpack.c.b16 %v1287, %v1283
    %v1512 = vpack.c.b16 %v1288, %v1284
    %v1513 = vpack.c.b16 %v1293, %v1289
    %v1514 = vpack.c.b16 %v1294, %v1290
    %v1515 = vpack.c.b16 %v1295, %v1291
    %v1516 = vpack.c.b16 %v1296, %v1292
    %v1517 = vpack.c.b16 %v1301, %v1297
    %v1518 = vpack.c.b16 %v1302, %v1298
    %v1519 = vpack.c.b16 %v1303, %v1299
    %v1520 = vpack.c.b16 %v1304, %v1300
    %v1521 = vpack.c.b16 %v1309, %v1305
    %v1522 = vpack.c.b16 %v1310, %v1306
    %v1523 = vpack.c.b16 %v1311, %v1307
    %v1524 = vpack.c.b16 %v1312, %v1308
    %v1525 = vpack.c.b16 %v1317, %v1313
    %v1526 = vpack.c.b16 %v1318, %v1314
    %v1527 = vpack.c.b16 %v1319, %v1315
    %v1528 = vpack.c.b16 %v1320, %v1316
    %v1529 = vpack.c.b16 %v1325, %v1321
    %v1530 = vpack.c.b16 %v1326, %v1322
    %v1531 = vpack.c.b16 %v1327, %v1323
    %v1532 = vpack.c.b16 %v1328, %v1324
    %v1533 = vpack.c.b16 %v1333, %v1329
    %v1534 = vpack.c.b16 %v1334, %v1330
    %v1535 = vpack.c.b16 %v1335, %v1331
    %v1536 = vpack.c.b16 %v1336, %v1332
    %v1537 = vpack.c.b16 %v1341, %v1337
    %v1538 = vpack.c.b16 %v1342, %v1338
    %v1539 = vpack.c.b16 %v1343, %v1339
    %v1540 = vpack.c.b16 %v1344, %v1340
    %v1541 = vpack.c.b16 %v1349, %v1345
    %v1542 = vpack.c.b16 %v1350, %v1346
    %v1543 = vpack.c.b16 %v1351, %v1347
    %v1544 = vpack.c.b16 %v1352, %v1348
    %v1545 = vpack.c.b16 %v1357, %v1353
    %v1546 = vpack.c.b16 %v1358, %v1354
    %v1547 = vpack.c.b16 %v1359, %v1355
    %v1548 = vpack.c.b16 %v1360, %v1356
    %v1549 = vpack.c.b16 %v1365, %v1361
    %v1550 = vpack.c.b16 %v1366, %v1362
    %v1551 = vpack.c.b16 %v1367, %v1363
    %v1552 = vpack.c.b16 %v1368, %v1364
    %v1553 = vpack.c.b16 %v1373, %v1369
    %v1554 = vpack.c.b16 %v1374, %v1370
    %v1555 = vpack.c.b16 %v1375, %v1371
    %v1556 = vpack.c.b16 %v1376, %v1372
    %v1557 = vpack.c.b16 %v1381, %v1377
    %v1558 = vpack.c.b16 %v1382, %v1378
    %v1559 = vpack.c.b16 %v1383, %v1379
    %v1560 = vpack.c.b16 %v1384, %v1380
    %v1561 = vpack.c.b16 %v1389, %v1385
    %v1562 = vpack.c.b16 %v1390, %v1386
    %v1563 = vpack.c.b16 %v1391, %v1387
    %v1564 = vpack.c.b16 %v1392, %v1388
    %v1565 = vpack.c.b16 %v1397, %v1393
    %v1566 = vpack.c.b16 %v1398, %v1394
    %v1567 = vpack.c.b16 %v1399, %v1395
    %v1568 = vpack.c.b16 %v1400, %v1396
    %v1569 = vpack.c.b16 %v1405, %v1401
    %v1570 = vpack.c.b16 %v1406, %v1402
    %v1571 = vpack.c.b16 %v1407, %v1403
    %v1572 = vpack.c.b16 %v1408, %v1404
    %v1573 = vpack.c.b16 %v1413, %v1409
    %v1574 = vpack.c.b16 %v1414, %v1410
    %v1575 = vpack.c.b16 %v1415, %v1411
    %v1576 = vpack.c.b16 %v1416, %v1412
    %v1577 = vpack.c.b16 %v1421, %v1417
    %v1578 = vpack.c.b16 %v1422, %v1418
    %v1579 = vpack.c.b16 %v1423, %v1419
    %v1580 = vpack.c.b16 %v1424, %v1420
    %v1581 = vpack.c.b16 %v1429, %v1425
    %v1582 = vpack.c.b16 %v1430, %v1426
    %v1583 = vpack.c.b16 %v1431, %v1427
    %v1584 = vpack.c.b16 %v1432, %v1428
    %v1585 = vpack.c.b16 %v1437, %v1433
    %v1586 = vpack.c.b16 %v1438, %v1434
    %v1587 = vpack.c.b16 %v1439, %v1435
    %v1588 = vpack.c.b16 %v1440, %v1436
    %v1589 = vpack.c.b16 %v1445, %v1441
    %v1590 = vpack.c.b16 %v1446, %v1442
    %v1591 = vpack.c.b16 %v1447, %v1443
    %v1592 = vpack.c.b16 %v1448, %v1444
    %v1593 = vpack.c.b16 %v1453, %v1449
    %v1594 = vpack.c.b16 %v1454, %v1450
    %v1595 = vpack.c.b16 %v1455, %v1451
    %v1596 = vpack.c.b16 %v1456, %v1452
    %v1597 = vpack.c.b16 %v1461, %v1457
    %v1598 = vpack.c.b16 %v1462, %v1458
    %v1599 = vpack.c.b16 %v1463, %v1459
    %v1600 = vpack.c.b16 %v1464, %v1460
    %v1601 = vpack.c.b16 %v1469, %v1465
    %v1602 = vpack.c.b16 %v1470, %v1466
    %v1603 = vpack.c.b16 %v1471, %v1467
    %v1604 = vpack.c.b16 %v1472, %v1468
    %v1605 = vpack.c.b16 %v1477, %v1473
    %v1606 = vpack.c.b16 %v1478, %v1474
    %v1607 = vpack.c.b16 %v1479, %v1475
    %v1608 = vpack.c.b16 %v1480, %v1476
    %1737 = vmatprep.subr.bf16.mxu0 %v1482
    %1738 = vmatpush1.bf16.msra.mxu0 %v1481
    %1739 = vmatprep.subr.bf16.mxu0 %v1486
    %1740 = vmatpush1.bf16.msra.mxu0 %v1485
    %1741 = vmatprep.subr.bf16.mxu0 %v1490
    %1742 = vmatpush1.bf16.msra.mxu0 %v1489
    %1743 = vmatprep.subr.bf16.mxu0 %v1494
    %1744 = vmatpush1.bf16.msra.mxu0 %v1493
    %1745 = vmatprep.subr.bf16.mxu0 %v1498
    %1746 = vmatpush1.bf16.msra.mxu0 %v1497
    %1747 = vmatprep.subr.bf16.mxu0 %v1502
    %1748 = vmatpush1.bf16.msra.mxu0 %v1501
    %1749 = vmatprep.subr.bf16.mxu0 %v1506
    %1750 = vmatpush1.bf16.msra.mxu0 %v1505
    %1751 = vmatprep.subr.bf16.mxu0 %v1510
    %1752 = vmatpush1.bf16.msra.mxu0 %v1509
    %1753 = vmatprep.subr.bf16.mxu0 %v1514
    %1754 = vmatpush1.bf16.msra.mxu0 %v1513
    %1755 = vmatprep.subr.bf16.mxu0 %v1518
    %1756 = vmatpush1.bf16.msra.mxu0 %v1517
    %1757 = vmatprep.subr.bf16.mxu0 %v1522
    %1758 = vmatpush1.bf16.msra.mxu0 %v1521
    %1759 = vmatprep.subr.bf16.mxu0 %v1526
    %1760 = vmatpush1.bf16.msra.mxu0 %v1525
    %1761 = vmatprep.subr.bf16.mxu0 %v1530
    %1762 = vmatpush1.bf16.msra.mxu0 %v1529
    %1763 = vmatprep.subr.bf16.mxu0 %v1534
    %1764 = vmatpush1.bf16.msra.mxu0 %v1533
    %1765 = vmatprep.subr.bf16.mxu0 %v1538
    %1766 = vmatpush1.bf16.msra.mxu0 %v1537
    %1767 = vmatprep.subr.bf16.mxu0 %v1542
    %1768 = vmatpush1.bf16.msra.mxu0 %v1541
    %1769 = vmatprep.mubr.bf16.mxu0 %v938
    %1770 = vmatmul.mubr.bf16.gmra.mrb[0].mxu0 %v937
    %v1771 = vpop.f32.mrb[0].mxu0
    %v1772 = vadd.f32 0.0, %v1771
    %v1773 = vpop.f32.mrb[0].mxu0
    %v1774 = vadd.f32 0.0, %v1773
    %v1775 = vpop.f32.mrb[0].mxu0
    %v1776 = vadd.f32 0.0, %v1775
    %v1777 = vpop.f32.mrb[0].mxu0
    %v1778 = vadd.f32 0.0, %v1777
    %1779 = vmatprep.mubr.bf16.mxu0 %v942
    %1780 = vmatmul.mubr.bf16.gmra.mrb[0].mxu0 %v941
    %v1781 = vpop.f32.mrb[0].mxu0
    %v1782 = vadd.f32 0.0, %v1781
    %v1783 = vpop.f32.mrb[0].mxu0
    %v1784 = vadd.f32 0.0, %v1783
    %v1785 = vpop.f32.mrb[0].mxu0
    %v1786 = vadd.f32 0.0, %v1785
    %v1787 = vpop.f32.mrb[0].mxu0
    %v1788 = vadd.f32 0.0, %v1787
    %1789 = vmatprep.mubr.bf16.mxu0 %v946
    %1790 = vmatmul.mubr.bf16.gmra.mrb[0].mxu0 %v945
    %v1791 = vpop.f32.mrb[0].mxu0
    %v1792 = vadd.f32 0.0, %v1791
    %v1793 = vpop.f32.mrb[0].mxu0
    %v1794 = vadd.f32 0.0, %v1793
    %v1795 = vpop.f32.mrb[0].mxu0
    %v1796 = vadd.f32 0.0, %v1795
    %v1797 = vpop.f32.mrb[0].mxu0
    %v1798 = vadd.f32 0.0, %v1797
    %1799 = vmatprep.mubr.bf16.mxu0 %v950
    %1800 = vmatmul.mubr.bf16.gmra.mrb[0].mxu0 %v949
    %v1801 = vpop.f32.mrb[0].mxu0
    %v1802 = vadd.f32 0.0, %v1801
    %v1803 = vpop.f32.mrb[0].mxu0
    %v1804 = vadd.f32 0.0, %v1803
    %v1805 = vpop.f32.mrb[0].mxu0
    %v1806 = vadd.f32 0.0, %v1805
    %v1807 = vpop.f32.mrb[0].mxu0
    %v1808 = vadd.f32 0.0, %v1807
    %1809 = vmatprep.mubr.bf16.mxu0 %v954
    %1810 = vmatmul.mubr.bf16.gmra.mrb[0].mxu0 %v953
    %v1811 = vpop.f32.mrb[0].mxu0
    %v1812 = vadd.f32 0.0, %v1811
    %v1813 = vpop.f32.mrb[0].mxu0
    %v1814 = vadd.f32 0.0, %v1813
    %v1815 = vpop.f32.mrb[0].mxu0
    %v1816 = vadd.f32 0.0, %v1815
    %v1817 = vpop.f32.mrb[0].mxu0
    %v1818 = vadd.f32 0.0, %v1817
    %1819 = vmatprep.mubr.bf16.mxu0 %v958
    %1820 = vmatmul.mubr.bf16.gmra.mrb[0].mxu0 %v957
    %v1821 = vpop.f32.mrb[0].mxu0
    %v1822 = vadd.f32 0.0, %v1821
    %v1823 = vpop.f32.mrb[0].mxu0
    %v1824 = vadd.f32 0.0, %v1823
    %v1825 = vpop.f32.mrb[0].mxu0
    %v1826 = vadd.f32 0.0, %v1825
    %v1827 = vpop.f32.mrb[0].mxu0
    %v1828 = vadd.f32 0.0, %v1827
    %1829 = vmatprep.mubr.bf16.mxu0 %v962
    %1830 = vmatmul.mubr.bf16.gmra.mrb[0].mxu0 %v961
    %v1831 = vpop.f32.mrb[0].mxu0
    %v1832 = vadd.f32 0.0, %v1831
    %v1833 = vpop.f32.mrb[0].mxu0
    %v1834 = vadd.f32 0.0, %v1833
    %v1835 = vpop.f32.mrb[0].mxu0
    %v1836 = vadd.f32 0.0, %v1835
    %v1837 = vpop.f32.mrb[0].mxu0
    %v1838 = vadd.f32 0.0, %v1837
    %1839 = vmatprep.mubr.bf16.mxu0 %v966
    %1840 = vmatmul.mubr.bf16.gmra.mrb[0].mxu0 %v965
    %v1841 = vpop.f32.mrb[0].mxu0
    %v1842 = vadd.f32 0.0, %v1841
    %v1843 = vpop.f32.mrb[0].mxu0
    %v1844 = vadd.f32 0.0, %v1843
    %v1845 = vpop.f32.mrb[0].mxu0
    %v1846 = vadd.f32 0.0, %v1845
    %v1847 = vpop.f32.mrb[0].mxu0
    %v1848 = vadd.f32 0.0, %v1847
    %1849 = vdwg.mxu0
    %1850 = vmatprep.subr.bf16.mxu0 %v1546
    %1851 = vmatpush1.bf16.msra.mxu0 %v1545
    %1852 = vmatprep.subr.bf16.mxu0 %v1550
    %1853 = vmatpush1.bf16.msra.mxu0 %v1549
    %1854 = vmatprep.subr.bf16.mxu0 %v1554
    %1855 = vmatpush1.bf16.msra.mxu0 %v1553
    %1856 = vmatprep.subr.bf16.mxu0 %v1558
    %1857 = vmatpush1.bf16.msra.mxu0 %v1557
    %1858 = vmatprep.subr.bf16.mxu0 %v1562
    %1859 = vmatpush1.bf16.msra.mxu0 %v1561
    %1860 = vmatprep.subr.bf16.mxu0 %v1566
    %1861 = vmatpush1.bf16.msra.mxu0 %v1565
    %1862 = vmatprep.subr.bf16.mxu0 %v1570
    %1863 = vmatpush1.bf16.msra.mxu0 %v1569
    %1864 = vmatprep.subr.bf16.mxu0 %v1574
    %1865 = vmatpush1.bf16.msra.mxu0 %v1573
    %1866 = vmatprep.subr.bf16.mxu0 %v1578
    %1867 = vmatpush1.bf16.msra.mxu0 %v1577
    %1868 = vmatprep.subr.bf16.mxu0 %v1582
    %1869 = vmatpush1.bf16.msra.mxu0 %v1581
    %1870 = vmatprep.subr.bf16.mxu0 %v1586
    %1871 = vmatpush1.bf16.msra.mxu0 %v1585
    %1872 = vmatprep.subr.bf16.mxu0 %v1590
    %1873 = vmatpush1.bf16.msra.mxu0 %v1589
    %1874 = vmatprep.subr.bf16.mxu0 %v1594
    %1875 = vmatpush1.bf16.msra.mxu0 %v1593
    %1876 = vmatprep.subr.bf16.mxu0 %v1598
    %1877 = vmatpush1.bf16.msra.mxu0 %v1597
    %1878 = vmatprep.subr.bf16.mxu0 %v1602
    %1879 = vmatpush1.bf16.msra.mxu0 %v1601
    %1880 = vmatprep.subr.bf16.mxu0 %v1606
    %1881 = vmatpush1.bf16.msra.mxu0 %v1605
    %1882 = vmatprep.mubr.bf16.mxu0 %v940
    %1883 = vmatmul.mubr.bf16.gmra.mrb[0].mxu0 %v939
    %v1884 = vpop.f32.mrb[0].mxu0
    %v1885 = vadd.f32 %v1772, %v1884
    %v1886 = vpop.f32.mrb[0].mxu0
    %v1887 = vadd.f32 %v1774, %v1886
    %v1888 = vpop.f32.mrb[0].mxu0
    %v1889 = vadd.f32 %v1776, %v1888
    %v1890 = vpop.f32.mrb[0].mxu0
    %v1891 = vadd.f32 %v1778, %v1890
    %1892 = vmatprep.mubr.bf16.mxu0 %v944
    %1893 = vmatmul.mubr.bf16.gmra.mrb[0].mxu0 %v943
    %v1894 = vpop.f32.mrb[0].mxu0
    %v1895 = vadd.f32 %v1782, %v1894
    %v1896 = vpop.f32.mrb[0].mxu0
    %v1897 = vadd.f32 %v1784, %v1896
    %v1898 = vpop.f32.mrb[0].mxu0
    %v1899 = vadd.f32 %v1786, %v1898
    %v1900 = vpop.f32.mrb[0].mxu0
    %v1901 = vadd.f32 %v1788, %v1900
    %1902 = vmatprep.mubr.bf16.mxu0 %v948
    %1903 = vmatmul.mubr.bf16.gmra.mrb[0].mxu0 %v947
    %v1904 = vpop.f32.mrb[0].mxu0
    %v1905 = vadd.f32 %v1792, %v1904
    %v1906 = vpop.f32.mrb[0].mxu0
    %v1907 = vadd.f32 %v1794, %v1906
    %v1908 = vpop.f32.mrb[0].mxu0
    %v1909 = vadd.f32 %v1796, %v1908
    %v1910 = vpop.f32.mrb[0].mxu0
    %v1911 = vadd.f32 %v1798, %v1910
    %1912 = vmatprep.mubr.bf16.mxu0 %v952
    %1913 = vmatmul.mubr.bf16.gmra.mrb[0].mxu0 %v951
    %v1914 = vpop.f32.mrb[0].mxu0
    %v1915 = vadd.f32 %v1802, %v1914
    %v1916 = vpop.f32.mrb[0].mxu0
    %v1917 = vadd.f32 %v1804, %v1916
    %v1918 = vpop.f32.mrb[0].mxu0
    %v1919 = vadd.f32 %v1806, %v1918
    %v1920 = vpop.f32.mrb[0].mxu0
    %v1921 = vadd.f32 %v1808, %v1920
    %1922 = vmatprep.mubr.bf16.mxu0 %v956
    %1923 = vmatmul.mubr.bf16.gmra.mrb[0].mxu0 %v955
    %v1924 = vpop.f32.mrb[0].mxu0
    %v1925 = vadd.f32 %v1812, %v1924
    %v1926 = vpop.f32.mrb[0].mxu0
    %v1927 = vadd.f32 %v1814, %v1926
    %v1928 = vpop.f32.mrb[0].mxu0
    %v1929 = vadd.f32 %v1816, %v1928
    %v1930 = vpop.f32.mrb[0].mxu0
    %v1931 = vadd.f32 %v1818, %v1930
    %1932 = vmatprep.mubr.bf16.mxu0 %v960
    %1933 = vmatmul.mubr.bf16.gmra.mrb[0].mxu0 %v959
    %v1934 = vpop.f32.mrb[0].mxu0
    %v1935 = vadd.f32 %v1822, %v1934
    %v1936 = vpop.f32.mrb[0].mxu0
    %v1937 = vadd.f32 %v1824, %v1936
    %v1938 = vpop.f32.mrb[0].mxu0
    %v1939 = vadd.f32 %v1826, %v1938
    %v1940 = vpop.f32.mrb[0].mxu0
    %v1941 = vadd.f32 %v1828, %v1940
    %1942 = vmatprep.mubr.bf16.mxu0 %v964
    %1943 = vmatmul.mubr.bf16.gmra.mrb[0].mxu0 %v963
    %v1944 = vpop.f32.mrb[0].mxu0
    %v1945 = vadd.f32 %v1832, %v1944
    %v1946 = vpop.f32.mrb[0].mxu0
    %v1947 = vadd.f32 %v1834, %v1946
    %v1948 = vpop.f32.mrb[0].mxu0
    %v1949 = vadd.f32 %v1836, %v1948
    %v1950 = vpop.f32.mrb[0].mxu0
    %v1951 = vadd.f32 %v1838, %v1950
    %1952 = vmatprep.mubr.bf16.mxu0 %v968
    %1953 = vmatmul.mubr.bf16.gmra.mrb[0].mxu0 %v967
    %v1954 = vpop.f32.mrb[0].mxu0
    %v1955 = vadd.f32 %v1842, %v1954
    %v1956 = vpop.f32.mrb[0].mxu0
    %v1957 = vadd.f32 %v1844, %v1956
    %v1958 = vpop.f32.mrb[0].mxu0
    %v1959 = vadd.f32 %v1846, %v1958
    %v1960 = vpop.f32.mrb[0].mxu0
    %v1961 = vadd.f32 %v1848, %v1960
    %1962 = vdwg.mxu0
    %1963 = vmatprep.subr.bf16.mxu0 %v1484
    %1964 = vmatpush1.bf16.msra.mxu0 %v1483
    %1965 = vmatprep.subr.bf16.mxu0 %v1488
    %1966 = vmatpush1.bf16.msra.mxu0 %v1487
    %1967 = vmatprep.subr.bf16.mxu0 %v1492
    %1968 = vmatpush1.bf16.msra.mxu0 %v1491
    %1969 = vmatprep.subr.bf16.mxu0 %v1496
    %1970 = vmatpush1.bf16.msra.mxu0 %v1495
    %1971 = vmatprep.subr.bf16.mxu0 %v1500
    %1972 = vmatpush1.bf16.msra.mxu0 %v1499
    %1973 = vmatprep.subr.bf16.mxu0 %v1504
    %1974 = vmatpush1.bf16.msra.mxu0 %v1503
    %1975 = vmatprep.subr.bf16.mxu0 %v1508
    %1976 = vmatpush1.bf16.msra.mxu0 %v1507
    %1977 = vmatprep.subr.bf16.mxu0 %v1512
    %1978 = vmatpush1.bf16.msra.mxu0 %v1511
    %1979 = vmatprep.subr.bf16.mxu0 %v1516
    %1980 = vmatpush1.bf16.msra.mxu0 %v1515
    %1981 = vmatprep.subr.bf16.mxu0 %v1520
    %1982 = vmatpush1.bf16.msra.mxu0 %v1519
    %1983 = vmatprep.subr.bf16.mxu0 %v1524
    %1984 = vmatpush1.bf16.msra.mxu0 %v1523
    %1985 = vmatprep.subr.bf16.mxu0 %v1528
    %1986 = vmatpush1.bf16.msra.mxu0 %v1527
    %1987 = vmatprep.subr.bf16.mxu0 %v1532
    %1988 = vmatpush1.bf16.msra.mxu0 %v1531
    %1989 = vmatprep.subr.bf16.mxu0 %v1536
    %1990 = vmatpush1.bf16.msra.mxu0 %v1535
    %1991 = vmatprep.subr.bf16.mxu0 %v1540
    %1992 = vmatpush1.bf16.msra.mxu0 %v1539
    %1993 = vmatprep.subr.bf16.mxu0 %v1544
    %1994 = vmatpush1.bf16.msra.mxu0 %v1543
    %1995 = vmatprep.mubr.bf16.mxu0 %v938
    %1996 = vmatmul.mubr.bf16.gmra.mrb[0].mxu0 %v937
    %v1997 = vpop.f32.mrb[0].mxu0
    %v1998 = vadd.f32 0.0, %v1997
    %v1999 = vpop.f32.mrb[0].mxu0
    %v2000 = vadd.f32 0.0, %v1999
    %v2001 = vpop.f32.mrb[0].mxu0
    %v2002 = vadd.f32 0.0, %v2001
    %v2003 = vpop.f32.mrb[0].mxu0
    %v2004 = vadd.f32 0.0, %v2003
    %2005 = vmatprep.mubr.bf16.mxu0 %v942
    %2006 = vmatmul.mubr.bf16.gmra.mrb[0].mxu0 %v941
    %v2007 = vpop.f32.mrb[0].mxu0
    %v2008 = vadd.f32 0.0, %v2007
    %v2009 = vpop.f32.mrb[0].mxu0
    %v2010 = vadd.f32 0.0, %v2009
    %v2011 = vpop.f32.mrb[0].mxu0
    %v2012 = vadd.f32 0.0, %v2011
    %v2013 = vpop.f32.mrb[0].mxu0
    %v2014 = vadd.f32 0.0, %v2013
    %2015 = vmatprep.mubr.bf16.mxu0 %v946
    %2016 = vmatmul.mubr.bf16.gmra.mrb[0].mxu0 %v945
    %v2017 = vpop.f32.mrb[0].mxu0
    %v2018 = vadd.f32 0.0, %v2017
    %v2019 = vpop.f32.mrb[0].mxu0
    %v2020 = vadd.f32 0.0, %v2019
    %v2021 = vpop.f32.mrb[0].mxu0
    %v2022 = vadd.f32 0.0, %v2021
    %v2023 = vpop.f32.mrb[0].mxu0
    %v2024 = vadd.f32 0.0, %v2023
    %2025 = vmatprep.mubr.bf16.mxu0 %v950
    %2026 = vmatmul.mubr.bf16.gmra.mrb[0].mxu0 %v949
    %v2027 = vpop.f32.mrb[0].mxu0
    %v2028 = vadd.f32 0.0, %v2027
    %v2029 = vpop.f32.mrb[0].mxu0
    %v2030 = vadd.f32 0.0, %v2029
    %v2031 = vpop.f32.mrb[0].mxu0
    %v2032 = vadd.f32 0.0, %v2031
    %v2033 = vpop.f32.mrb[0].mxu0
    %v2034 = vadd.f32 0.0, %v2033
    %2035 = vmatprep.mubr.bf16.mxu0 %v954
    %2036 = vmatmul.mubr.bf16.gmra.mrb[0].mxu0 %v953
    %v2037 = vpop.f32.mrb[0].mxu0
    %v2038 = vadd.f32 0.0, %v2037
    %v2039 = vpop.f32.mrb[0].mxu0
    %v2040 = vadd.f32 0.0, %v2039
    %v2041 = vpop.f32.mrb[0].mxu0
    %v2042 = vadd.f32 0.0, %v2041
    %v2043 = vpop.f32.mrb[0].mxu0
    %v2044 = vadd.f32 0.0, %v2043
    %2045 = vmatprep.mubr.bf16.mxu0 %v958
    %2046 = vmatmul.mubr.bf16.gmra.mrb[0].mxu0 %v957
    %v2047 = vpop.f32.mrb[0].mxu0
    %v2048 = vadd.f32 0.0, %v2047
    %v2049 = vpop.f32.mrb[0].mxu0
    %v2050 = vadd.f32 0.0, %v2049
    %v2051 = vpop.f32.mrb[0].mxu0
    %v2052 = vadd.f32 0.0, %v2051
    %v2053 = vpop.f32.mrb[0].mxu0
    %v2054 = vadd.f32 0.0, %v2053
    %2055 = vmatprep.mubr.bf16.mxu0 %v962
    %2056 = vmatmul.mubr.bf16.gmra.mrb[0].mxu0 %v961
    %v2057 = vpop.f32.mrb[0].mxu0
    %v2058 = vadd.f32 0.0, %v2057
    %v2059 = vpop.f32.mrb[0].mxu0
    %v2060 = vadd.f32 0.0, %v2059
    %v2061 = vpop.f32.mrb[0].mxu0
    %v2062 = vadd.f32 0.0, %v2061
    %v2063 = vpop.f32.mrb[0].mxu0
    %v2064 = vadd.f32 0.0, %v2063
    %2065 = vmatprep.mubr.bf16.mxu0 %v966
    %2066 = vmatmul.mubr.bf16.gmra.mrb[0].mxu0 %v965
    %v2067 = vpop.f32.mrb[0].mxu0
    %v2068 = vadd.f32 0.0, %v2067
    %v2069 = vpop.f32.mrb[0].mxu0
    %v2070 = vadd.f32 0.0, %v2069
    %v2071 = vpop.f32.mrb[0].mxu0
    %v2072 = vadd.f32 0.0, %v2071
    %v2073 = vpop.f32.mrb[0].mxu0
    %v2074 = vadd.f32 0.0, %v2073
    %2075 = vdwg.mxu0
    %2076 = vmatprep.subr.bf16.mxu0 %v1548
    %2077 = vmatpush1.bf16.msra.mxu0 %v1547
    %2078 = vmatprep.subr.bf16.mxu0 %v1552
    %2079 = vmatpush1.bf16.msra.mxu0 %v1551
    %2080 = vmatprep.subr.bf16.mxu0 %v1556
    %2081 = vmatpush1.bf16.msra.mxu0 %v1555
    %2082 = vmatprep.subr.bf16.mxu0 %v1560
    %2083 = vmatpush1.bf16.msra.mxu0 %v1559
    %2084 = vmatprep.subr.bf16.mxu0 %v1564
    %2085 = vmatpush1.bf16.msra.mxu0 %v1563
    %2086 = vmatprep.subr.bf16.mxu0 %v1568
    %2087 = vmatpush1.bf16.msra.mxu0 %v1567
    %2088 = vmatprep.subr.bf16.mxu0 %v1572
    %2089 = vmatpush1.bf16.msra.mxu0 %v1571
    %2090 = vmatprep.subr.bf16.mxu0 %v1576
    %2091 = vmatpush1.bf16.msra.mxu0 %v1575
    %2092 = vmatprep.subr.bf16.mxu0 %v1580
    %2093 = vmatpush1.bf16.msra.mxu0 %v1579
    %2094 = vmatprep.subr.bf16.mxu0 %v1584
    %2095 = vmatpush1.bf16.msra.mxu0 %v1583
    %2096 = vmatprep.subr.bf16.mxu0 %v1588
    %2097 = vmatpush1.bf16.msra.mxu0 %v1587
    %2098 = vmatprep.subr.bf16.mxu0 %v1592
    %2099 = vmatpush1.bf16.msra.mxu0 %v1591
    %2100 = vmatprep.subr.bf16.mxu0 %v1596
    %2101 = vmatpush1.bf16.msra.mxu0 %v1595
    %2102 = vmatprep.subr.bf16.mxu0 %v1600
    %2103 = vmatpush1.bf16.msra.mxu0 %v1599
    %2104 = vmatprep.subr.bf16.mxu0 %v1604
    %2105 = vmatpush1.bf16.msra.mxu0 %v1603
    %2106 = vmatprep.subr.bf16.mxu0 %v1608
    %2107 = vmatpush1.bf16.msra.mxu0 %v1607
    %2108 = vmatprep.mubr.bf16.mxu0 %v940
    %2109 = vmatmul.mubr.bf16.gmra.mrb[0].mxu0 %v939
    %v2110 = vpop.f32.mrb[0].mxu0
    %v2111 = vadd.f32 %v1998, %v2110
    %v2112 = vpop.f32.mrb[0].mxu0
    %v2113 = vadd.f32 %v2000, %v2112
    %v2114 = vpop.f32.mrb[0].mxu0
    %v2115 = vadd.f32 %v2002, %v2114
    %v2116 = vpop.f32.mrb[0].mxu0
    %v2117 = vadd.f32 %v2004, %v2116
    %2118 = vmatprep.mubr.bf16.mxu0 %v944
    %2119 = vmatmul.mubr.bf16.gmra.mrb[0].mxu0 %v943
    %v2120 = vpop.f32.mrb[0].mxu0
    %v2121 = vadd.f32 %v2008, %v2120
    %v2122 = vpop.f32.mrb[0].mxu0
    %v2123 = vadd.f32 %v2010, %v2122
    %v2124 = vpop.f32.mrb[0].mxu0
    %v2125 = vadd.f32 %v2012, %v2124
    %v2126 = vpop.f32.mrb[0].mxu0
    %v2127 = vadd.f32 %v2014, %v2126
    %2128 = vmatprep.mubr.bf16.mxu0 %v948
    %2129 = vmatmul.mubr.bf16.gmra.mrb[0].mxu0 %v947
    %v2130 = vpop.f32.mrb[0].mxu0
    %v2131 = vadd.f32 %v2018, %v2130
    %v2132 = vpop.f32.mrb[0].mxu0
    %v2133 = vadd.f32 %v2020, %v2132
    %v2134 = vpop.f32.mrb[0].mxu0
    %v2135 = vadd.f32 %v2022, %v2134
    %v2136 = vpop.f32.mrb[0].mxu0
    %v2137 = vadd.f32 %v2024, %v2136
    %2138 = vmatprep.mubr.bf16.mxu0 %v952
    %2139 = vmatmul.mubr.bf16.gmra.mrb[0].mxu0 %v951
    %v2140 = vpop.f32.mrb[0].mxu0
    %v2141 = vadd.f32 %v2028, %v2140
    %v2142 = vpop.f32.mrb[0].mxu0
    %v2143 = vadd.f32 %v2030, %v2142
    %v2144 = vpop.f32.mrb[0].mxu0
    %v2145 = vadd.f32 %v2032, %v2144
    %v2146 = vpop.f32.mrb[0].mxu0
    %v2147 = vadd.f32 %v2034, %v2146
    %2148 = vmatprep.mubr.bf16.mxu0 %v956
    %2149 = vmatmul.mubr.bf16.gmra.mrb[0].mxu0 %v955
    %v2150 = vpop.f32.mrb[0].mxu0
    %v2151 = vadd.f32 %v2038, %v2150
    %v2152 = vpop.f32.mrb[0].mxu0
    %v2153 = vadd.f32 %v2040, %v2152
    %v2154 = vpop.f32.mrb[0].mxu0
    %v2155 = vadd.f32 %v2042, %v2154
    %v2156 = vpop.f32.mrb[0].mxu0
    %v2157 = vadd.f32 %v2044, %v2156
    %2158 = vmatprep.mubr.bf16.mxu0 %v960
    %2159 = vmatmul.mubr.bf16.gmra.mrb[0].mxu0 %v959
    %v2160 = vpop.f32.mrb[0].mxu0
    %v2161 = vadd.f32 %v2048, %v2160
    %v2162 = vpop.f32.mrb[0].mxu0
    %v2163 = vadd.f32 %v2050, %v2162
    %v2164 = vpop.f32.mrb[0].mxu0
    %v2165 = vadd.f32 %v2052, %v2164
    %v2166 = vpop.f32.mrb[0].mxu0
    %v2167 = vadd.f32 %v2054, %v2166
    %2168 = vmatprep.mubr.bf16.mxu0 %v964
    %2169 = vmatmul.mubr.bf16.gmra.mrb[0].mxu0 %v963
    %v2170 = vpop.f32.mrb[0].mxu0
    %v2171 = vadd.f32 %v2058, %v2170
    %v2172 = vpop.f32.mrb[0].mxu0
    %v2173 = vadd.f32 %v2060, %v2172
    %v2174 = vpop.f32.mrb[0].mxu0
    %v2175 = vadd.f32 %v2062, %v2174
    %v2176 = vpop.f32.mrb[0].mxu0
    %v2177 = vadd.f32 %v2064, %v2176
    %2178 = vmatprep.mubr.bf16.mxu0 %v968
    %2179 = vmatmul.mubr.bf16.gmra.mrb[0].mxu0 %v967
    %v2180 = vpop.f32.mrb[0].mxu0
    %v2181 = vadd.f32 %v2068, %v2180
    %v2182 = vpop.f32.mrb[0].mxu0
    %v2183 = vadd.f32 %v2070, %v2182
    %v2184 = vpop.f32.mrb[0].mxu0
    %v2185 = vadd.f32 %v2072, %v2184
    %v2186 = vpop.f32.mrb[0].mxu0
    %v2187 = vadd.f32 %v2074, %v2186
    %2188 = vdwg.mxu0
    %s2189 = scalar_lea.vmem %s5, 2
    %v2190 = vld [vmem:[%s2189] ss:$8 sm:$0xf]
    %s2191 = scalar_lea.vmem %s5, 3
    %v2192 = vld [vmem:[%s2191] ss:$8 sm:$0xf]
    %v2193 = vadd.f32 %v1885, %v1889
    %v2194 = vadd.f32 %v2193, %v1895
    %v2195 = vadd.f32 %v2194, %v1899
    %v2196 = vadd.f32 %v2195, %v1905
    %v2197 = vadd.f32 %v2196, %v1909
    %v2198 = vadd.f32 %v2197, %v1915
    %v2199 = vadd.f32 %v2198, %v1919
    %v2200 = vadd.f32 %v2199, %v1925
    %v2201 = vadd.f32 %v2200, %v1929
    %v2202 = vadd.f32 %v2201, %v1935
    %v2203 = vadd.f32 %v2202, %v1939
    %v2204 = vadd.f32 %v2203, %v1945
    %v2205 = vadd.f32 %v2204, %v1949
    %v2206 = vadd.f32 %v2205, %v1955
    %v2207 = vadd.f32 %v2206, %v1959
    %v2208 = vrot.slane %v2207, 4
    %v2209 = vadd.f32 %v2207, %v2208
    %v2210 = vrot.slane %v2209, 2
    %v2211 = vadd.f32 %v2209, %v2210
    %v2212 = vrot.slane %v2211, 1
    %v2213 = vadd.f32 %v2211, %v2212
    %v2214 = vadd.f32 %v1887, %v1891
    %v2215 = vadd.f32 %v2214, %v1897
    %v2216 = vadd.f32 %v2215, %v1901
    %v2217 = vadd.f32 %v2216, %v1907
    %v2218 = vadd.f32 %v2217, %v1911
    %v2219 = vadd.f32 %v2218, %v1917
    %v2220 = vadd.f32 %v2219, %v1921
    %v2221 = vadd.f32 %v2220, %v1927
    %v2222 = vadd.f32 %v2221, %v1931
    %v2223 = vadd.f32 %v2222, %v1937
    %v2224 = vadd.f32 %v2223, %v1941
    %v2225 = vadd.f32 %v2224, %v1947
    %v2226 = vadd.f32 %v2225, %v1951
    %v2227 = vadd.f32 %v2226, %v1957
    %v2228 = vadd.f32 %v2227, %v1961
    %v2229 = vrot.slane %v2228, 4
    %v2230 = vadd.f32 %v2228, %v2229
    %v2231 = vrot.slane %v2230, 2
    %v2232 = vadd.f32 %v2230, %v2231
    %v2233 = vrot.slane %v2232, 1
    %v2234 = vadd.f32 %v2232, %v2233
    %v2235 = vadd.f32 %v2111, %v2115
    %v2236 = vadd.f32 %v2235, %v2121
    %v2237 = vadd.f32 %v2236, %v2125
    %v2238 = vadd.f32 %v2237, %v2131
    %v2239 = vadd.f32 %v2238, %v2135
    %v2240 = vadd.f32 %v2239, %v2141
    %v2241 = vadd.f32 %v2240, %v2145
    %v2242 = vadd.f32 %v2241, %v2151
    %v2243 = vadd.f32 %v2242, %v2155
    %v2244 = vadd.f32 %v2243, %v2161
    %v2245 = vadd.f32 %v2244, %v2165
    %v2246 = vadd.f32 %v2245, %v2171
    %v2247 = vadd.f32 %v2246, %v2175
    %v2248 = vadd.f32 %v2247, %v2181
    %v2249 = vadd.f32 %v2248, %v2185
    %v2250 = vrot.slane %v2249, 4
    %v2251 = vadd.f32 %v2249, %v2250
    %v2252 = vrot.slane %v2251, 2
    %v2253 = vadd.f32 %v2251, %v2252
    %v2254 = vrot.slane %v2253, 1
    %v2255 = vadd.f32 %v2253, %v2254
    %v2256 = vadd.f32 %v2113, %v2117
    %v2257 = vadd.f32 %v2256, %v2123
    %v2258 = vadd.f32 %v2257, %v2127
    %v2259 = vadd.f32 %v2258, %v2133
    %v2260 = vadd.f32 %v2259, %v2137
    %v2261 = vadd.f32 %v2260, %v2143
    %v2262 = vadd.f32 %v2261, %v2147
    %v2263 = vadd.f32 %v2262, %v2153
    %v2264 = vadd.f32 %v2263, %v2157
    %v2265 = vadd.f32 %v2264, %v2163
    %v2266 = vadd.f32 %v2265, %v2167
    %v2267 = vadd.f32 %v2266, %v2173
    %v2268 = vadd.f32 %v2267, %v2177
    %v2269 = vadd.f32 %v2268, %v2183
    %v2270 = vadd.f32 %v2269, %v2187
    %v2271 = vrot.slane %v2270, 4
    %v2272 = vadd.f32 %v2270, %v2271
    %v2273 = vrot.slane %v2272, 2
    %v2274 = vadd.f32 %v2272, %v2273
    %v2275 = vrot.slane %v2274, 1
    %v2276 = vadd.f32 %v2274, %v2275
    %v2277 = vmul.f32 %v1885, %v1885
    %v2278 = vmul.f32 %v1887, %v1887
    %v2279 = vmul.f32 %v2111, %v2111
    %v2280 = vmul.f32 %v2113, %v2113
    %v2281 = vmul.f32 %v1889, %v1889
    %v2282 = vmul.f32 %v1891, %v1891
    %v2283 = vmul.f32 %v2115, %v2115
    %v2284 = vmul.f32 %v2117, %v2117
    %v2285 = vmul.f32 %v1895, %v1895
    %v2286 = vmul.f32 %v1897, %v1897
    %v2287 = vmul.f32 %v2121, %v2121
    %v2288 = vmul.f32 %v2123, %v2123
    %v2289 = vmul.f32 %v1899, %v1899
    %v2290 = vmul.f32 %v1901, %v1901
    %v2291 = vmul.f32 %v2125, %v2125
    %v2292 = vmul.f32 %v2127, %v2127
    %v2293 = vmul.f32 %v1905, %v1905
    %v2294 = vmul.f32 %v1907, %v1907
    %v2295 = vmul.f32 %v2131, %v2131
    %v2296 = vmul.f32 %v2133, %v2133
    %v2297 = vmul.f32 %v1909, %v1909
    %v2298 = vmul.f32 %v1911, %v1911
    %v2299 = vmul.f32 %v2135, %v2135
    %v2300 = vmul.f32 %v2137, %v2137
    %v2301 = vmul.f32 %v1915, %v1915
    %v2302 = vmul.f32 %v1917, %v1917
    %v2303 = vmul.f32 %v2141, %v2141
    %v2304 = vmul.f32 %v2143, %v2143
    %v2305 = vmul.f32 %v1919, %v1919
    %v2306 = vmul.f32 %v1921, %v1921
    %v2307 = vmul.f32 %v2145, %v2145
    %v2308 = vmul.f32 %v2147, %v2147
    %v2309 = vmul.f32 %v1925, %v1925
    %v2310 = vmul.f32 %v1927, %v1927
    %v2311 = vmul.f32 %v2151, %v2151
    %v2312 = vmul.f32 %v2153, %v2153
    %v2313 = vmul.f32 %v1929, %v1929
    %v2314 = vmul.f32 %v1931, %v1931
    %v2315 = vmul.f32 %v2155, %v2155
    %v2316 = vmul.f32 %v2157, %v2157
    %v2317 = vmul.f32 %v1935, %v1935
    %v2318 = vmul.f32 %v1937, %v1937
    %v2319 = vmul.f32 %v2161, %v2161
    %v2320 = vmul.f32 %v2163, %v2163
    %v2321 = vmul.f32 %v1939, %v1939
    %v2322 = vmul.f32 %v1941, %v1941
    %v2323 = vmul.f32 %v2165, %v2165
    %v2324 = vmul.f32 %v2167, %v2167
    %v2325 = vmul.f32 %v1945, %v1945
    %v2326 = vmul.f32 %v1947, %v1947
    %v2327 = vmul.f32 %v2171, %v2171
    %v2328 = vmul.f32 %v2173, %v2173
    %v2329 = vmul.f32 %v1949, %v1949
    %v2330 = vmul.f32 %v1951, %v1951
    %v2331 = vmul.f32 %v2175, %v2175
    %v2332 = vmul.f32 %v2177, %v2177
    %v2333 = vmul.f32 %v1955, %v1955
    %v2334 = vmul.f32 %v1957, %v1957
    %v2335 = vmul.f32 %v2181, %v2181
    %v2336 = vmul.f32 %v2183, %v2183
    %v2337 = vmul.f32 %v1959, %v1959
    %v2338 = vmul.f32 %v1961, %v1961
    %v2339 = vmul.f32 %v2185, %v2185
    %v2340 = vmul.f32 %v2187, %v2187
    %v2341 = vadd.f32 %v2277, %v2281
    %v2342 = vadd.f32 %v2341, %v2285
    %v2343 = vadd.f32 %v2342, %v2289
    %v2344 = vadd.f32 %v2343, %v2293
    %v2345 = vadd.f32 %v2344, %v2297
    %v2346 = vadd.f32 %v2345, %v2301
    %v2347 = vadd.f32 %v2346, %v2305
    %v2348 = vadd.f32 %v2347, %v2309
    %v2349 = vadd.f32 %v2348, %v2313
    %v2350 = vadd.f32 %v2349, %v2317
    %v2351 = vadd.f32 %v2350, %v2321
    %v2352 = vadd.f32 %v2351, %v2325
    %v2353 = vadd.f32 %v2352, %v2329
    %v2354 = vadd.f32 %v2353, %v2333
    %v2355 = vadd.f32 %v2354, %v2337
    %v2356 = vrot.slane %v2355, 4
    %v2357 = vadd.f32 %v2355, %v2356
    %v2358 = vrot.slane %v2357, 2
    %v2359 = vadd.f32 %v2357, %v2358
    %v2360 = vrot.slane %v2359, 1
    %v2361 = vadd.f32 %v2359, %v2360
    %v2362 = vadd.f32 %v2278, %v2282
    %v2363 = vadd.f32 %v2362, %v2286
    %v2364 = vadd.f32 %v2363, %v2290
    %v2365 = vadd.f32 %v2364, %v2294
    %v2366 = vadd.f32 %v2365, %v2298
    %v2367 = vadd.f32 %v2366, %v2302
    %v2368 = vadd.f32 %v2367, %v2306
    %v2369 = vadd.f32 %v2368, %v2310
    %v2370 = vadd.f32 %v2369, %v2314
    %v2371 = vadd.f32 %v2370, %v2318
    %v2372 = vadd.f32 %v2371, %v2322
    %v2373 = vadd.f32 %v2372, %v2326
    %v2374 = vadd.f32 %v2373, %v2330
    %v2375 = vadd.f32 %v2374, %v2334
    %v2376 = vadd.f32 %v2375, %v2338
    %v2377 = vrot.slane %v2376, 4
    %v2378 = vadd.f32 %v2376, %v2377
    %v2379 = vrot.slane %v2378, 2
    %v2380 = vadd.f32 %v2378, %v2379
    %v2381 = vrot.slane %v2380, 1
    %v2382 = vadd.f32 %v2380, %v2381
    %v2383 = vadd.f32 %v2279, %v2283
    %v2384 = vadd.f32 %v2383, %v2287
    %v2385 = vadd.f32 %v2384, %v2291
    %v2386 = vadd.f32 %v2385, %v2295
    %v2387 = vadd.f32 %v2386, %v2299
    %v2388 = vadd.f32 %v2387, %v2303
    %v2389 = vadd.f32 %v2388, %v2307
    %v2390 = vadd.f32 %v2389, %v2311
    %v2391 = vadd.f32 %v2390, %v2315
    %v2392 = vadd.f32 %v2391, %v2319
    %v2393 = vadd.f32 %v2392, %v2323
    %v2394 = vadd.f32 %v2393, %v2327
    %v2395 = vadd.f32 %v2394, %v2331
    %v2396 = vadd.f32 %v2395, %v2335
    %v2397 = vadd.f32 %v2396, %v2339
    %v2398 = vrot.slane %v2397, 4
    %v2399 = vadd.f32 %v2397, %v2398
    %v2400 = vrot.slane %v2399, 2
    %v2401 = vadd.f32 %v2399, %v2400
    %v2402 = vrot.slane %v2401, 1
    %v2403 = vadd.f32 %v2401, %v2402
    %v2404 = vadd.f32 %v2280, %v2284
    %v2405 = vadd.f32 %v2404, %v2288
    %v2406 = vadd.f32 %v2405, %v2292
    %v2407 = vadd.f32 %v2406, %v2296
    %v2408 = vadd.f32 %v2407, %v2300
    %v2409 = vadd.f32 %v2408, %v2304
    %v2410 = vadd.f32 %v2409, %v2308
    %v2411 = vadd.f32 %v2410, %v2312
    %v2412 = vadd.f32 %v2411, %v2316
    %v2413 = vadd.f32 %v2412, %v2320
    %v2414 = vadd.f32 %v2413, %v2324
    %v2415 = vadd.f32 %v2414, %v2328
    %v2416 = vadd.f32 %v2415, %v2332
    %v2417 = vadd.f32 %v2416, %v2336
    %v2418 = vadd.f32 %v2417, %v2340
    %v2419 = vrot.slane %v2418, 4
    %v2420 = vadd.f32 %v2418, %v2419
    %v2421 = vrot.slane %v2420, 2
    %v2422 = vadd.f32 %v2420, %v2421
    %v2423 = vrot.slane %v2422, 1
    %v2424 = vadd.f32 %v2422, %v2423
    %v2425 = vmul.f32 %v2213, 0.0078125
    %v2426 = vmul.f32 %v2234, 0.0078125
    %v2427 = vmul.f32 %v2255, 0.0078125
    %v2428 = vmul.f32 %v2276, 0.0078125
    %v2429 = vmul.f32 %v2361, 0.0078125
    %v2430 = vmul.f32 %v2382, 0.0078125
    %v2431 = vmul.f32 %v2403, 0.0078125
    %v2432 = vmul.f32 %v2424, 0.0078125
    %v2433 = vmul.f32 %v2425, %v2425
    %v2434 = vmul.f32 %v2426, %v2426
    %v2435 = vmul.f32 %v2427, %v2427
    %v2436 = vmul.f32 %v2428, %v2428
    %v2437 = vsub.f32 %v2429, %v2433
    %v2438 = vsub.f32 %v2430, %v2434
    %v2439 = vsub.f32 %v2431, %v2435
    %v2440 = vsub.f32 %v2432, %v2436
    %v2441 = vmax.f32 %v2437, 0.0
    %v2442 = vmax.f32 %v2438, 0.0
    %v2443 = vmax.f32 %v2439, 0.0
    %v2444 = vmax.f32 %v2440, 0.0
    %v2445 = vadd.f32 %v2441, 1e-05
    %v2446 = vadd.f32 %v2442, 1e-05
    %v2447 = vadd.f32 %v2443, 1e-05
    %v2448 = vadd.f32 %v2444, 1e-05
    %v2449 = vrsqrt.pop %v2445
    %v2450 = vrsqrt.pop %v2446
    %v2451 = vrsqrt.pop %v2447
    %v2452 = vrsqrt.pop %v2448
    %v2457 = vcombine.low %v2449, %v2450
    %v2458 = vcombine.low %v2451, %v2452
    %v2460 = vunpack.c.l.s4 1966171168
    %v2461 = vunpack.c.0.s8 %v2460
    %v2462 = vlaneseq
    %v2463 = vshrl.u32 %v2462, 7
    %v2464 = vsub.s32 %v2461, %v2463
    %v2465 = vrot.slane %v2457, %v2464
    %v2467 = vunpack.c.l.s4 1966171168
    %v2468 = vunpack.c.0.s8 %v2467
    %v2469 = vlaneseq
    %v2470 = vshrl.u32 %v2469, 7
    %v2471 = vsub.s32 %v2468, %v2470
    %v2472 = vrot.slane %v2458, %v2471
    %v2473 = vcombine.low %v2465, %v2472
    %v2475 = vunpack.c.l.s4 1966171168
    %v2476 = vunpack.c.0.s8 %v2475
    %v2477 = vlaneseq
    %v2478 = vshrl.u32 %v2477, 7
    %v2479 = vsub.s32 %v2476, %v2478
    %v2480 = vrot.slane %v2473, %v2479
    %v2482 = vmul.f32 %v2190, %v2480
    %v2484 = vlaneseq
    %v2485 = vshrl.u32 %v2484, 7
    %v2486 = vsub.s32 0, %v2485
    %v2487 = vrot.slane %v2482, %v2486
    %v2488 = vlaneseq
    %v2489 = vshrl.u32 %v2488, 7
    %v2490 = vsub.s32 1, %v2489
    %v2491 = vrot.slane %v2482, %v2490
    %v2492 = vlaneseq
    %v2493 = vshrl.u32 %v2492, 7
    %v2494 = vsub.s32 2, %v2493
    %v2495 = vrot.slane %v2482, %v2494
    %v2496 = vlaneseq
    %v2497 = vshrl.u32 %v2496, 7
    %v2498 = vsub.s32 3, %v2497
    %v2499 = vrot.slane %v2482, %v2498
    %v2504 = vmul.f32 %v2425, %v2487
    %v2505 = vmul.f32 %v2426, %v2491
    %v2506 = vmul.f32 %v2427, %v2495
    %v2507 = vmul.f32 %v2428, %v2499
    %v2512 = vcombine.low %v2504, %v2505
    %v2513 = vcombine.low %v2506, %v2507
    %v2515 = vunpack.c.l.s4 1966171168
    %v2516 = vunpack.c.0.s8 %v2515
    %v2517 = vlaneseq
    %v2518 = vshrl.u32 %v2517, 7
    %v2519 = vsub.s32 %v2516, %v2518
    %v2520 = vrot.slane %v2512, %v2519
    %v2522 = vunpack.c.l.s4 1966171168
    %v2523 = vunpack.c.0.s8 %v2522
    %v2524 = vlaneseq
    %v2525 = vshrl.u32 %v2524, 7
    %v2526 = vsub.s32 %v2523, %v2525
    %v2527 = vrot.slane %v2513, %v2526
    %v2528 = vcombine.low %v2520, %v2527
    %v2530 = vunpack.c.l.s4 1966171168
    %v2531 = vunpack.c.0.s8 %v2530
    %v2532 = vlaneseq
    %v2533 = vshrl.u32 %v2532, 7
    %v2534 = vsub.s32 %v2531, %v2533
    %v2535 = vrot.slane %v2528, %v2534
    %v2537 = vsub.f32 %v2192, %v2535
    %v2538 = vmul.f32 %v1885, %v2487
    %v2539 = vmul.f32 %v1887, %v2491
    %v2540 = vmul.f32 %v2111, %v2495
    %v2541 = vmul.f32 %v2113, %v2499
    %v2542 = vmul.f32 %v1889, %v2487
    %v2543 = vmul.f32 %v1891, %v2491
    %v2544 = vmul.f32 %v2115, %v2495
    %v2545 = vmul.f32 %v2117, %v2499
    %v2546 = vmul.f32 %v1895, %v2487
    %v2547 = vmul.f32 %v1897, %v2491
    %v2548 = vmul.f32 %v2121, %v2495
    %v2549 = vmul.f32 %v2123, %v2499
    %v2550 = vmul.f32 %v1899, %v2487
    %v2551 = vmul.f32 %v1901, %v2491
    %v2552 = vmul.f32 %v2125, %v2495
    %v2553 = vmul.f32 %v2127, %v2499
    %v2554 = vmul.f32 %v1905, %v2487
    %v2555 = vmul.f32 %v1907, %v2491
    %v2556 = vmul.f32 %v2131, %v2495
    %v2557 = vmul.f32 %v2133, %v2499
    %v2558 = vmul.f32 %v1909, %v2487
    %v2559 = vmul.f32 %v1911, %v2491
    %v2560 = vmul.f32 %v2135, %v2495
    %v2561 = vmul.f32 %v2137, %v2499
    %v2562 = vmul.f32 %v1915, %v2487
    %v2563 = vmul.f32 %v1917, %v2491
    %v2564 = vmul.f32 %v2141, %v2495
    %v2565 = vmul.f32 %v2143, %v2499
    %v2566 = vmul.f32 %v1919, %v2487
    %v2567 = vmul.f32 %v1921, %v2491
    %v2568 = vmul.f32 %v2145, %v2495
    %v2569 = vmul.f32 %v2147, %v2499
    %v2570 = vmul.f32 %v1925, %v2487
    %v2571 = vmul.f32 %v1927, %v2491
    %v2572 = vmul.f32 %v2151, %v2495
    %v2573 = vmul.f32 %v2153, %v2499
    %v2574 = vmul.f32 %v1929, %v2487
    %v2575 = vmul.f32 %v1931, %v2491
    %v2576 = vmul.f32 %v2155, %v2495
    %v2577 = vmul.f32 %v2157, %v2499
    %v2578 = vmul.f32 %v1935, %v2487
    %v2579 = vmul.f32 %v1937, %v2491
    %v2580 = vmul.f32 %v2161, %v2495
    %v2581 = vmul.f32 %v2163, %v2499
    %v2582 = vmul.f32 %v1939, %v2487
    %v2583 = vmul.f32 %v1941, %v2491
    %v2584 = vmul.f32 %v2165, %v2495
    %v2585 = vmul.f32 %v2167, %v2499
    %v2586 = vmul.f32 %v1945, %v2487
    %v2587 = vmul.f32 %v1947, %v2491
    %v2588 = vmul.f32 %v2171, %v2495
    %v2589 = vmul.f32 %v2173, %v2499
    %v2590 = vmul.f32 %v1949, %v2487
    %v2591 = vmul.f32 %v1951, %v2491
    %v2592 = vmul.f32 %v2175, %v2495
    %v2593 = vmul.f32 %v2177, %v2499
    %v2594 = vmul.f32 %v1955, %v2487
    %v2595 = vmul.f32 %v1957, %v2491
    %v2596 = vmul.f32 %v2181, %v2495
    %v2597 = vmul.f32 %v2183, %v2499
    %v2598 = vmul.f32 %v1959, %v2487
    %v2599 = vmul.f32 %v1961, %v2491
    %v2600 = vmul.f32 %v2185, %v2495
    %v2601 = vmul.f32 %v2187, %v2499
    %v2603 = vlaneseq
    %v2604 = vshrl.u32 %v2603, 7
    %v2605 = vsub.s32 0, %v2604
    %v2606 = vrot.slane %v2537, %v2605
    %v2607 = vlaneseq
    %v2608 = vshrl.u32 %v2607, 7
    %v2609 = vsub.s32 1, %v2608
    %v2610 = vrot.slane %v2537, %v2609
    %v2611 = vlaneseq
    %v2612 = vshrl.u32 %v2611, 7
    %v2613 = vsub.s32 2, %v2612
    %v2614 = vrot.slane %v2537, %v2613
    %v2615 = vlaneseq
    %v2616 = vshrl.u32 %v2615, 7
    %v2617 = vsub.s32 3, %v2616
    %v2618 = vrot.slane %v2537, %v2617
    %v2623 = vadd.f32 %v2538, %v2606
    %v2624 = vadd.f32 %v2539, %v2610
    %v2625 = vadd.f32 %v2540, %v2614
    %v2626 = vadd.f32 %v2541, %v2618
    %v2627 = vadd.f32 %v2542, %v2606
    %v2628 = vadd.f32 %v2543, %v2610
    %v2629 = vadd.f32 %v2544, %v2614
    %v2630 = vadd.f32 %v2545, %v2618
    %v2631 = vadd.f32 %v2546, %v2606
    %v2632 = vadd.f32 %v2547, %v2610
    %v2633 = vadd.f32 %v2548, %v2614
    %v2634 = vadd.f32 %v2549, %v2618
    %v2635 = vadd.f32 %v2550, %v2606
    %v2636 = vadd.f32 %v2551, %v2610
    %v2637 = vadd.f32 %v2552, %v2614
    %v2638 = vadd.f32 %v2553, %v2618
    %v2639 = vadd.f32 %v2554, %v2606
    %v2640 = vadd.f32 %v2555, %v2610
    %v2641 = vadd.f32 %v2556, %v2614
    %v2642 = vadd.f32 %v2557, %v2618
    %v2643 = vadd.f32 %v2558, %v2606
    %v2644 = vadd.f32 %v2559, %v2610
    %v2645 = vadd.f32 %v2560, %v2614
    %v2646 = vadd.f32 %v2561, %v2618
    %v2647 = vadd.f32 %v2562, %v2606
    %v2648 = vadd.f32 %v2563, %v2610
    %v2649 = vadd.f32 %v2564, %v2614
    %v2650 = vadd.f32 %v2565, %v2618
    %v2651 = vadd.f32 %v2566, %v2606
    %v2652 = vadd.f32 %v2567, %v2610
    %v2653 = vadd.f32 %v2568, %v2614
    %v2654 = vadd.f32 %v2569, %v2618
    %v2655 = vadd.f32 %v2570, %v2606
    %v2656 = vadd.f32 %v2571, %v2610
    %v2657 = vadd.f32 %v2572, %v2614
    %v2658 = vadd.f32 %v2573, %v2618
    %v2659 = vadd.f32 %v2574, %v2606
    %v2660 = vadd.f32 %v2575, %v2610
    %v2661 = vadd.f32 %v2576, %v2614
    %v2662 = vadd.f32 %v2577, %v2618
    %v2663 = vadd.f32 %v2578, %v2606
    %v2664 = vadd.f32 %v2579, %v2610
    %v2665 = vadd.f32 %v2580, %v2614
    %v2666 = vadd.f32 %v2581, %v2618
    %v2667 = vadd.f32 %v2582, %v2606
    %v2668 = vadd.f32 %v2583, %v2610
    %v2669 = vadd.f32 %v2584, %v2614
    %v2670 = vadd.f32 %v2585, %v2618
    %v2671 = vadd.f32 %v2586, %v2606
    %v2672 = vadd.f32 %v2587, %v2610
    %v2673 = vadd.f32 %v2588, %v2614
    %v2674 = vadd.f32 %v2589, %v2618
    %v2675 = vadd.f32 %v2590, %v2606
    %v2676 = vadd.f32 %v2591, %v2610
    %v2677 = vadd.f32 %v2592, %v2614
    %v2678 = vadd.f32 %v2593, %v2618
    %v2679 = vadd.f32 %v2594, %v2606
    %v2680 = vadd.f32 %v2595, %v2610
    %v2681 = vadd.f32 %v2596, %v2614
    %v2682 = vadd.f32 %v2597, %v2618
    %v2683 = vadd.f32 %v2598, %v2606
    %v2684 = vadd.f32 %v2599, %v2610
    %v2685 = vadd.f32 %v2600, %v2614
    %v2686 = vadd.f32 %v2601, %v2618
    %v2687 = vmax.f32 %v2623, 0.0
    %v2688 = vmax.f32 %v2624, 0.0
    %v2689 = vmax.f32 %v2625, 0.0
    %v2690 = vmax.f32 %v2626, 0.0
    %v2691 = vmax.f32 %v2627, 0.0
    %v2692 = vmax.f32 %v2628, 0.0
    %v2693 = vmax.f32 %v2629, 0.0
    %v2694 = vmax.f32 %v2630, 0.0
    %v2695 = vmax.f32 %v2631, 0.0
    %v2696 = vmax.f32 %v2632, 0.0
    %v2697 = vmax.f32 %v2633, 0.0
    %v2698 = vmax.f32 %v2634, 0.0
    %v2699 = vmax.f32 %v2635, 0.0
    %v2700 = vmax.f32 %v2636, 0.0
    %v2701 = vmax.f32 %v2637, 0.0
    %v2702 = vmax.f32 %v2638, 0.0
    %v2703 = vmax.f32 %v2639, 0.0
    %v2704 = vmax.f32 %v2640, 0.0
    %v2705 = vmax.f32 %v2641, 0.0
    %v2706 = vmax.f32 %v2642, 0.0
    %v2707 = vmax.f32 %v2643, 0.0
    %v2708 = vmax.f32 %v2644, 0.0
    %v2709 = vmax.f32 %v2645, 0.0
    %v2710 = vmax.f32 %v2646, 0.0
    %v2711 = vmax.f32 %v2647, 0.0
    %v2712 = vmax.f32 %v2648, 0.0
    %v2713 = vmax.f32 %v2649, 0.0
    %v2714 = vmax.f32 %v2650, 0.0
    %v2715 = vmax.f32 %v2651, 0.0
    %v2716 = vmax.f32 %v2652, 0.0
    %v2717 = vmax.f32 %v2653, 0.0
    %v2718 = vmax.f32 %v2654, 0.0
    %v2719 = vmax.f32 %v2655, 0.0
    %v2720 = vmax.f32 %v2656, 0.0
    %v2721 = vmax.f32 %v2657, 0.0
    %v2722 = vmax.f32 %v2658, 0.0
    %v2723 = vmax.f32 %v2659, 0.0
    %v2724 = vmax.f32 %v2660, 0.0
    %v2725 = vmax.f32 %v2661, 0.0
    %v2726 = vmax.f32 %v2662, 0.0
    %v2727 = vmax.f32 %v2663, 0.0
    %v2728 = vmax.f32 %v2664, 0.0
    %v2729 = vmax.f32 %v2665, 0.0
    %v2730 = vmax.f32 %v2666, 0.0
    %v2731 = vmax.f32 %v2667, 0.0
    %v2732 = vmax.f32 %v2668, 0.0
    %v2733 = vmax.f32 %v2669, 0.0
    %v2734 = vmax.f32 %v2670, 0.0
    %v2735 = vmax.f32 %v2671, 0.0
    %v2736 = vmax.f32 %v2672, 0.0
    %v2737 = vmax.f32 %v2673, 0.0
    %v2738 = vmax.f32 %v2674, 0.0
    %v2739 = vmax.f32 %v2675, 0.0
    %v2740 = vmax.f32 %v2676, 0.0
    %v2741 = vmax.f32 %v2677, 0.0
    %v2742 = vmax.f32 %v2678, 0.0
    %v2743 = vmax.f32 %v2679, 0.0
    %v2744 = vmax.f32 %v2680, 0.0
    %v2745 = vmax.f32 %v2681, 0.0
    %v2746 = vmax.f32 %v2682, 0.0
    %v2747 = vmax.f32 %v2683, 0.0
    %v2748 = vmax.f32 %v2684, 0.0
    %v2749 = vmax.f32 %v2685, 0.0
    %v2750 = vmax.f32 %v2686, 0.0
    %v2751 = vpack.c.bf16 %v2691, %v2687
    %v2752 = vpack.c.bf16 %v2692, %v2688
    %v2753 = vpack.c.bf16 %v2693, %v2689
    %v2754 = vpack.c.bf16 %v2694, %v2690
    %v2755 = vpack.c.bf16 %v2699, %v2695
    %v2756 = vpack.c.bf16 %v2700, %v2696
    %v2757 = vpack.c.bf16 %v2701, %v2697
    %v2758 = vpack.c.bf16 %v2702, %v2698
    %v2759 = vpack.c.bf16 %v2707, %v2703
    %v2760 = vpack.c.bf16 %v2708, %v2704
    %v2761 = vpack.c.bf16 %v2709, %v2705
    %v2762 = vpack.c.bf16 %v2710, %v2706
    %v2763 = vpack.c.bf16 %v2715, %v2711
    %v2764 = vpack.c.bf16 %v2716, %v2712
    %v2765 = vpack.c.bf16 %v2717, %v2713
    %v2766 = vpack.c.bf16 %v2718, %v2714
    %v2767 = vpack.c.bf16 %v2723, %v2719
    %v2768 = vpack.c.bf16 %v2724, %v2720
    %v2769 = vpack.c.bf16 %v2725, %v2721
    %v2770 = vpack.c.bf16 %v2726, %v2722
    %v2771 = vpack.c.bf16 %v2731, %v2727
    %v2772 = vpack.c.bf16 %v2732, %v2728
    %v2773 = vpack.c.bf16 %v2733, %v2729
    %v2774 = vpack.c.bf16 %v2734, %v2730
    %v2775 = vpack.c.bf16 %v2739, %v2735
    %v2776 = vpack.c.bf16 %v2740, %v2736
    %v2777 = vpack.c.bf16 %v2741, %v2737
    %v2778 = vpack.c.bf16 %v2742, %v2738
    %v2779 = vpack.c.bf16 %v2747, %v2743
    %v2780 = vpack.c.bf16 %v2748, %v2744
    %v2781 = vpack.c.bf16 %v2749, %v2745
    %v2782 = vpack.c.bf16 %v2750, %v2746
    %v2783 = vld [vmem:[#allocation4] sm:$0xff]
    %v2784 = vld [vmem:[#allocation4 + $0x8] sm:$0xff]
    %v2785 = vld [vmem:[#allocation4 + $0x10] sm:$0xff]
    %v2786 = vld [vmem:[#allocation4 + $0x18] sm:$0xff]
    %v2787 = vld [vmem:[#allocation4 + $0x20] sm:$0xff]
    %v2788 = vld [vmem:[#allocation4 + $0x28] sm:$0xff]
    %v2789 = vld [vmem:[#allocation4 + $0x30] sm:$0xff]
    %v2790 = vld [vmem:[#allocation4 + $0x38] sm:$0xff]
    %v2791 = vld [vmem:[#allocation4 + $0x40] sm:$0xff]
    %v2792 = vld [vmem:[#allocation4 + $0x48] sm:$0xff]
    %v2793 = vld [vmem:[#allocation4 + $0x50] sm:$0xff]
    %v2794 = vld [vmem:[#allocation4 + $0x58] sm:$0xff]
    %v2795 = vld [vmem:[#allocation4 + $0x60] sm:$0xff]
    %v2796 = vld [vmem:[#allocation4 + $0x68] sm:$0xff]
    %v2797 = vld [vmem:[#allocation4 + $0x70] sm:$0xff]
    %v2798 = vld [vmem:[#allocation4 + $0x78] sm:$0xff]
    %v2799 = vld [vmem:[#allocation4 + $0x80] sm:$0xff]
    %v2800 = vld [vmem:[#allocation4 + $0x88] sm:$0xff]
    %v2801 = vld [vmem:[#allocation4 + $0x90] sm:$0xff]
    %v2802 = vld [vmem:[#allocation4 + $0x98] sm:$0xff]
    %v2803 = vld [vmem:[#allocation4 + $0xa0] sm:$0xff]
    %v2804 = vld [vmem:[#allocation4 + $0xa8] sm:$0xff]
    %v2805 = vld [vmem:[#allocation4 + $0xb0] sm:$0xff]
    %v2806 = vld [vmem:[#allocation4 + $0xb8] sm:$0xff]
    %v2807 = vld [vmem:[#allocation4 + $0xc0] sm:$0xff]
    %v2808 = vld [vmem:[#allocation4 + $0xc8] sm:$0xff]
    %v2809 = vld [vmem:[#allocation4 + $0xd0] sm:$0xff]
    %v2810 = vld [vmem:[#allocation4 + $0xd8] sm:$0xff]
    %v2811 = vld [vmem:[#allocation4 + $0xe0] sm:$0xff]
    %v2812 = vld [vmem:[#allocation4 + $0xe8] sm:$0xff]
    %v2813 = vld [vmem:[#allocation4 + $0xf0] sm:$0xff]
    %v2814 = vld [vmem:[#allocation4 + $0xf8] sm:$0xff]
    %v2815 = vld [vmem:[#allocation4 + $0x100] sm:$0xff]
    %v2816 = vld [vmem:[#allocation4 + $0x108] sm:$0xff]
    %v2817 = vld [vmem:[#allocation4 + $0x110] sm:$0xff]
    %v2818 = vld [vmem:[#allocation4 + $0x118] sm:$0xff]
    %v2819 = vld [vmem:[#allocation4 + $0x120] sm:$0xff]
    %v2820 = vld [vmem:[#allocation4 + $0x128] sm:$0xff]
    %v2821 = vld [vmem:[#allocation4 + $0x130] sm:$0xff]
    %v2822 = vld [vmem:[#allocation4 + $0x138] sm:$0xff]
    %v2823 = vld [vmem:[#allocation4 + $0x140] sm:$0xff]
    %v2824 = vld [vmem:[#allocation4 + $0x148] sm:$0xff]
    %v2825 = vld [vmem:[#allocation4 + $0x150] sm:$0xff]
    %v2826 = vld [vmem:[#allocation4 + $0x158] sm:$0xff]
    %v2827 = vld [vmem:[#allocation4 + $0x160] sm:$0xff]
    %v2828 = vld [vmem:[#allocation4 + $0x168] sm:$0xff]
    %v2829 = vld [vmem:[#allocation4 + $0x170] sm:$0xff]
    %v2830 = vld [vmem:[#allocation4 + $0x178] sm:$0xff]
    %v2831 = vld [vmem:[#allocation4 + $0x180] sm:$0xff]
    %v2832 = vld [vmem:[#allocation4 + $0x188] sm:$0xff]
    %v2833 = vld [vmem:[#allocation4 + $0x190] sm:$0xff]
    %v2834 = vld [vmem:[#allocation4 + $0x198] sm:$0xff]
    %v2835 = vld [vmem:[#allocation4 + $0x1a0] sm:$0xff]
    %v2836 = vld [vmem:[#allocation4 + $0x1a8] sm:$0xff]
    %v2837 = vld [vmem:[#allocation4 + $0x1b0] sm:$0xff]
    %v2838 = vld [vmem:[#allocation4 + $0x1b8] sm:$0xff]
    %v2839 = vld [vmem:[#allocation4 + $0x1c0] sm:$0xff]
    %v2840 = vld [vmem:[#allocation4 + $0x1c8] sm:$0xff]
    %v2841 = vld [vmem:[#allocation4 + $0x1d0] sm:$0xff]
    %v2842 = vld [vmem:[#allocation4 + $0x1d8] sm:$0xff]
    %v2843 = vld [vmem:[#allocation4 + $0x1e0] sm:$0xff]
    %v2844 = vld [vmem:[#allocation4 + $0x1e8] sm:$0xff]
    %v2845 = vld [vmem:[#allocation4 + $0x1f0] sm:$0xff]
    %v2846 = vld [vmem:[#allocation4 + $0x1f8] sm:$0xff]
    %v2911 = vunpack.c.l.b16 %v2783
    %v2912 = vunpack.c.h.b16 %v2783
    %v2913 = vunpack.c.l.b16 %v2784
    %v2914 = vunpack.c.h.b16 %v2784
    %v2915 = vunpack.c.l.b16 %v2785
    %v2916 = vunpack.c.h.b16 %v2785
    %v2917 = vunpack.c.l.b16 %v2786
    %v2918 = vunpack.c.h.b16 %v2786
    %v2919 = vunpack.c.l.b16 %v2787
    %v2920 = vunpack.c.h.b16 %v2787
    %v2921 = vunpack.c.l.b16 %v2788
    %v2922 = vunpack.c.h.b16 %v2788
    %v2923 = vunpack.c.l.b16 %v2789
    %v2924 = vunpack.c.h.b16 %v2789
    %v2925 = vunpack.c.l.b16 %v2790
    %v2926 = vunpack.c.h.b16 %v2790
    %v2927 = vunpack.c.l.b16 %v2791
    %v2928 = vunpack.c.h.b16 %v2791
    %v2929 = vunpack.c.l.b16 %v2792
    %v2930 = vunpack.c.h.b16 %v2792
    %v2931 = vunpack.c.l.b16 %v2793
    %v2932 = vunpack.c.h.b16 %v2793
    %v2933 = vunpack.c.l.b16 %v2794
    %v2934 = vunpack.c.h.b16 %v2794
    %v2935 = vunpack.c.l.b16 %v2795
    %v2936 = vunpack.c.h.b16 %v2795
    %v2937 = vunpack.c.l.b16 %v2796
    %v2938 = vunpack.c.h.b16 %v2796
    %v2939 = vunpack.c.l.b16 %v2797
    %v2940 = vunpack.c.h.b16 %v2797
    %v2941 = vunpack.c.l.b16 %v2798
    %v2942 = vunpack.c.h.b16 %v2798
    %v2943 = vunpack.c.l.b16 %v2799
    %v2944 = vunpack.c.h.b16 %v2799
    %v2945 = vunpack.c.l.b16 %v2800
    %v2946 = vunpack.c.h.b16 %v2800
    %v2947 = vunpack.c.l.b16 %v2801
    %v2948 = vunpack.c.h.b16 %v2801
    %v2949 = vunpack.c.l.b16 %v2802
    %v2950 = vunpack.c.h.b16 %v2802
    %v2951 = vunpack.c.l.b16 %v2803
    %v2952 = vunpack.c.h.b16 %v2803
    %v2953 = vunpack.c.l.b16 %v2804
    %v2954 = vunpack.c.h.b16 %v2804
    %v2955 = vunpack.c.l.b16 %v2805
    %v2956 = vunpack.c.h.b16 %v2805
    %v2957 = vunpack.c.l.b16 %v2806
    %v2958 = vunpack.c.h.b16 %v2806
    %v2959 = vunpack.c.l.b16 %v2807
    %v2960 = vunpack.c.h.b16 %v2807
    %v2961 = vunpack.c.l.b16 %v2808
    %v2962 = vunpack.c.h.b16 %v2808
    %v2963 = vunpack.c.l.b16 %v2809
    %v2964 = vunpack.c.h.b16 %v2809
    %v2965 = vunpack.c.l.b16 %v2810
    %v2966 = vunpack.c.h.b16 %v2810
    %v2967 = vunpack.c.l.b16 %v2811
    %v2968 = vunpack.c.h.b16 %v2811
    %v2969 = vunpack.c.l.b16 %v2812
    %v2970 = vunpack.c.h.b16 %v2812
    %v2971 = vunpack.c.l.b16 %v2813
    %v2972 = vunpack.c.h.b16 %v2813
    %v2973 = vunpack.c.l.b16 %v2814
    %v2974 = vunpack.c.h.b16 %v2814
    %v2975 = vunpack.c.l.b16 %v2815
    %v2976 = vunpack.c.h.b16 %v2815
    %v2977 = vunpack.c.l.b16 %v2816
    %v2978 = vunpack.c.h.b16 %v2816
    %v2979 = vunpack.c.l.b16 %v2817
    %v2980 = vunpack.c.h.b16 %v2817
    %v2981 = vunpack.c.l.b16 %v2818
    %v2982 = vunpack.c.h.b16 %v2818
    %v2983 = vunpack.c.l.b16 %v2819
    %v2984 = vunpack.c.h.b16 %v2819
    %v2985 = vunpack.c.l.b16 %v2820
    %v2986 = vunpack.c.h.b16 %v2820
    %v2987 = vunpack.c.l.b16 %v2821
    %v2988 = vunpack.c.h.b16 %v2821
    %v2989 = vunpack.c.l.b16 %v2822
    %v2990 = vunpack.c.h.b16 %v2822
    %v2991 = vunpack.c.l.b16 %v2823
    %v2992 = vunpack.c.h.b16 %v2823
    %v2993 = vunpack.c.l.b16 %v2824
    %v2994 = vunpack.c.h.b16 %v2824
    %v2995 = vunpack.c.l.b16 %v2825
    %v2996 = vunpack.c.h.b16 %v2825
    %v2997 = vunpack.c.l.b16 %v2826
    %v2998 = vunpack.c.h.b16 %v2826
    %v2999 = vunpack.c.l.b16 %v2827
    %v3000 = vunpack.c.h.b16 %v2827
    %v3001 = vunpack.c.l.b16 %v2828
    %v3002 = vunpack.c.h.b16 %v2828
    %v3003 = vunpack.c.l.b16 %v2829
    %v3004 = vunpack.c.h.b16 %v2829
    %v3005 = vunpack.c.l.b16 %v2830
    %v3006 = vunpack.c.h.b16 %v2830
    %v3007 = vunpack.c.l.b16 %v2831
    %v3008 = vunpack.c.h.b16 %v2831
    %v3009 = vunpack.c.l.b16 %v2832
    %v3010 = vunpack.c.h.b16 %v2832
    %v3011 = vunpack.c.l.b16 %v2833
    %v3012 = vunpack.c.h.b16 %v2833
    %v3013 = vunpack.c.l.b16 %v2834
    %v3014 = vunpack.c.h.b16 %v2834
    %v3015 = vunpack.c.l.b16 %v2835
    %v3016 = vunpack.c.h.b16 %v2835
    %v3017 = vunpack.c.l.b16 %v2836
    %v3018 = vunpack.c.h.b16 %v2836
    %v3019 = vunpack.c.l.b16 %v2837
    %v3020 = vunpack.c.h.b16 %v2837
    %v3021 = vunpack.c.l.b16 %v2838
    %v3022 = vunpack.c.h.b16 %v2838
    %v3023 = vunpack.c.l.b16 %v2839
    %v3024 = vunpack.c.h.b16 %v2839
    %v3025 = vunpack.c.l.b16 %v2840
    %v3026 = vunpack.c.h.b16 %v2840
    %v3027 = vunpack.c.l.b16 %v2841
    %v3028 = vunpack.c.h.b16 %v2841
    %v3029 = vunpack.c.l.b16 %v2842
    %v3030 = vunpack.c.h.b16 %v2842
    %v3031 = vunpack.c.l.b16 %v2843
    %v3032 = vunpack.c.h.b16 %v2843
    %v3033 = vunpack.c.l.b16 %v2844
    %v3034 = vunpack.c.h.b16 %v2844
    %v3035 = vunpack.c.l.b16 %v2845
    %v3036 = vunpack.c.h.b16 %v2845
    %v3037 = vunpack.c.l.b16 %v2846
    %v3038 = vunpack.c.h.b16 %v2846
    %v3039 = vpack.c.b16 %v2913, %v2911
    %v3040 = vpack.c.b16 %v2914, %v2912
    %v3041 = vpack.c.b16 %v2917, %v2915
    %v3042 = vpack.c.b16 %v2918, %v2916
    %v3043 = vpack.c.b16 %v2921, %v2919
    %v3044 = vpack.c.b16 %v2922, %v2920
    %v3045 = vpack.c.b16 %v2925, %v2923
    %v3046 = vpack.c.b16 %v2926, %v2924
    %v3047 = vpack.c.b16 %v2929, %v2927
    %v3048 = vpack.c.b16 %v2930, %v2928
    %v3049 = vpack.c.b16 %v2933, %v2931
    %v3050 = vpack.c.b16 %v2934, %v2932
    %v3051 = vpack.c.b16 %v2937, %v2935
    %v3052 = vpack.c.b16 %v2938, %v2936
    %v3053 = vpack.c.b16 %v2941, %v2939
    %v3054 = vpack.c.b16 %v2942, %v2940
    %v3055 = vpack.c.b16 %v2945, %v2943
    %v3056 = vpack.c.b16 %v2946, %v2944
    %v3057 = vpack.c.b16 %v2949, %v2947
    %v3058 = vpack.c.b16 %v2950, %v2948
    %v3059 = vpack.c.b16 %v2953, %v2951
    %v3060 = vpack.c.b16 %v2954, %v2952
    %v3061 = vpack.c.b16 %v2957, %v2955
    %v3062 = vpack.c.b16 %v2958, %v2956
    %v3063 = vpack.c.b16 %v2961, %v2959
    %v3064 = vpack.c.b16 %v2962, %v2960
    %v3065 = vpack.c.b16 %v2965, %v2963
    %v3066 = vpack.c.b16 %v2966, %v2964
    %v3067 = vpack.c.b16 %v2969, %v2967
    %v3068 = vpack.c.b16 %v2970, %v2968
    %v3069 = vpack.c.b16 %v2973, %v2971
    %v3070 = vpack.c.b16 %v2974, %v2972
    %v3071 = vpack.c.b16 %v2977, %v2975
    %v3072 = vpack.c.b16 %v2978, %v2976
    %v3073 = vpack.c.b16 %v2981, %v2979
    %v3074 = vpack.c.b16 %v2982, %v2980
    %v3075 = vpack.c.b16 %v2985, %v2983
    %v3076 = vpack.c.b16 %v2986, %v2984
    %v3077 = vpack.c.b16 %v2989, %v2987
    %v3078 = vpack.c.b16 %v2990, %v2988
    %v3079 = vpack.c.b16 %v2993, %v2991
    %v3080 = vpack.c.b16 %v2994, %v2992
    %v3081 = vpack.c.b16 %v2997, %v2995
    %v3082 = vpack.c.b16 %v2998, %v2996
    %v3083 = vpack.c.b16 %v3001, %v2999
    %v3084 = vpack.c.b16 %v3002, %v3000
    %v3085 = vpack.c.b16 %v3005, %v3003
    %v3086 = vpack.c.b16 %v3006, %v3004
    %v3087 = vpack.c.b16 %v3009, %v3007
    %v3088 = vpack.c.b16 %v3010, %v3008
    %v3089 = vpack.c.b16 %v3013, %v3011
    %v3090 = vpack.c.b16 %v3014, %v3012
    %v3091 = vpack.c.b16 %v3017, %v3015
    %v3092 = vpack.c.b16 %v3018, %v3016
    %v3093 = vpack.c.b16 %v3021, %v3019
    %v3094 = vpack.c.b16 %v3022, %v3020
    %v3095 = vpack.c.b16 %v3025, %v3023
    %v3096 = vpack.c.b16 %v3026, %v3024
    %v3097 = vpack.c.b16 %v3029, %v3027
    %v3098 = vpack.c.b16 %v3030, %v3028
    %v3099 = vpack.c.b16 %v3033, %v3031
    %v3100 = vpack.c.b16 %v3034, %v3032
    %v3101 = vpack.c.b16 %v3037, %v3035
    %v3102 = vpack.c.b16 %v3038, %v3036
    %3167 = vmatprep.subr.bf16.mxu0 %v3040
    %3168 = vmatpush1.bf16.msra.mxu0 %v3039
    %3169 = vmatprep.subr.bf16.mxu0 %v3042
    %3170 = vmatpush1.bf16.msra.mxu0 %v3041
    %3171 = vmatprep.subr.bf16.mxu0 %v3044
    %3172 = vmatpush1.bf16.msra.mxu0 %v3043
    %3173 = vmatprep.subr.bf16.mxu0 %v3046
    %3174 = vmatpush1.bf16.msra.mxu0 %v3045
    %3175 = vmatprep.subr.bf16.mxu0 %v3048
    %3176 = vmatpush1.bf16.msra.mxu0 %v3047
    %3177 = vmatprep.subr.bf16.mxu0 %v3050
    %3178 = vmatpush1.bf16.msra.mxu0 %v3049
    %3179 = vmatprep.subr.bf16.mxu0 %v3052
    %3180 = vmatpush1.bf16.msra.mxu0 %v3051
    %3181 = vmatprep.subr.bf16.mxu0 %v3054
    %3182 = vmatpush1.bf16.msra.mxu0 %v3053
    %3183 = vmatprep.subr.bf16.mxu0 %v3056
    %3184 = vmatpush1.bf16.msra.mxu0 %v3055
    %3185 = vmatprep.subr.bf16.mxu0 %v3058
    %3186 = vmatpush1.bf16.msra.mxu0 %v3057
    %3187 = vmatprep.subr.bf16.mxu0 %v3060
    %3188 = vmatpush1.bf16.msra.mxu0 %v3059
    %3189 = vmatprep.subr.bf16.mxu0 %v3062
    %3190 = vmatpush1.bf16.msra.mxu0 %v3061
    %3191 = vmatprep.subr.bf16.mxu0 %v3064
    %3192 = vmatpush1.bf16.msra.mxu0 %v3063
    %3193 = vmatprep.subr.bf16.mxu0 %v3066
    %3194 = vmatpush1.bf16.msra.mxu0 %v3065
    %3195 = vmatprep.subr.bf16.mxu0 %v3068
    %3196 = vmatpush1.bf16.msra.mxu0 %v3067
    %3197 = vmatprep.subr.bf16.mxu0 %v3070
    %3198 = vmatpush1.bf16.msra.mxu0 %v3069
    %3199 = vmatprep.mubr.bf16.mxu0 %v2752
    %3200 = vmatmul.mubr.bf16.gmra.mrb[0].mxu0 %v2751
    %v3201 = vpop.f32.mrb[0].mxu0
    %v3202 = vadd.f32 0.0, %v3201
    %v3203 = vpop.f32.mrb[0].mxu0
    %v3204 = vadd.f32 0.0, %v3203
    %v3205 = vpop.f32.mrb[0].mxu0
    %v3206 = vadd.f32 0.0, %v3205
    %v3207 = vpop.f32.mrb[0].mxu0
    %v3208 = vadd.f32 0.0, %v3207
    %3209 = vmatprep.mubr.bf16.mxu0 %v2756
    %3210 = vmatmul.mubr.bf16.gmra.mrb[0].mxu0 %v2755
    %v3211 = vpop.f32.mrb[0].mxu0
    %v3212 = vadd.f32 0.0, %v3211
    %v3213 = vpop.f32.mrb[0].mxu0
    %v3214 = vadd.f32 0.0, %v3213
    %v3215 = vpop.f32.mrb[0].mxu0
    %v3216 = vadd.f32 0.0, %v3215
    %v3217 = vpop.f32.mrb[0].mxu0
    %v3218 = vadd.f32 0.0, %v3217
    %3219 = vmatprep.mubr.bf16.mxu0 %v2760
    %3220 = vmatmul.mubr.bf16.gmra.mrb[0].mxu0 %v2759
    %v3221 = vpop.f32.mrb[0].mxu0
    %v3222 = vadd.f32 0.0, %v3221
    %v3223 = vpop.f32.mrb[0].mxu0
    %v3224 = vadd.f32 0.0, %v3223
    %v3225 = vpop.f32.mrb[0].mxu0
    %v3226 = vadd.f32 0.0, %v3225
    %v3227 = vpop.f32.mrb[0].mxu0
    %v3228 = vadd.f32 0.0, %v3227
    %3229 = vmatprep.mubr.bf16.mxu0 %v2764
    %3230 = vmatmul.mubr.bf16.gmra.mrb[0].mxu0 %v2763
    %v3231 = vpop.f32.mrb[0].mxu0
    %v3232 = vadd.f32 0.0, %v3231
    %v3233 = vpop.f32.mrb[0].mxu0
    %v3234 = vadd.f32 0.0, %v3233
    %v3235 = vpop.f32.mrb[0].mxu0
    %v3236 = vadd.f32 0.0, %v3235
    %v3237 = vpop.f32.mrb[0].mxu0
    %v3238 = vadd.f32 0.0, %v3237
    %3239 = vmatprep.mubr.bf16.mxu0 %v2768
    %3240 = vmatmul.mubr.bf16.gmra.mrb[0].mxu0 %v2767
    %v3241 = vpop.f32.mrb[0].mxu0
    %v3242 = vadd.f32 0.0, %v3241
    %v3243 = vpop.f32.mrb[0].mxu0
    %v3244 = vadd.f32 0.0, %v3243
    %v3245 = vpop.f32.mrb[0].mxu0
    %v3246 = vadd.f32 0.0, %v3245
    %v3247 = vpop.f32.mrb[0].mxu0
    %v3248 = vadd.f32 0.0, %v3247
    %3249 = vmatprep.mubr.bf16.mxu0 %v2772
    %3250 = vmatmul.mubr.bf16.gmra.mrb[0].mxu0 %v2771
    %v3251 = vpop.f32.mrb[0].mxu0
    %v3252 = vadd.f32 0.0, %v3251
    %v3253 = vpop.f32.mrb[0].mxu0
    %v3254 = vadd.f32 0.0, %v3253
    %v3255 = vpop.f32.mrb[0].mxu0
    %v3256 = vadd.f32 0.0, %v3255
    %v3257 = vpop.f32.mrb[0].mxu0
    %v3258 = vadd.f32 0.0, %v3257
    %3259 = vmatprep.mubr.bf16.mxu0 %v2776
    %3260 = vmatmul.mubr.bf16.gmra.mrb[0].mxu0 %v2775
    %v3261 = vpop.f32.mrb[0].mxu0
    %v3262 = vadd.f32 0.0, %v3261
    %v3263 = vpop.f32.mrb[0].mxu0
    %v3264 = vadd.f32 0.0, %v3263
    %v3265 = vpop.f32.mrb[0].mxu0
    %v3266 = vadd.f32 0.0, %v3265
    %v3267 = vpop.f32.mrb[0].mxu0
    %v3268 = vadd.f32 0.0, %v3267
    %3269 = vmatprep.mubr.bf16.mxu0 %v2780
    %3270 = vmatmul.mubr.bf16.gmra.mrb[0].mxu0 %v2779
    %v3271 = vpop.f32.mrb[0].mxu0
    %v3272 = vadd.f32 0.0, %v3271
    %v3273 = vpop.f32.mrb[0].mxu0
    %v3274 = vadd.f32 0.0, %v3273
    %v3275 = vpop.f32.mrb[0].mxu0
    %v3276 = vadd.f32 0.0, %v3275
    %v3277 = vpop.f32.mrb[0].mxu0
    %v3278 = vadd.f32 0.0, %v3277
    %3279 = vdwg.mxu0
    %3280 = vmatprep.subr.bf16.mxu0 %v3072
    %3281 = vmatpush1.bf16.msra.mxu0 %v3071
    %3282 = vmatprep.subr.bf16.mxu0 %v3074
    %3283 = vmatpush1.bf16.msra.mxu0 %v3073
    %3284 = vmatprep.subr.bf16.mxu0 %v3076
    %3285 = vmatpush1.bf16.msra.mxu0 %v3075
    %3286 = vmatprep.subr.bf16.mxu0 %v3078
    %3287 = vmatpush1.bf16.msra.mxu0 %v3077
    %3288 = vmatprep.subr.bf16.mxu0 %v3080
    %3289 = vmatpush1.bf16.msra.mxu0 %v3079
    %3290 = vmatprep.subr.bf16.mxu0 %v3082
    %3291 = vmatpush1.bf16.msra.mxu0 %v3081
    %3292 = vmatprep.subr.bf16.mxu0 %v3084
    %3293 = vmatpush1.bf16.msra.mxu0 %v3083
    %3294 = vmatprep.subr.bf16.mxu0 %v3086
    %3295 = vmatpush1.bf16.msra.mxu0 %v3085
    %3296 = vmatprep.subr.bf16.mxu0 %v3088
    %3297 = vmatpush1.bf16.msra.mxu0 %v3087
    %3298 = vmatprep.subr.bf16.mxu0 %v3090
    %3299 = vmatpush1.bf16.msra.mxu0 %v3089
    %3300 = vmatprep.subr.bf16.mxu0 %v3092
    %3301 = vmatpush1.bf16.msra.mxu0 %v3091
    %3302 = vmatprep.subr.bf16.mxu0 %v3094
    %3303 = vmatpush1.bf16.msra.mxu0 %v3093
    %3304 = vmatprep.subr.bf16.mxu0 %v3096
    %3305 = vmatpush1.bf16.msra.mxu0 %v3095
    %3306 = vmatprep.subr.bf16.mxu0 %v3098
    %3307 = vmatpush1.bf16.msra.mxu0 %v3097
    %3308 = vmatprep.subr.bf16.mxu0 %v3100
    %3309 = vmatpush1.bf16.msra.mxu0 %v3099
    %3310 = vmatprep.subr.bf16.mxu0 %v3102
    %3311 = vmatpush1.bf16.msra.mxu0 %v3101
    %3312 = vmatprep.mubr.bf16.mxu0 %v2754
    %3313 = vmatmul.mubr.bf16.gmra.mrb[0].mxu0 %v2753
    %v3314 = vpop.f32.mrb[0].mxu0
    %v3315 = vadd.f32 %v3202, %v3314
    %v3316 = vpop.f32.mrb[0].mxu0
    %v3317 = vadd.f32 %v3204, %v3316
    %v3318 = vpop.f32.mrb[0].mxu0
    %v3319 = vadd.f32 %v3206, %v3318
    %v3320 = vpop.f32.mrb[0].mxu0
    %v3321 = vadd.f32 %v3208, %v3320
    %3322 = vmatprep.mubr.bf16.mxu0 %v2758
    %3323 = vmatmul.mubr.bf16.gmra.mrb[0].mxu0 %v2757
    %v3324 = vpop.f32.mrb[0].mxu0
    %v3325 = vadd.f32 %v3212, %v3324
    %v3326 = vpop.f32.mrb[0].mxu0
    %v3327 = vadd.f32 %v3214, %v3326
    %v3328 = vpop.f32.mrb[0].mxu0
    %v3329 = vadd.f32 %v3216, %v3328
    %v3330 = vpop.f32.mrb[0].mxu0
    %v3331 = vadd.f32 %v3218, %v3330
    %3332 = vmatprep.mubr.bf16.mxu0 %v2762
    %3333 = vmatmul.mubr.bf16.gmra.mrb[0].mxu0 %v2761
    %v3334 = vpop.f32.mrb[0].mxu0
    %v3335 = vadd.f32 %v3222, %v3334
    %v3336 = vpop.f32.mrb[0].mxu0
    %v3337 = vadd.f32 %v3224, %v3336
    %v3338 = vpop.f32.mrb[0].mxu0
    %v3339 = vadd.f32 %v3226, %v3338
    %v3340 = vpop.f32.mrb[0].mxu0
    %v3341 = vadd.f32 %v3228, %v3340
    %3342 = vmatprep.mubr.bf16.mxu0 %v2766
    %3343 = vmatmul.mubr.bf16.gmra.mrb[0].mxu0 %v2765
    %v3344 = vpop.f32.mrb[0].mxu0
    %v3345 = vadd.f32 %v3232, %v3344
    %v3346 = vpop.f32.mrb[0].mxu0
    %v3347 = vadd.f32 %v3234, %v3346
    %v3348 = vpop.f32.mrb[0].mxu0
    %v3349 = vadd.f32 %v3236, %v3348
    %v3350 = vpop.f32.mrb[0].mxu0
    %v3351 = vadd.f32 %v3238, %v3350
    %3352 = vmatprep.mubr.bf16.mxu0 %v2770
    %3353 = vmatmul.mubr.bf16.gmra.mrb[0].mxu0 %v2769
    %v3354 = vpop.f32.mrb[0].mxu0
    %v3355 = vadd.f32 %v3242, %v3354
    %v3356 = vpop.f32.mrb[0].mxu0
    %v3357 = vadd.f32 %v3244, %v3356
    %v3358 = vpop.f32.mrb[0].mxu0
    %v3359 = vadd.f32 %v3246, %v3358
    %v3360 = vpop.f32.mrb[0].mxu0
    %v3361 = vadd.f32 %v3248, %v3360
    %3362 = vmatprep.mubr.bf16.mxu0 %v2774
    %3363 = vmatmul.mubr.bf16.gmra.mrb[0].mxu0 %v2773
    %v3364 = vpop.f32.mrb[0].mxu0
    %v3365 = vadd.f32 %v3252, %v3364
    %v3366 = vpop.f32.mrb[0].mxu0
    %v3367 = vadd.f32 %v3254, %v3366
    %v3368 = vpop.f32.mrb[0].mxu0
    %v3369 = vadd.f32 %v3256, %v3368
    %v3370 = vpop.f32.mrb[0].mxu0
    %v3371 = vadd.f32 %v3258, %v3370
    %3372 = vmatprep.mubr.bf16.mxu0 %v2778
    %3373 = vmatmul.mubr.bf16.gmra.mrb[0].mxu0 %v2777
    %v3374 = vpop.f32.mrb[0].mxu0
    %v3375 = vadd.f32 %v3262, %v3374
    %v3376 = vpop.f32.mrb[0].mxu0
    %v3377 = vadd.f32 %v3264, %v3376
    %v3378 = vpop.f32.mrb[0].mxu0
    %v3379 = vadd.f32 %v3266, %v3378
    %v3380 = vpop.f32.mrb[0].mxu0
    %v3381 = vadd.f32 %v3268, %v3380
    %3382 = vmatprep.mubr.bf16.mxu0 %v2782
    %3383 = vmatmul.mubr.bf16.gmra.mrb[0].mxu0 %v2781
    %v3384 = vpop.f32.mrb[0].mxu0
    %v3385 = vadd.f32 %v3272, %v3384
    %v3386 = vpop.f32.mrb[0].mxu0
    %v3387 = vadd.f32 %v3274, %v3386
    %v3388 = vpop.f32.mrb[0].mxu0
    %v3389 = vadd.f32 %v3276, %v3388
    %v3390 = vpop.f32.mrb[0].mxu0
    %v3391 = vadd.f32 %v3278, %v3390
    %3392 = vdwg.mxu0
    %s3393 = scalar_lea.vmem %s5, 4
    %v3394 = vld [vmem:[%s3393] ss:$8 sm:$0x3]
    %s3395 = scalar_lea.vmem %s5, 5
    %v3396 = vld [vmem:[%s3395] ss:$8 sm:$0x3]
    %v3397 = vadd.f32 %v3315, %v3319
    %v3398 = vadd.f32 %v3397, %v3325
    %v3399 = vadd.f32 %v3398, %v3329
    %v3400 = vadd.f32 %v3399, %v3335
    %v3401 = vadd.f32 %v3400, %v3339
    %v3402 = vadd.f32 %v3401, %v3345
    %v3403 = vadd.f32 %v3402, %v3349
    %v3404 = vadd.f32 %v3403, %v3355
    %v3405 = vadd.f32 %v3404, %v3359
    %v3406 = vadd.f32 %v3405, %v3365
    %v3407 = vadd.f32 %v3406, %v3369
    %v3408 = vadd.f32 %v3407, %v3375
    %v3409 = vadd.f32 %v3408, %v3379
    %v3410 = vadd.f32 %v3409, %v3385
    %v3411 = vadd.f32 %v3410, %v3389
    %v3412 = vrot.slane %v3411, 4
    %v3413 = vadd.f32 %v3411, %v3412
    %v3414 = vrot.slane %v3413, 2
    %v3415 = vadd.f32 %v3413, %v3414
    %v3416 = vrot.slane %v3415, 1
    %v3417 = vadd.f32 %v3415, %v3416
    %v3418 = vadd.f32 %v3317, %v3321
    %v3419 = vadd.f32 %v3418, %v3327
    %v3420 = vadd.f32 %v3419, %v3331
    %v3421 = vadd.f32 %v3420, %v3337
    %v3422 = vadd.f32 %v3421, %v3341
    %v3423 = vadd.f32 %v3422, %v3347
    %v3424 = vadd.f32 %v3423, %v3351
    %v3425 = vadd.f32 %v3424, %v3357
    %v3426 = vadd.f32 %v3425, %v3361
    %v3427 = vadd.f32 %v3426, %v3367
    %v3428 = vadd.f32 %v3427, %v3371
    %v3429 = vadd.f32 %v3428, %v3377
    %v3430 = vadd.f32 %v3429, %v3381
    %v3431 = vadd.f32 %v3430, %v3387
    %v3432 = vadd.f32 %v3431, %v3391
    %v3433 = vrot.slane %v3432, 4
    %v3434 = vadd.f32 %v3432, %v3433
    %v3435 = vrot.slane %v3434, 2
    %v3436 = vadd.f32 %v3434, %v3435
    %v3437 = vrot.slane %v3436, 1
    %v3438 = vadd.f32 %v3436, %v3437
    %v3439 = vmul.f32 %v3315, %v3315
    %v3440 = vmul.f32 %v3317, %v3317
    %v3441 = vmul.f32 %v3319, %v3319
    %v3442 = vmul.f32 %v3321, %v3321
    %v3443 = vmul.f32 %v3325, %v3325
    %v3444 = vmul.f32 %v3327, %v3327
    %v3445 = vmul.f32 %v3329, %v3329
    %v3446 = vmul.f32 %v3331, %v3331
    %v3447 = vmul.f32 %v3335, %v3335
    %v3448 = vmul.f32 %v3337, %v3337
    %v3449 = vmul.f32 %v3339, %v3339
    %v3450 = vmul.f32 %v3341, %v3341
    %v3451 = vmul.f32 %v3345, %v3345
    %v3452 = vmul.f32 %v3347, %v3347
    %v3453 = vmul.f32 %v3349, %v3349
    %v3454 = vmul.f32 %v3351, %v3351
    %v3455 = vmul.f32 %v3355, %v3355
    %v3456 = vmul.f32 %v3357, %v3357
    %v3457 = vmul.f32 %v3359, %v3359
    %v3458 = vmul.f32 %v3361, %v3361
    %v3459 = vmul.f32 %v3365, %v3365
    %v3460 = vmul.f32 %v3367, %v3367
    %v3461 = vmul.f32 %v3369, %v3369
    %v3462 = vmul.f32 %v3371, %v3371
    %v3463 = vmul.f32 %v3375, %v3375
    %v3464 = vmul.f32 %v3377, %v3377
    %v3465 = vmul.f32 %v3379, %v3379
    %v3466 = vmul.f32 %v3381, %v3381
    %v3467 = vmul.f32 %v3385, %v3385
    %v3468 = vmul.f32 %v3387, %v3387
    %v3469 = vmul.f32 %v3389, %v3389
    %v3470 = vmul.f32 %v3391, %v3391
    %v3471 = vadd.f32 %v3439, %v3441
    %v3472 = vadd.f32 %v3471, %v3443
    %v3473 = vadd.f32 %v3472, %v3445
    %v3474 = vadd.f32 %v3473, %v3447
    %v3475 = vadd.f32 %v3474, %v3449
    %v3476 = vadd.f32 %v3475, %v3451
    %v3477 = vadd.f32 %v3476, %v3453
    %v3478 = vadd.f32 %v3477, %v3455
    %v3479 = vadd.f32 %v3478, %v3457
    %v3480 = vadd.f32 %v3479, %v3459
    %v3481 = vadd.f32 %v3480, %v3461
    %v3482 = vadd.f32 %v3481, %v3463
    %v3483 = vadd.f32 %v3482, %v3465
    %v3484 = vadd.f32 %v3483, %v3467
    %v3485 = vadd.f32 %v3484, %v3469
    %v3486 = vrot.slane %v3485, 4
    %v3487 = vadd.f32 %v3485, %v3486
    %v3488 = vrot.slane %v3487, 2
    %v3489 = vadd.f32 %v3487, %v3488
    %v3490 = vrot.slane %v3489, 1
    %v3491 = vadd.f32 %v3489, %v3490
    %v3492 = vadd.f32 %v3440, %v3442
    %v3493 = vadd.f32 %v3492, %v3444
    %v3494 = vadd.f32 %v3493, %v3446
    %v3495 = vadd.f32 %v3494, %v3448
    %v3496 = vadd.f32 %v3495, %v3450
    %v3497 = vadd.f32 %v3496, %v3452
    %v3498 = vadd.f32 %v3497, %v3454
    %v3499 = vadd.f32 %v3498, %v3456
    %v3500 = vadd.f32 %v3499, %v3458
    %v3501 = vadd.f32 %v3500, %v3460
    %v3502 = vadd.f32 %v3501, %v3462
    %v3503 = vadd.f32 %v3502, %v3464
    %v3504 = vadd.f32 %v3503, %v3466
    %v3505 = vadd.f32 %v3504, %v3468
    %v3506 = vadd.f32 %v3505, %v3470
    %v3507 = vrot.slane %v3506, 4
    %v3508 = vadd.f32 %v3506, %v3507
    %v3509 = vrot.slane %v3508, 2
    %v3510 = vadd.f32 %v3508, %v3509
    %v3511 = vrot.slane %v3510, 1
    %v3512 = vadd.f32 %v3510, %v3511
    %v3513 = vmul.f32 %v3417, 0.0078125
    %v3514 = vmul.f32 %v3438, 0.0078125
    %v3515 = vmul.f32 %v3491, 0.0078125
    %v3516 = vmul.f32 %v3512, 0.0078125
    %v3517 = vmul.f32 %v3513, %v3513
    %v3518 = vmul.f32 %v3514, %v3514
    %v3519 = vsub.f32 %v3515, %v3517
    %v3520 = vsub.f32 %v3516, %v3518
    %v3521 = vmax.f32 %v3519, 0.0
    %v3522 = vmax.f32 %v3520, 0.0
    %v3523 = vadd.f32 %v3521, 1e-05
    %v3524 = vadd.f32 %v3522, 1e-05
    %v3525 = vrsqrt.pop %v3523
    %v3526 = vrsqrt.pop %v3524
    %v3529 = vcombine.low %v3525, %v3526
    %v3531 = vunpack.c.l.s4 1966171168
    %v3532 = vunpack.c.0.s8 %v3531
    %v3533 = vlaneseq
    %v3534 = vshrl.u32 %v3533, 7
    %v3535 = vsub.s32 %v3532, %v3534
    %v3536 = vrot.slane %v3529, %v3535
    %v3538 = vunpack.c.l.s4 1966171168
    %v3539 = vunpack.c.0.s8 %v3538
    %v3540 = vlaneseq
    %v3541 = vshrl.u32 %v3540, 7
    %v3542 = vsub.s32 %v3539, %v3541
    %v3543 = vrot.slane %v3536, %v3542
    %v3545 = vmul.f32 %v3394, %v3543
    %v3547 = vlaneseq
    %v3548 = vshrl.u32 %v3547, 7
    %v3549 = vsub.s32 0, %v3548
    %v3550 = vrot.slane %v3545, %v3549
    %v3551 = vlaneseq
    %v3552 = vshrl.u32 %v3551, 7
    %v3553 = vsub.s32 1, %v3552
    %v3554 = vrot.slane %v3545, %v3553
    %v3557 = vmul.f32 %v3513, %v3550
    %v3558 = vmul.f32 %v3514, %v3554
    %v3561 = vcombine.low %v3557, %v3558
    %v3563 = vunpack.c.l.s4 1966171168
    %v3564 = vunpack.c.0.s8 %v3563
    %v3565 = vlaneseq
    %v3566 = vshrl.u32 %v3565, 7
    %v3567 = vsub.s32 %v3564, %v3566
    %v3568 = vrot.slane %v3561, %v3567
    %v3570 = vunpack.c.l.s4 1966171168
    %v3571 = vunpack.c.0.s8 %v3570
    %v3572 = vlaneseq
    %v3573 = vshrl.u32 %v3572, 7
    %v3574 = vsub.s32 %v3571, %v3573
    %v3575 = vrot.slane %v3568, %v3574
    %v3577 = vsub.f32 %v3396, %v3575
    %v3578 = vmul.f32 %v3315, %v3550
    %v3579 = vmul.f32 %v3317, %v3554
    %v3580 = vmul.f32 %v3319, %v3550
    %v3581 = vmul.f32 %v3321, %v3554
    %v3582 = vmul.f32 %v3325, %v3550
    %v3583 = vmul.f32 %v3327, %v3554
    %v3584 = vmul.f32 %v3329, %v3550
    %v3585 = vmul.f32 %v3331, %v3554
    %v3586 = vmul.f32 %v3335, %v3550
    %v3587 = vmul.f32 %v3337, %v3554
    %v3588 = vmul.f32 %v3339, %v3550
    %v3589 = vmul.f32 %v3341, %v3554
    %v3590 = vmul.f32 %v3345, %v3550
    %v3591 = vmul.f32 %v3347, %v3554
    %v3592 = vmul.f32 %v3349, %v3550
    %v3593 = vmul.f32 %v3351, %v3554
    %v3594 = vmul.f32 %v3355, %v3550
    %v3595 = vmul.f32 %v3357, %v3554
    %v3596 = vmul.f32 %v3359, %v3550
    %v3597 = vmul.f32 %v3361, %v3554
    %v3598 = vmul.f32 %v3365, %v3550
    %v3599 = vmul.f32 %v3367, %v3554
    %v3600 = vmul.f32 %v3369, %v3550
    %v3601 = vmul.f32 %v3371, %v3554
    %v3602 = vmul.f32 %v3375, %v3550
    %v3603 = vmul.f32 %v3377, %v3554
    %v3604 = vmul.f32 %v3379, %v3550
    %v3605 = vmul.f32 %v3381, %v3554
    %v3606 = vmul.f32 %v3385, %v3550
    %v3607 = vmul.f32 %v3387, %v3554
    %v3608 = vmul.f32 %v3389, %v3550
    %v3609 = vmul.f32 %v3391, %v3554
    %v3611 = vlaneseq
    %v3612 = vshrl.u32 %v3611, 7
    %v3613 = vsub.s32 0, %v3612
    %v3614 = vrot.slane %v3577, %v3613
    %v3615 = vlaneseq
    %v3616 = vshrl.u32 %v3615, 7
    %v3617 = vsub.s32 1, %v3616
    %v3618 = vrot.slane %v3577, %v3617
    %v3621 = vadd.f32 %v3578, %v3614
    %v3622 = vadd.f32 %v3579, %v3618
    %v3623 = vadd.f32 %v3580, %v3614
    %v3624 = vadd.f32 %v3581, %v3618
    %v3625 = vadd.f32 %v3582, %v3614
    %v3626 = vadd.f32 %v3583, %v3618
    %v3627 = vadd.f32 %v3584, %v3614
    %v3628 = vadd.f32 %v3585, %v3618
    %v3629 = vadd.f32 %v3586, %v3614
    %v3630 = vadd.f32 %v3587, %v3618
    %v3631 = vadd.f32 %v3588, %v3614
    %v3632 = vadd.f32 %v3589, %v3618
    %v3633 = vadd.f32 %v3590, %v3614
    %v3634 = vadd.f32 %v3591, %v3618
    %v3635 = vadd.f32 %v3592, %v3614
    %v3636 = vadd.f32 %v3593, %v3618
    %v3637 = vadd.f32 %v3594, %v3614
    %v3638 = vadd.f32 %v3595, %v3618
    %v3639 = vadd.f32 %v3596, %v3614
    %v3640 = vadd.f32 %v3597, %v3618
    %v3641 = vadd.f32 %v3598, %v3614
    %v3642 = vadd.f32 %v3599, %v3618
    %v3643 = vadd.f32 %v3600, %v3614
    %v3644 = vadd.f32 %v3601, %v3618
    %v3645 = vadd.f32 %v3602, %v3614
    %v3646 = vadd.f32 %v3603, %v3618
    %v3647 = vadd.f32 %v3604, %v3614
    %v3648 = vadd.f32 %v3605, %v3618
    %v3649 = vadd.f32 %v3606, %v3614
    %v3650 = vadd.f32 %v3607, %v3618
    %v3651 = vadd.f32 %v3608, %v3614
    %v3652 = vadd.f32 %v3609, %v3618
    %v3653 = vmax.f32 %v3621, 0.0
    %v3654 = vmax.f32 %v3622, 0.0
    %v3655 = vmax.f32 %v3623, 0.0
    %v3656 = vmax.f32 %v3624, 0.0
    %v3657 = vmax.f32 %v3625, 0.0
    %v3658 = vmax.f32 %v3626, 0.0
    %v3659 = vmax.f32 %v3627, 0.0
    %v3660 = vmax.f32 %v3628, 0.0
    %v3661 = vmax.f32 %v3629, 0.0
    %v3662 = vmax.f32 %v3630, 0.0
    %v3663 = vmax.f32 %v3631, 0.0
    %v3664 = vmax.f32 %v3632, 0.0
    %v3665 = vmax.f32 %v3633, 0.0
    %v3666 = vmax.f32 %v3634, 0.0
    %v3667 = vmax.f32 %v3635, 0.0
    %v3668 = vmax.f32 %v3636, 0.0
    %v3669 = vmax.f32 %v3637, 0.0
    %v3670 = vmax.f32 %v3638, 0.0
    %v3671 = vmax.f32 %v3639, 0.0
    %v3672 = vmax.f32 %v3640, 0.0
    %v3673 = vmax.f32 %v3641, 0.0
    %v3674 = vmax.f32 %v3642, 0.0
    %v3675 = vmax.f32 %v3643, 0.0
    %v3676 = vmax.f32 %v3644, 0.0
    %v3677 = vmax.f32 %v3645, 0.0
    %v3678 = vmax.f32 %v3646, 0.0
    %v3679 = vmax.f32 %v3647, 0.0
    %v3680 = vmax.f32 %v3648, 0.0
    %v3681 = vmax.f32 %v3649, 0.0
    %v3682 = vmax.f32 %v3650, 0.0
    %v3683 = vmax.f32 %v3651, 0.0
    %v3684 = vmax.f32 %v3652, 0.0
    %v3685 = vpack.c.bf16 %v3655, %v3653
    %v3686 = vpack.c.bf16 %v3656, %v3654
    %v3687 = vpack.c.bf16 %v3659, %v3657
    %v3688 = vpack.c.bf16 %v3660, %v3658
    %v3689 = vpack.c.bf16 %v3663, %v3661
    %v3690 = vpack.c.bf16 %v3664, %v3662
    %v3691 = vpack.c.bf16 %v3667, %v3665
    %v3692 = vpack.c.bf16 %v3668, %v3666
    %v3693 = vpack.c.bf16 %v3671, %v3669
    %v3694 = vpack.c.bf16 %v3672, %v3670
    %v3695 = vpack.c.bf16 %v3675, %v3673
    %v3696 = vpack.c.bf16 %v3676, %v3674
    %v3697 = vpack.c.bf16 %v3679, %v3677
    %v3698 = vpack.c.bf16 %v3680, %v3678
    %v3699 = vpack.c.bf16 %v3683, %v3681
    %v3700 = vpack.c.bf16 %v3684, %v3682
    %v3701 = vld [vmem:[%s4] sm:$0xf]
    %v3702 = vld [vmem:[%s4 + $0x4] sm:$0xf]
    %v3703 = vld [vmem:[%s4 + $0x8] sm:$0xf]
    %v3704 = vld [vmem:[%s4 + $0xc] sm:$0xf]
    %v3705 = vld [vmem:[%s4 + $0x10] sm:$0xf]
    %v3706 = vld [vmem:[%s4 + $0x14] sm:$0xf]
    %v3707 = vld [vmem:[%s4 + $0x18] sm:$0xf]
    %v3708 = vld [vmem:[%s4 + $0x1c] sm:$0xf]
    %v3709 = vld [vmem:[%s4 + $0x20] sm:$0xf]
    %v3710 = vld [vmem:[%s4 + $0x24] sm:$0xf]
    %v3711 = vld [vmem:[%s4 + $0x28] sm:$0xf]
    %v3712 = vld [vmem:[%s4 + $0x2c] sm:$0xf]
    %v3713 = vld [vmem:[%s4 + $0x30] sm:$0xf]
    %v3714 = vld [vmem:[%s4 + $0x34] sm:$0xf]
    %v3715 = vld [vmem:[%s4 + $0x38] sm:$0xf]
    %v3716 = vld [vmem:[%s4 + $0x3c] sm:$0xf]
    %v3717 = vld [vmem:[%s4 + $0x40] sm:$0xf]
    %v3718 = vld [vmem:[%s4 + $0x44] sm:$0xf]
    %v3719 = vld [vmem:[%s4 + $0x48] sm:$0xf]
    %v3720 = vld [vmem:[%s4 + $0x4c] sm:$0xf]
    %v3721 = vld [vmem:[%s4 + $0x50] sm:$0xf]
    %v3722 = vld [vmem:[%s4 + $0x54] sm:$0xf]
    %v3723 = vld [vmem:[%s4 + $0x58] sm:$0xf]
    %v3724 = vld [vmem:[%s4 + $0x5c] sm:$0xf]
    %v3725 = vld [vmem:[%s4 + $0x60] sm:$0xf]
    %v3726 = vld [vmem:[%s4 + $0x64] sm:$0xf]
    %v3727 = vld [vmem:[%s4 + $0x68] sm:$0xf]
    %v3728 = vld [vmem:[%s4 + $0x6c] sm:$0xf]
    %v3729 = vld [vmem:[%s4 + $0x70] sm:$0xf]
    %v3730 = vld [vmem:[%s4 + $0x74] sm:$0xf]
    %v3731 = vld [vmem:[%s4 + $0x78] sm:$0xf]
    %v3732 = vld [vmem:[%s4 + $0x7c] sm:$0xf]
    %v3765 = vunpack.c.l.b16 %v3701
    %v3766 = vunpack.c.l.b16 %v3702
    %v3767 = vunpack.c.l.b16 %v3703
    %v3768 = vunpack.c.l.b16 %v3704
    %v3769 = vunpack.c.l.b16 %v3705
    %v3770 = vunpack.c.l.b16 %v3706
    %v3771 = vunpack.c.l.b16 %v3707
    %v3772 = vunpack.c.l.b16 %v3708
    %v3773 = vunpack.c.l.b16 %v3709
    %v3774 = vunpack.c.l.b16 %v3710
    %v3775 = vunpack.c.l.b16 %v3711
    %v3776 = vunpack.c.l.b16 %v3712
    %v3777 = vunpack.c.l.b16 %v3713
    %v3778 = vunpack.c.l.b16 %v3714
    %v3779 = vunpack.c.l.b16 %v3715
    %v3780 = vunpack.c.l.b16 %v3716
    %v3781 = vunpack.c.l.b16 %v3717
    %v3782 = vunpack.c.l.b16 %v3718
    %v3783 = vunpack.c.l.b16 %v3719
    %v3784 = vunpack.c.l.b16 %v3720
    %v3785 = vunpack.c.l.b16 %v3721
    %v3786 = vunpack.c.l.b16 %v3722
    %v3787 = vunpack.c.l.b16 %v3723
    %v3788 = vunpack.c.l.b16 %v3724
    %v3789 = vunpack.c.l.b16 %v3725
    %v3790 = vunpack.c.l.b16 %v3726
    %v3791 = vunpack.c.l.b16 %v3727
    %v3792 = vunpack.c.l.b16 %v3728
    %v3793 = vunpack.c.l.b16 %v3729
    %v3794 = vunpack.c.l.b16 %v3730
    %v3795 = vunpack.c.l.b16 %v3731
    %v3796 = vunpack.c.l.b16 %v3732
    %v3797 = vpack.c.b16 %v3766, %v3765
    %v3798 = vpack.c.b16 %v3768, %v3767
    %v3799 = vpack.c.b16 %v3770, %v3769
    %v3800 = vpack.c.b16 %v3772, %v3771
    %v3801 = vpack.c.b16 %v3774, %v3773
    %v3802 = vpack.c.b16 %v3776, %v3775
    %v3803 = vpack.c.b16 %v3778, %v3777
    %v3804 = vpack.c.b16 %v3780, %v3779
    %v3805 = vpack.c.b16 %v3782, %v3781
    %v3806 = vpack.c.b16 %v3784, %v3783
    %v3807 = vpack.c.b16 %v3786, %v3785
    %v3808 = vpack.c.b16 %v3788, %v3787
    %v3809 = vpack.c.b16 %v3790, %v3789
    %v3810 = vpack.c.b16 %v3792, %v3791
    %v3811 = vpack.c.b16 %v3794, %v3793
    %v3812 = vpack.c.b16 %v3796, %v3795
    %3829 = vmatprep.subr.bf16.mxu0 0
    %3830 = vmatpush1.bf16.msra.mxu0 %v3797
    %3831 = vmatprep.subr.bf16.mxu0 0
    %3832 = vmatpush1.bf16.msra.mxu0 %v3798
    %3833 = vmatprep.subr.bf16.mxu0 0
    %3834 = vmatpush1.bf16.msra.mxu0 %v3799
    %3835 = vmatprep.subr.bf16.mxu0 0
    %3836 = vmatpush1.bf16.msra.mxu0 %v3800
    %3837 = vmatprep.subr.bf16.mxu0 0
    %3838 = vmatpush1.bf16.msra.mxu0 %v3801
    %3839 = vmatprep.subr.bf16.mxu0 0
    %3840 = vmatpush1.bf16.msra.mxu0 %v3802
    %3841 = vmatprep.subr.bf16.mxu0 0
    %3842 = vmatpush1.bf16.msra.mxu0 %v3803
    %3843 = vmatprep.subr.bf16.mxu0 0
    %3844 = vmatpush1.bf16.msra.mxu0 %v3804
    %3845 = vmatprep.subr.bf16.mxu0 0
    %3846 = vmatpush1.bf16.msra.mxu0 %v3805
    %3847 = vmatprep.subr.bf16.mxu0 0
    %3848 = vmatpush1.bf16.msra.mxu0 %v3806
    %3849 = vmatprep.subr.bf16.mxu0 0
    %3850 = vmatpush1.bf16.msra.mxu0 %v3807
    %3851 = vmatprep.subr.bf16.mxu0 0
    %3852 = vmatpush1.bf16.msra.mxu0 %v3808
    %3853 = vmatprep.subr.bf16.mxu0 0
    %3854 = vmatpush1.bf16.msra.mxu0 %v3809
    %3855 = vmatprep.subr.bf16.mxu0 0
    %3856 = vmatpush1.bf16.msra.mxu0 %v3810
    %3857 = vmatprep.subr.bf16.mxu0 0
    %3858 = vmatpush1.bf16.msra.mxu0 %v3811
    %3859 = vmatprep.subr.bf16.mxu0 0
    %3860 = vmatpush1.bf16.msra.mxu0 %v3812
    %3861 = vmatprep.mubr.bf16.mxu0 %v3686
    %3862 = vmatmul.mubr.bf16.gmra.mrb[0].mxu0 %v3685
    %v3863 = vpop.f32.mrb[0].mxu0
    %v3864 = vadd.f32 0.0, %v3863
    %v3865 = vpop.f32.mrb[0].mxu0
    %v3866 = vpop.f32.mrb[0].mxu0
    %v3867 = vadd.f32 0.0, %v3866
    %v3868 = vpop.f32.mrb[0].mxu0
    %3869 = vmatprep.mubr.bf16.mxu0 %v3688
    %3870 = vmatmul.mubr.bf16.gmra.mrb[0].mxu0 %v3687
    %v3871 = vpop.f32.mrb[0].mxu0
    %v3872 = vadd.f32 0.0, %v3871
    %v3873 = vpop.f32.mrb[0].mxu0
    %v3874 = vpop.f32.mrb[0].mxu0
    %v3875 = vadd.f32 0.0, %v3874
    %v3876 = vpop.f32.mrb[0].mxu0
    %3877 = vmatprep.mubr.bf16.mxu0 %v3690
    %3878 = vmatmul.mubr.bf16.gmra.mrb[0].mxu0 %v3689
    %v3879 = vpop.f32.mrb[0].mxu0
    %v3880 = vadd.f32 0.0, %v3879
    %v3881 = vpop.f32.mrb[0].mxu0
    %v3882 = vpop.f32.mrb[0].mxu0
    %v3883 = vadd.f32 0.0, %v3882
    %v3884 = vpop.f32.mrb[0].mxu0
    %3885 = vmatprep.mubr.bf16.mxu0 %v3692
    %3886 = vmatmul.mubr.bf16.gmra.mrb[0].mxu0 %v3691
    %v3887 = vpop.f32.mrb[0].mxu0
    %v3888 = vadd.f32 0.0, %v3887
    %v3889 = vpop.f32.mrb[0].mxu0
    %v3890 = vpop.f32.mrb[0].mxu0
    %v3891 = vadd.f32 0.0, %v3890
    %v3892 = vpop.f32.mrb[0].mxu0
    %3893 = vmatprep.mubr.bf16.mxu0 %v3694
    %3894 = vmatmul.mubr.bf16.gmra.mrb[0].mxu0 %v3693
    %v3895 = vpop.f32.mrb[0].mxu0
    %v3896 = vadd.f32 0.0, %v3895
    %v3897 = vpop.f32.mrb[0].mxu0
    %v3898 = vpop.f32.mrb[0].mxu0
    %v3899 = vadd.f32 0.0, %v3898
    %v3900 = vpop.f32.mrb[0].mxu0
    %3901 = vmatprep.mubr.bf16.mxu0 %v3696
    %3902 = vmatmul.mubr.bf16.gmra.mrb[0].mxu0 %v3695
    %v3903 = vpop.f32.mrb[0].mxu0
    %v3904 = vadd.f32 0.0, %v3903
    %v3905 = vpop.f32.mrb[0].mxu0
    %v3906 = vpop.f32.mrb[0].mxu0
    %v3907 = vadd.f32 0.0, %v3906
    %v3908 = vpop.f32.mrb[0].mxu0
    %3909 = vmatprep.mubr.bf16.mxu0 %v3698
    %3910 = vmatmul.mubr.bf16.gmra.mrb[0].mxu0 %v3697
    %v3911 = vpop.f32.mrb[0].mxu0
    %v3912 = vadd.f32 0.0, %v3911
    %v3913 = vpop.f32.mrb[0].mxu0
    %v3914 = vpop.f32.mrb[0].mxu0
    %v3915 = vadd.f32 0.0, %v3914
    %v3916 = vpop.f32.mrb[0].mxu0
    %3917 = vmatprep.mubr.bf16.mxu0 %v3700
    %3918 = vmatmul.mubr.bf16.gmra.mrb[0].mxu0 %v3699
    %v3919 = vpop.f32.mrb[0].mxu0
    %v3920 = vadd.f32 0.0, %v3919
    %v3921 = vpop.f32.mrb[0].mxu0
    %v3922 = vpop.f32.mrb[0].mxu0
    %v3923 = vadd.f32 0.0, %v3922
    %v3924 = vpop.f32.mrb[0].mxu0
    %3925 = vdwg.mxu0
    %v3926 = vld [vmem:[%s5 + $0x6] ss:$0 sm:$0xff]
    %v3927 = vld [vmem:[%s5 + $0x7] ss:$0 sm:$0xff]
    %vm3928 = vcmask 64512
    %v3929 = vsel %vm3928, %v3864, 0.0
    %v3930 = vsel %vm3928, %v3867, 0.0
    %v3931 = vadd.f32 %v3929, %v3930
    %v3932 = vsel %vm3928, %v3872, 0.0
    %v3933 = vadd.f32 %v3931, %v3932
    %v3934 = vsel %vm3928, %v3875, 0.0
    %v3935 = vadd.f32 %v3933, %v3934
    %v3936 = vsel %vm3928, %v3880, 0.0
    %v3937 = vadd.f32 %v3935, %v3936
    %v3938 = vsel %vm3928, %v3883, 0.0
    %v3939 = vadd.f32 %v3937, %v3938
    %v3940 = vsel %vm3928, %v3888, 0.0
    %v3941 = vadd.f32 %v3939, %v3940
    %v3942 = vsel %vm3928, %v3891, 0.0
    %v3943 = vadd.f32 %v3941, %v3942
    %v3944 = vsel %vm3928, %v3896, 0.0
    %v3945 = vadd.f32 %v3943, %v3944
    %v3946 = vsel %vm3928, %v3899, 0.0
    %v3947 = vadd.f32 %v3945, %v3946
    %v3948 = vsel %vm3928, %v3904, 0.0
    %v3949 = vadd.f32 %v3947, %v3948
    %v3950 = vsel %vm3928, %v3907, 0.0
    %v3951 = vadd.f32 %v3949, %v3950
    %v3952 = vsel %vm3928, %v3912, 0.0
    %v3953 = vadd.f32 %v3951, %v3952
    %v3954 = vsel %vm3928, %v3915, 0.0
    %v3955 = vadd.f32 %v3953, %v3954
    %v3956 = vsel %vm3928, %v3920, 0.0
    %v3957 = vadd.f32 %v3955, %v3956
    %v3958 = vsel %vm3928, %v3923, 0.0
    %v3959 = vadd.f32 %v3957, %v3958
    %v3960 = vrot.slane %v3959, 4
    %v3961 = vadd.f32 %v3959, %v3960
    %v3962 = vrot.slane %v3961, 2
    %v3963 = vadd.f32 %v3961, %v3962
    %v3964 = vrot.slane %v3963, 1
    %v3965 = vadd.f32 %v3963, %v3964
    %v3966 = vmul.f32 %v3864, %v3864
    %v3967 = vmul.f32 %v3867, %v3867
    %v3968 = vmul.f32 %v3872, %v3872
    %v3969 = vmul.f32 %v3875, %v3875
    %v3970 = vmul.f32 %v3880, %v3880
    %v3971 = vmul.f32 %v3883, %v3883
    %v3972 = vmul.f32 %v3888, %v3888
    %v3973 = vmul.f32 %v3891, %v3891
    %v3974 = vmul.f32 %v3896, %v3896
    %v3975 = vmul.f32 %v3899, %v3899
    %v3976 = vmul.f32 %v3904, %v3904
    %v3977 = vmul.f32 %v3907, %v3907
    %v3978 = vmul.f32 %v3912, %v3912
    %v3979 = vmul.f32 %v3915, %v3915
    %v3980 = vmul.f32 %v3920, %v3920
    %v3981 = vmul.f32 %v3923, %v3923
    %v3982 = vsel %vm3928, %v3966, 0.0
    %v3983 = vsel %vm3928, %v3967, 0.0
    %v3984 = vadd.f32 %v3982, %v3983
    %v3985 = vsel %vm3928, %v3968, 0.0
    %v3986 = vadd.f32 %v3984, %v3985
    %v3987 = vsel %vm3928, %v3969, 0.0
    %v3988 = vadd.f32 %v3986, %v3987
    %v3989 = vsel %vm3928, %v3970, 0.0
    %v3990 = vadd.f32 %v3988, %v3989
    %v3991 = vsel %vm3928, %v3971, 0.0
    %v3992 = vadd.f32 %v3990, %v3991
    %v3993 = vsel %vm3928, %v3972, 0.0
    %v3994 = vadd.f32 %v3992, %v3993
    %v3995 = vsel %vm3928, %v3973, 0.0
    %v3996 = vadd.f32 %v3994, %v3995
    %v3997 = vsel %vm3928, %v3974, 0.0
    %v3998 = vadd.f32 %v3996, %v3997
    %v3999 = vsel %vm3928, %v3975, 0.0
    %v4000 = vadd.f32 %v3998, %v3999
    %v4001 = vsel %vm3928, %v3976, 0.0
    %v4002 = vadd.f32 %v4000, %v4001
    %v4003 = vsel %vm3928, %v3977, 0.0
    %v4004 = vadd.f32 %v4002, %v4003
    %v4005 = vsel %vm3928, %v3978, 0.0
    %v4006 = vadd.f32 %v4004, %v4005
    %v4007 = vsel %vm3928, %v3979, 0.0
    %v4008 = vadd.f32 %v4006, %v4007
    %v4009 = vsel %vm3928, %v3980, 0.0
    %v4010 = vadd.f32 %v4008, %v4009
    %v4011 = vsel %vm3928, %v3981, 0.0
    %v4012 = vadd.f32 %v4010, %v4011
    %v4013 = vrot.slane %v4012, 4
    %v4014 = vadd.f32 %v4012, %v4013
    %v4015 = vrot.slane %v4014, 2
    %v4016 = vadd.f32 %v4014, %v4015
    %v4017 = vrot.slane %v4016, 1
    %v4018 = vadd.f32 %v4016, %v4017
    %v4019 = vmul.f32 %v3965, 0.0078125
    %v4020 = vmul.f32 %v4018, 0.0078125
    %v4021 = vmul.f32 %v4019, %v4019
    %v4022 = vsub.f32 %v4020, %v4021
    %v4023 = vmax.f32 %v4022, 0.0
    %v4024 = vadd.f32 %v4023, 1e-05
    %v4025 = vrsqrt.pop %v4024
    %v4026 = vmul.f32 %v3926, %v4025
    %v4027 = vmul.f32 %v4019, %v4026
    %v4028 = vsub.f32 %v3927, %v4027
    %v4029 = vmul.f32 %v3864, %v4026
    %v4030 = vmul.f32 %v3867, %v4026
    %v4031 = vmul.f32 %v3872, %v4026
    %v4032 = vmul.f32 %v3875, %v4026
    %v4033 = vmul.f32 %v3880, %v4026
    %v4034 = vmul.f32 %v3883, %v4026
    %v4035 = vmul.f32 %v3888, %v4026
    %v4036 = vmul.f32 %v3891, %v4026
    %v4037 = vmul.f32 %v3896, %v4026
    %v4038 = vmul.f32 %v3899, %v4026
    %v4039 = vmul.f32 %v3904, %v4026
    %v4040 = vmul.f32 %v3907, %v4026
    %v4041 = vmul.f32 %v3912, %v4026
    %v4042 = vmul.f32 %v3915, %v4026
    %v4043 = vmul.f32 %v3920, %v4026
    %v4044 = vmul.f32 %v3923, %v4026
    %v4045 = vadd.f32 %v4029, %v4028
    %v4046 = vadd.f32 %v4030, %v4028
    %v4047 = vadd.f32 %v4031, %v4028
    %v4048 = vadd.f32 %v4032, %v4028
    %v4049 = vadd.f32 %v4033, %v4028
    %v4050 = vadd.f32 %v4034, %v4028
    %v4051 = vadd.f32 %v4035, %v4028
    %v4052 = vadd.f32 %v4036, %v4028
    %v4053 = vadd.f32 %v4037, %v4028
    %v4054 = vadd.f32 %v4038, %v4028
    %v4055 = vadd.f32 %v4039, %v4028
    %v4056 = vadd.f32 %v4040, %v4028
    %v4057 = vadd.f32 %v4041, %v4028
    %v4058 = vadd.f32 %v4042, %v4028
    %v4059 = vadd.f32 %v4043, %v4028
    %v4060 = vadd.f32 %v4044, %v4028
    %v4061 = vmul.f32 %v4045, 0.5
    %v4062 = vmul.f32 %v4046, 0.5
    %v4063 = vmul.f32 %v4047, 0.5
    %v4064 = vmul.f32 %v4048, 0.5
    %v4065 = vmul.f32 %v4049, 0.5
    %v4066 = vmul.f32 %v4050, 0.5
    %v4067 = vmul.f32 %v4051, 0.5
    %v4068 = vmul.f32 %v4052, 0.5
    %v4069 = vmul.f32 %v4053, 0.5
    %v4070 = vmul.f32 %v4054, 0.5
    %v4071 = vmul.f32 %v4055, 0.5
    %v4072 = vmul.f32 %v4056, 0.5
    %v4073 = vmul.f32 %v4057, 0.5
    %v4074 = vmul.f32 %v4058, 0.5
    %v4075 = vmul.f32 %v4059, 0.5
    %v4076 = vmul.f32 %v4060, 0.5
    %v4077 = vtanh.pop %v4061
    %v4078 = vtanh.pop %v4062
    %v4079 = vtanh.pop %v4063
    %v4080 = vtanh.pop %v4064
    %v4081 = vtanh.pop %v4065
    %v4082 = vtanh.pop %v4066
    %v4083 = vtanh.pop %v4067
    %v4084 = vtanh.pop %v4068
    %v4085 = vtanh.pop %v4069
    %v4086 = vtanh.pop %v4070
    %v4087 = vtanh.pop %v4071
    %v4088 = vtanh.pop %v4072
    %v4089 = vtanh.pop %v4073
    %v4090 = vtanh.pop %v4074
    %v4091 = vtanh.pop %v4075
    %v4092 = vtanh.pop %v4076
    %v4093 = vadd.f32 %v4077, 1.0
    %v4094 = vadd.f32 %v4078, 1.0
    %v4095 = vadd.f32 %v4079, 1.0
    %v4096 = vadd.f32 %v4080, 1.0
    %v4097 = vadd.f32 %v4081, 1.0
    %v4098 = vadd.f32 %v4082, 1.0
    %v4099 = vadd.f32 %v4083, 1.0
    %v4100 = vadd.f32 %v4084, 1.0
    %v4101 = vadd.f32 %v4085, 1.0
    %v4102 = vadd.f32 %v4086, 1.0
    %v4103 = vadd.f32 %v4087, 1.0
    %v4104 = vadd.f32 %v4088, 1.0
    %v4105 = vadd.f32 %v4089, 1.0
    %v4106 = vadd.f32 %v4090, 1.0
    %v4107 = vadd.f32 %v4091, 1.0
    %v4108 = vadd.f32 %v4092, 1.0
    %v4109 = vmul.f32 %v4093, 0.5
    %v4110 = vmul.f32 %v4094, 0.5
    %v4111 = vmul.f32 %v4095, 0.5
    %v4112 = vmul.f32 %v4096, 0.5
    %v4113 = vmul.f32 %v4097, 0.5
    %v4114 = vmul.f32 %v4098, 0.5
    %v4115 = vmul.f32 %v4099, 0.5
    %v4116 = vmul.f32 %v4100, 0.5
    %v4117 = vmul.f32 %v4101, 0.5
    %v4118 = vmul.f32 %v4102, 0.5
    %v4119 = vmul.f32 %v4103, 0.5
    %v4120 = vmul.f32 %v4104, 0.5
    %v4121 = vmul.f32 %v4105, 0.5
    %v4122 = vmul.f32 %v4106, 0.5
    %v4123 = vmul.f32 %v4107, 0.5
    %v4124 = vmul.f32 %v4108, 0.5
    %4125 = vst.msk [vmem:[%s6] sm:$0xff] %vm3928, %v4109
    %4126 = vst.msk [vmem:[%s6 + $0x8] sm:$0xff] %vm3928, %v4110
    %4127 = vst.msk [vmem:[%s6 + $0x10] sm:$0xff] %vm3928, %v4111
    %4128 = vst.msk [vmem:[%s6 + $0x18] sm:$0xff] %vm3928, %v4112
    %4129 = vst.msk [vmem:[%s6 + $0x20] sm:$0xff] %vm3928, %v4113
    %4130 = vst.msk [vmem:[%s6 + $0x28] sm:$0xff] %vm3928, %v4114
    %4131 = vst.msk [vmem:[%s6 + $0x30] sm:$0xff] %vm3928, %v4115
    %4132 = vst.msk [vmem:[%s6 + $0x38] sm:$0xff] %vm3928, %v4116
    %4133 = vst.msk [vmem:[%s6 + $0x40] sm:$0xff] %vm3928, %v4117
    %4134 = vst.msk [vmem:[%s6 + $0x48] sm:$0xff] %vm3928, %v4118
    %4135 = vst.msk [vmem:[%s6 + $0x50] sm:$0xff] %vm3928, %v4119
    %4136 = vst.msk [vmem:[%s6 + $0x58] sm:$0xff] %vm3928, %v4120
    %4137 = vst.msk [vmem:[%s6 + $0x60] sm:$0xff] %vm3928, %v4121
    %4138 = vst.msk [vmem:[%s6 + $0x68] sm:$0xff] %vm3928, %v4122
    %4139 = vst.msk [vmem:[%s6 + $0x70] sm:$0xff] %vm3928, %v4123
    %4140 = vst.msk [vmem:[%s6 + $0x78] sm:$0xff] %vm3928, %v4124
    // Predicated region
    $region34: #{tpu_custom_call.1} parent=1 // pred_check
      _
    $region35: #{tpu_custom_call.1} parent=1 // pred_check_branch
      %4142 = sbr.rel (0) target = $region37
    $region36: #{tpu_custom_call.1} parent=1 // pred_region
      _
    $region37: #{tpu_custom_call.1} parent=1 // pred_fallthru
      _
    // Predicated region
    $region38: #{tpu_custom_call.1} parent=1 // pred_check
      _
    $region39: #{tpu_custom_call.1} parent=1 // pred_check_branch
      %4144 = sbr.rel (0) target = $region41
    $region40: #{tpu_custom_call.1} parent=1 // pred_region
      _
    $region41: #{tpu_custom_call.1} parent=1 // pred_fallthru
      _
    %4145 = vsyncpa [#allocation3], 1
    %4146 = vsyncpa [#allocation5], 1

</llo_original>
